<compile_context>
chip_gen: v7x
topology: tpu7x:2x2x1
jax: 0.10.0
libtpu: 0.0.40
codegen_flags: <defaults>
</compile_context>

<pallas_src>
import jax
import jax.numpy as jnp
from jax.experimental import pallas as pl
from jax.experimental.pallas import tpu as pltpu

HUMAN_2D_SIZE = 16 * 2   # 32
HUMAN_3D_SIZE = 16 * 3   # 48
OUT_PAD = 128            # lane-dense padded output width (>= HUMAN_3D_SIZE)


def _linear_model_kernel(x_ref,
                         w_init_ref, b_init_ref,
                         w_blk0_ref, b_blk0_ref,
                         w_blk1_ref, b_blk1_ref,
                         w_out_ref, b_out_ref,
                         o_ref):
    # x tile stays f32 (K=32 is cheap, tightens accuracy of the first layer);
    # the big [L, L] weights are bf16 with f32 MXU accumulation.
    x = x_ref[...]                                                    # [bm, 32] f32

    # l_initial + ReLU (dropout = identity in eval)
    h = jnp.dot(x, w_init_ref[...], preferred_element_type=jnp.float32)
    h = jnp.maximum(h + b_init_ref[...], 0.0)                          # [bm, L] f32

    # linear_block #1: h + relu(Linear(h))
    y = jnp.dot(h.astype(jnp.bfloat16), w_blk0_ref[...],
                preferred_element_type=jnp.float32)
    h = h + jnp.maximum(y + b_blk0_ref[...], 0.0)

    # linear_block #2
    y = jnp.dot(h.astype(jnp.bfloat16), w_blk1_ref[...],
                preferred_element_type=jnp.float32)
    h = h + jnp.maximum(y + b_blk1_ref[...], 0.0)

    # final ReLU + lane-padded output projection (bf16 lane-dense store)
    h = jnp.maximum(h, 0.0)
    out = jnp.dot(h.astype(jnp.bfloat16), w_out_ref[...],
                  preferred_element_type=jnp.float32)
    o_ref[...] = (out + b_out_ref[...]).astype(o_ref.dtype)


def _round_up(a, m):
    return ((a + m - 1) // m) * m


def _default_bm(B):
    """Generation-aware batch tile: multiple of 256, keep >=2 grid tiles."""
    cap = 1024
    try:
        kind = jax.devices()[0].device_kind.lower()
        if "v5 lite" in kind or "v5e" in kind or "v5litepod" in kind:
            cap = 512   # v5e: slower MXU / 1 vst slot; 256-512 already amortizes step overhead
    except Exception:
        pass
    # Aim for >= 4 grid tiles (the "parallel" axis feeds v7x's 2nd TensorCore),
    # each a multiple of 256 MXU rows; never exceed the (row-padded) batch.
    bm = _round_up(max(pl.cdiv(B, 4), 1), 256)
    bm = max(256, min(cap, bm))
    bm = min(bm, _round_up(B, 8))        # tiny-batch safety
    return int(bm)


def _pallas_forward(x, p, *, bm, n_tiles, L, single_buffer_weights):
    if single_buffer_weights:
        # Resident blocks (constant index map) -> no need for double buffering.
        resident = lambda shape: pl.BlockSpec(shape, lambda i: (0, 0),
                                              pipeline_mode=pl.Buffered(1))
    else:
        resident = lambda shape: pl.BlockSpec(shape, lambda i: (0, 0))

    return pl.pallas_call(
        _linear_model_kernel,
        out_shape=jax.ShapeDtypeStruct((x.shape[0], OUT_PAD), jnp.bfloat16),
        grid_spec=pltpu.PrefetchScalarGridSpec(
            num_scalar_prefetch=0,
            grid=(n_tiles,),
            in_specs=[
                pl.BlockSpec((bm, HUMAN_2D_SIZE), lambda i: (i, 0)),   # x (ragged last tile)
                resident((HUMAN_2D_SIZE, L)), resident((1, L)),        # l_initial
                resident((L, L)), resident((1, L)),                    # block 0
                resident((L, L)), resident((1, L)),                    # block 1
                resident((L, OUT_PAD)), resident((1, OUT_PAD)),        # output proj (padded)
            ],
            out_specs=pl.BlockSpec((bm, OUT_PAD), lambda i: (i, 0)),
        ),
        compiler_params=pltpu.CompilerParams(
            dimension_semantics=("parallel",)),
    )(x,
      p["w_init"], p["b_init"],
      p["w_blk0"], p["b_blk0"],
      p["w_blk1"], p["b_blk1"],
      p["w_out"], p["b_out"])


def linear_model_forward(x, prepared, *, bm=None):
    """x: [B, 32] f32.  prepared: output of prepare_params().  Returns [B, 48] f32."""
    B, F_in = x.shape
    assert F_in == HUMAN_2D_SIZE
    L = prepared["w_blk0"].shape[0]

    if bm is None:
        bm = _default_bm(B)
    n_tiles = pl.cdiv(B, bm)

    try:
        out = _pallas_forward(x, prepared, bm=bm, n_tiles=n_tiles, L=L,
                              single_buffer_weights=True)
    except Exception:
        # Older JAX without BlockSpec.pipeline_mode / pl.Buffered support.
        out = _pallas_forward(x, prepared, bm=bm, n_tiles=n_tiles, L=L,
                              single_buffer_weights=False)

    # Padded rows of the last tile are masked by Pallas; slice lanes + upcast.
    return out[:, :HUMAN_3D_SIZE].astype(jnp.float32)


def prepare_params(params):
    """One-time (hoisted out of the forward path) kernel-side weight prep."""
    L = params["w_blk0"].shape[0]
    w_out = jnp.zeros((L, OUT_PAD), jnp.bfloat16)
    w_out = w_out.at[:, :HUMAN_3D_SIZE].set(params["w_out"].astype(jnp.bfloat16))
    b_out = jnp.zeros((1, OUT_PAD), jnp.float32)
    b_out = b_out.at[:, :HUMAN_3D_SIZE].set(params["b_out"])
    return dict(
        w_init=params["w_init"],                    # f32 (K=32, keep full precision)
        b_init=params["b_init"],
        w_blk0=params["w_blk0"].astype(jnp.bfloat16),
        b_blk0=params["b_blk0"],
        w_blk1=params["w_blk1"].astype(jnp.bfloat16),
        b_blk1=params["b_blk1"],
        w_out=w_out, b_out=b_out,
    )


def init_params(key, linear_size):
    """Deterministic parameter init (PyTorch-Linear-like uniform bounds), f32."""
    def linear(k, fan_in, fan_out):
        k1, k2 = jax.random.split(k)
        bound = 1.0 / jnp.sqrt(fan_in)
        w = jax.random.uniform(k1, (fan_in, fan_out), jnp.float32, -bound, bound)
        b = jax.random.uniform(k2, (1, fan_out), jnp.float32, -bound, bound)
        return w, b

    ks = jax.random.split(key, 4)
    w_init, b_init = linear(ks[0], HUMAN_2D_SIZE, linear_size)
    w_blk0, b_blk0 = linear(ks[1], linear_size, linear_size)
    w_blk1, b_blk1 = linear(ks[2], linear_size, linear_size)
    w_out, b_out = linear(ks[3], linear_size, HUMAN_3D_SIZE)
    return dict(w_init=w_init, b_init=b_init,
                w_blk0=w_blk0, b_blk0=b_blk0,
                w_blk1=w_blk1, b_blk1=b_blk1,
                w_out=w_out, b_out=b_out)


def reference_forward(x, p):
    """Pure-JAX f32 reference of the same math (sanity check)."""
    h = jnp.maximum(x @ p["w_init"] + p["b_init"], 0.0)
    h = h + jnp.maximum(h @ p["w_blk0"] + p["b_blk0"], 0.0)
    h = h + jnp.maximum(h @ p["w_blk1"] + p["b_blk1"], 0.0)
    h = jnp.maximum(h, 0.0)
    return h @ p["w_out"] + p["b_out"]


if __name__ == "__main__":
    key = jax.random.PRNGKey(0)
    k_x, k_p = jax.random.split(key)

    batch = 500           # not a tile multiple -> exercises the ragged last tile
    linear_size = 256     # (HourglassNet uses 1024; smaller here per small-shape rule)

    x = jax.random.normal(k_x, (batch, HUMAN_2D_SIZE), jnp.float32)
    params = init_params(k_p, linear_size)
    prepared = prepare_params(params)          # hoisted, one-time weight prep

    out = linear_model_forward(x, prepared)    # bm=256 -> 2 parallel batch tiles
    out = jax.block_until_ready(out)

    ref = reference_forward(x, params)
    assert out.shape == (batch, HUMAN_3D_SIZE)
    # bf16 matmul operands / bf16 output store with f32 accumulation -> loose tol.
    assert jnp.allclose(out, ref, atol=5e-2, rtol=5e-2), \
        float(jnp.max(jnp.abs(out - ref)))

    print("KERNEL_OK")
</pallas_src>

<mosaic_0001>
module attributes {stable_mosaic.version = 11 : i64} {
  func.func @_linear_model_kernel(%arg0: i32, %arg1: memref<256x32xf32, #tpu.memory_space<vmem>>, %arg2: memref<32x256xf32, #tpu.memory_space<vmem>>, %arg3: memref<1x256xf32, #tpu.memory_space<vmem>>, %arg4: memref<256x256xbf16, #tpu.memory_space<vmem>>, %arg5: memref<1x256xf32, #tpu.memory_space<vmem>>, %arg6: memref<256x256xbf16, #tpu.memory_space<vmem>>, %arg7: memref<1x256xf32, #tpu.memory_space<vmem>>, %arg8: memref<256x128xbf16, #tpu.memory_space<vmem>>, %arg9: memref<1x128xf32, #tpu.memory_space<vmem>>, %arg10: memref<256x128xbf16, #tpu.memory_space<vmem>>) attributes {dimension_semantics = [#tpu.dimension_semantics<parallel>], iteration_bounds = array<i64: 2>, scalar_prefetch = 0 : i64, scratch_operands = 0 : i64, tpu.core_type = #tpu.core_type<tc>, window_params = [{transform_indices = @transform_0, window_bounds = array<i64: 256, 32>}, {pipeline_mode = #tpu.pipeline_mode<synchronous>, transform_indices = @transform_1, window_bounds = array<i64: 32, 256>}, {pipeline_mode = #tpu.pipeline_mode<synchronous>, transform_indices = @transform_2, window_bounds = array<i64: 1, 256>}, {pipeline_mode = #tpu.pipeline_mode<synchronous>, transform_indices = @transform_3, window_bounds = array<i64: 256, 256>}, {pipeline_mode = #tpu.pipeline_mode<synchronous>, transform_indices = @transform_4, window_bounds = array<i64: 1, 256>}, {pipeline_mode = #tpu.pipeline_mode<synchronous>, transform_indices = @transform_5, window_bounds = array<i64: 256, 256>}, {pipeline_mode = #tpu.pipeline_mode<synchronous>, transform_indices = @transform_6, window_bounds = array<i64: 1, 256>}, {pipeline_mode = #tpu.pipeline_mode<synchronous>, transform_indices = @transform_7, window_bounds = array<i64: 256, 128>}, {pipeline_mode = #tpu.pipeline_mode<synchronous>, transform_indices = @transform_8, window_bounds = array<i64: 1, 128>}, {transform_indices = @transform_9, window_bounds = array<i64: 256, 128>}]} {
    %c0 = arith.constant 0 : index
    %c0_0 = arith.constant 0 : index
    %0 = vector.load %arg1[%c0, %c0_0] : memref<256x32xf32, #tpu.memory_space<vmem>>, vector<256x32xf32>
    %c0_1 = arith.constant 0 : index
    %c0_2 = arith.constant 0 : index
    %1 = vector.load %arg2[%c0_1, %c0_2] : memref<32x256xf32, #tpu.memory_space<vmem>>, vector<32x256xf32>
    %cst = arith.constant dense<0.000000e+00> : vector<256x256xf32>
    %2 = tpu.matmul %0, %1, %cst {dimension_numbers = #tpu.dot_dimension_numbers<[1], [0], [0], [1], [0, 0, 1, 1], [], []>} : vector<256x32xf32>, vector<32x256xf32>, vector<256x256xf32> -> vector<256x256xf32>
    %c0_3 = arith.constant 0 : index
    %c0_4 = arith.constant 0 : index
    %3 = vector.load %arg3[%c0_3, %c0_4] : memref<1x256xf32, #tpu.memory_space<vmem>>, vector<1x256xf32>
    %4 = vector.broadcast %3 : vector<1x256xf32> to vector<256x256xf32>
    %5 = arith.addf %2, %4 : vector<256x256xf32>
    %cst_5 = arith.constant 0.000000e+00 : f32
    %6 = vector.broadcast %cst_5 : f32 to vector<256x256xf32>
    %7 = arith.maximumf %5, %6 : vector<256x256xf32>
    %8 = arith.truncf %7 : vector<256x256xf32> to vector<256x256xbf16>
    %c0_6 = arith.constant 0 : index
    %c0_7 = arith.constant 0 : index
    %9 = vector.load %arg4[%c0_6, %c0_7] : memref<256x256xbf16, #tpu.memory_space<vmem>>, vector<256x256xbf16>
    %cst_8 = arith.constant dense<0.000000e+00> : vector<256x256xf32>
    %10 = tpu.matmul %8, %9, %cst_8 {dimension_numbers = #tpu.dot_dimension_numbers<[1], [0], [0], [1], [0, 0, 1, 1], [], []>} : vector<256x256xbf16>, vector<256x256xbf16>, vector<256x256xf32> -> vector<256x256xf32>
    %c0_9 = arith.constant 0 : index
    %c0_10 = arith.constant 0 : index
    %11 = vector.load %arg5[%c0_9, %c0_10] : memref<1x256xf32, #tpu.memory_space<vmem>>, vector<1x256xf32>
    %12 = vector.broadcast %11 : vector<1x256xf32> to vector<256x256xf32>
    %13 = arith.addf %10, %12 : vector<256x256xf32>
    %cst_11 = arith.constant 0.000000e+00 : f32
    %14 = vector.broadcast %cst_11 : f32 to vector<256x256xf32>
    %15 = arith.maximumf %13, %14 : vector<256x256xf32>
    %16 = arith.addf %7, %15 : vector<256x256xf32>
    %17 = arith.truncf %16 : vector<256x256xf32> to vector<256x256xbf16>
    %c0_12 = arith.constant 0 : index
    %c0_13 = arith.constant 0 : index
    %18 = vector.load %arg6[%c0_12, %c0_13] : memref<256x256xbf16, #tpu.memory_space<vmem>>, vector<256x256xbf16>
    %cst_14 = arith.constant dense<0.000000e+00> : vector<256x256xf32>
    %19 = tpu.matmul %17, %18, %cst_14 {dimension_numbers = #tpu.dot_dimension_numbers<[1], [0], [0], [1], [0, 0, 1, 1], [], []>} : vector<256x256xbf16>, vector<256x256xbf16>, vector<256x256xf32> -> vector<256x256xf32>
    %c0_15 = arith.constant 0 : index
    %c0_16 = arith.constant 0 : index
    %20 = vector.load %arg7[%c0_15, %c0_16] : memref<1x256xf32, #tpu.memory_space<vmem>>, vector<1x256xf32>
    %21 = vector.broadcast %20 : vector<1x256xf32> to vector<256x256xf32>
    %22 = arith.addf %19, %21 : vector<256x256xf32>
    %cst_17 = arith.constant 0.000000e+00 : f32
    %23 = vector.broadcast %cst_17 : f32 to vector<256x256xf32>
    %24 = arith.maximumf %22, %23 : vector<256x256xf32>
    %25 = arith.addf %16, %24 : vector<256x256xf32>
    %cst_18 = arith.constant 0.000000e+00 : f32
    %26 = vector.broadcast %cst_18 : f32 to vector<256x256xf32>
    %27 = arith.maximumf %25, %26 : vector<256x256xf32>
    %28 = arith.truncf %27 : vector<256x256xf32> to vector<256x256xbf16>
    %c0_19 = arith.constant 0 : index
    %c0_20 = arith.constant 0 : index
    %29 = vector.load %arg8[%c0_19, %c0_20] : memref<256x128xbf16, #tpu.memory_space<vmem>>, vector<256x128xbf16>
    %cst_21 = arith.constant dense<0.000000e+00> : vector<256x128xf32>
    %30 = tpu.matmul %28, %29, %cst_21 {dimension_numbers = #tpu.dot_dimension_numbers<[1], [0], [0], [1], [0, 0, 1, 1], [], []>} : vector<256x256xbf16>, vector<256x128xbf16>, vector<256x128xf32> -> vector<256x128xf32>
    %c0_22 = arith.constant 0 : index
    %c0_23 = arith.constant 0 : index
    %31 = vector.load %arg9[%c0_22, %c0_23] : memref<1x128xf32, #tpu.memory_space<vmem>>, vector<1x128xf32>
    %32 = vector.broadcast %31 : vector<1x128xf32> to vector<256x128xf32>
    %33 = arith.addf %30, %32 : vector<256x128xf32>
    %34 = arith.truncf %33 : vector<256x128xf32> to vector<256x128xbf16>
    %c0_24 = arith.constant 0 : index
    %c0_25 = arith.constant 0 : index
    %35 = vector.load %arg10[%c0_24, %c0_25] : memref<256x128xbf16, #tpu.memory_space<vmem>>, vector<256x128xbf16>
    tpu.vector_store %arg10[%c0_24, %c0_25], %34 {strides = array<i32>} : memref<256x128xbf16, #tpu.memory_space<vmem>>, vector<256x128xbf16>,
    return
  }
  func.func @transform_0(%arg0: i32) -> (i32, i32) {
    %c0_i32 = arith.constant 0 : i32
    %c0_i32_0 = arith.constant 0 : i32
    return %arg0, %c0_i32 : i32, i32
  }
  func.func @transform_1(%arg0: i32) -> (i32, i32) {
    %c0_i32 = arith.constant 0 : i32
    %c0_i32_0 = arith.constant 0 : i32
    %c0_i32_1 = arith.constant 0 : i32
    return %c0_i32, %c0_i32_0 : i32, i32
  }
  func.func @transform_2(%arg0: i32) -> (i32, i32) {
    %c0_i32 = arith.constant 0 : i32
    %c0_i32_0 = arith.constant 0 : i32
    %c0_i32_1 = arith.constant 0 : i32
    return %c0_i32, %c0_i32_0 : i32, i32
  }
  func.func @transform_3(%arg0: i32) -> (i32, i32) {
    %c0_i32 = arith.constant 0 : i32
    %c0_i32_0 = arith.constant 0 : i32
    %c0_i32_1 = arith.constant 0 : i32
    return %c0_i32, %c0_i32_0 : i32, i32
  }
  func.func @transform_4(%arg0: i32) -> (i32, i32) {
    %c0_i32 = arith.constant 0 : i32
    %c0_i32_0 = arith.constant 0 : i32
    %c0_i32_1 = arith.constant 0 : i32
    return %c0_i32, %c0_i32_0 : i32, i32
  }
  func.func @transform_5(%arg0: i32) -> (i32, i32) {
    %c0_i32 = arith.constant 0 : i32
    %c0_i32_0 = arith.constant 0 : i32
    %c0_i32_1 = arith.constant 0 : i32
    return %c0_i32, %c0_i32_0 : i32, i32
  }
  func.func @transform_6(%arg0: i32) -> (i32, i32) {
    %c0_i32 = arith.constant 0 : i32
    %c0_i32_0 = arith.constant 0 : i32
    %c0_i32_1 = arith.constant 0 : i32
    return %c0_i32, %c0_i32_0 : i32, i32
  }
  func.func @transform_7(%arg0: i32) -> (i32, i32) {
    %c0_i32 = arith.constant 0 : i32
    %c0_i32_0 = arith.constant 0 : i32
    %c0_i32_1 = arith.constant 0 : i32
    return %c0_i32, %c0_i32_0 : i32, i32
  }
  func.func @transform_8(%arg0: i32) -> (i32, i32) {
    %c0_i32 = arith.constant 0 : i32
    %c0_i32_0 = arith.constant 0 : i32
    %c0_i32_1 = arith.constant 0 : i32
    return %c0_i32, %c0_i32_0 : i32, i32
  }
  func.func @transform_9(%arg0: i32) -> (i32, i32) {
    %c0_i32 = arith.constant 0 : i32
    %c0_i32_0 = arith.constant 0 : i32
    return %arg0, %c0_i32 : i32, i32
  }
}

module attributes {stable_mosaic.version = 11 : i64} {
  func.func @_linear_model_kernel(%arg0: i32, %arg1: memref<256x32xf32, #tpu.memory_space<vmem>>, %arg2: memref<32x256xf32, #tpu.memory_space<vmem>>, %arg3: memref<1x256xf32, #tpu.memory_space<vmem>>, %arg4: memref<256x256xbf16, #tpu.memory_space<vmem>>, %arg5: memref<1x256xf32, #tpu.memory_space<vmem>>, %arg6: memref<256x256xbf16, #tpu.memory_space<vmem>>, %arg7: memref<1x256xf32, #tpu.memory_space<vmem>>, %arg8: memref<256x128xbf16, #tpu.memory_space<vmem>>, %arg9: memref<1x128xf32, #tpu.memory_space<vmem>>, %arg10: memref<256x128xbf16, #tpu.memory_space<vmem>>) attributes {dimension_semantics = [#tpu.dimension_semantics<parallel>], iteration_bounds = array<i64: 2>, scalar_prefetch = 0 : i64, scratch_operands = 0 : i64, tpu.core_type = #tpu.core_type<tc>, window_params = [{transform_indices = @transform_0, window_bounds = array<i64: 256, 32>}, {pipeline_mode = #tpu.pipeline_mode<synchronous>, transform_indices = @transform_1, window_bounds = array<i64: 32, 256>}, {pipeline_mode = #tpu.pipeline_mode<synchronous>, transform_indices = @transform_2, window_bounds = array<i64: 1, 256>}, {pipeline_mode = #tpu.pipeline_mode<synchronous>, transform_indices = @transform_3, window_bounds = array<i64: 256, 256>}, {pipeline_mode = #tpu.pipeline_mode<synchronous>, transform_indices = @transform_4, window_bounds = array<i64: 1, 256>}, {pipeline_mode = #tpu.pipeline_mode<synchronous>, transform_indices = @transform_5, window_bounds = array<i64: 256, 256>}, {pipeline_mode = #tpu.pipeline_mode<synchronous>, transform_indices = @transform_6, window_bounds = array<i64: 1, 256>}, {pipeline_mode = #tpu.pipeline_mode<synchronous>, transform_indices = @transform_7, window_bounds = array<i64: 256, 128>}, {pipeline_mode = #tpu.pipeline_mode<synchronous>, transform_indices = @transform_8, window_bounds = array<i64: 1, 128>}, {transform_indices = @transform_9, window_bounds = array<i64: 256, 128>}]} {
    %c0 = arith.constant 0 : index
    %c0_0 = arith.constant 0 : index
    %0 = vector.load %arg1[%c0, %c0_0] : memref<256x32xf32, #tpu.memory_space<vmem>>, vector<256x32xf32>
    %c0_1 = arith.constant 0 : index
    %c0_2 = arith.constant 0 : index
    %1 = vector.load %arg2[%c0_1, %c0_2] : memref<32x256xf32, #tpu.memory_space<vmem>>, vector<32x256xf32>
    %cst = arith.constant dense<0.000000e+00> : vector<256x256xf32>
    %2 = tpu.matmul %0, %1, %cst {dimension_numbers = #tpu.dot_dimension_numbers<[1], [0], [0], [1], [0, 0, 1, 1], [], []>} : vector<256x32xf32>, vector<32x256xf32>, vector<256x256xf32> -> vector<256x256xf32>
    %c0_3 = arith.constant 0 : index
    %c0_4 = arith.constant 0 : index
    %3 = vector.load %arg3[%c0_3, %c0_4] : memref<1x256xf32, #tpu.memory_space<vmem>>, vector<1x256xf32>
    %4 = vector.broadcast %3 : vector<1x256xf32> to vector<256x256xf32>
    %5 = arith.addf %2, %4 : vector<256x256xf32>
    %cst_5 = arith.constant 0.000000e+00 : f32
    %6 = vector.broadcast %cst_5 : f32 to vector<256x256xf32>
    %7 = arith.maximumf %5, %6 : vector<256x256xf32>
    %8 = arith.truncf %7 : vector<256x256xf32> to vector<256x256xbf16>
    %c0_6 = arith.constant 0 : index
    %c0_7 = arith.constant 0 : index
    %9 = vector.load %arg4[%c0_6, %c0_7] : memref<256x256xbf16, #tpu.memory_space<vmem>>, vector<256x256xbf16>
    %cst_8 = arith.constant dense<0.000000e+00> : vector<256x256xf32>
    %10 = tpu.matmul %8, %9, %cst_8 {dimension_numbers = #tpu.dot_dimension_numbers<[1], [0], [0], [1], [0, 0, 1, 1], [], []>} : vector<256x256xbf16>, vector<256x256xbf16>, vector<256x256xf32> -> vector<256x256xf32>
    %c0_9 = arith.constant 0 : index
    %c0_10 = arith.constant 0 : index
    %11 = vector.load %arg5[%c0_9, %c0_10] : memref<1x256xf32, #tpu.memory_space<vmem>>, vector<1x256xf32>
    %12 = vector.broadcast %11 : vector<1x256xf32> to vector<256x256xf32>
    %13 = arith.addf %10, %12 : vector<256x256xf32>
    %cst_11 = arith.constant 0.000000e+00 : f32
    %14 = vector.broadcast %cst_11 : f32 to vector<256x256xf32>
    %15 = arith.maximumf %13, %14 : vector<256x256xf32>
    %16 = arith.addf %7, %15 : vector<256x256xf32>
    %17 = arith.truncf %16 : vector<256x256xf32> to vector<256x256xbf16>
    %c0_12 = arith.constant 0 : index
    %c0_13 = arith.constant 0 : index
    %18 = vector.load %arg6[%c0_12, %c0_13] : memref<256x256xbf16, #tpu.memory_space<vmem>>, vector<256x256xbf16>
    %cst_14 = arith.constant dense<0.000000e+00> : vector<256x256xf32>
    %19 = tpu.matmul %17, %18, %cst_14 {dimension_numbers = #tpu.dot_dimension_numbers<[1], [0], [0], [1], [0, 0, 1, 1], [], []>} : vector<256x256xbf16>, vector<256x256xbf16>, vector<256x256xf32> -> vector<256x256xf32>
    %c0_15 = arith.constant 0 : index
    %c0_16 = arith.constant 0 : index
    %20 = vector.load %arg7[%c0_15, %c0_16] : memref<1x256xf32, #tpu.memory_space<vmem>>, vector<1x256xf32>
    %21 = vector.broadcast %20 : vector<1x256xf32> to vector<256x256xf32>
    %22 = arith.addf %19, %21 : vector<256x256xf32>
    %cst_17 = arith.constant 0.000000e+00 : f32
    %23 = vector.broadcast %cst_17 : f32 to vector<256x256xf32>
    %24 = arith.maximumf %22, %23 : vector<256x256xf32>
    %25 = arith.addf %16, %24 : vector<256x256xf32>
    %cst_18 = arith.constant 0.000000e+00 : f32
    %26 = vector.broadcast %cst_18 : f32 to vector<256x256xf32>
    %27 = arith.maximumf %25, %26 : vector<256x256xf32>
    %28 = arith.truncf %27 : vector<256x256xf32> to vector<256x256xbf16>
    %c0_19 = arith.constant 0 : index
    %c0_20 = arith.constant 0 : index
    %29 = vector.load %arg8[%c0_19, %c0_20] : memref<256x128xbf16, #tpu.memory_space<vmem>>, vector<256x128xbf16>
    %cst_21 = arith.constant dense<0.000000e+00> : vector<256x128xf32>
    %30 = tpu.matmul %28, %29, %cst_21 {dimension_numbers = #tpu.dot_dimension_numbers<[1], [0], [0], [1], [0, 0, 1, 1], [], []>} : vector<256x256xbf16>, vector<256x128xbf16>, vector<256x128xf32> -> vector<256x128xf32>
    %c0_22 = arith.constant 0 : index
    %c0_23 = arith.constant 0 : index
    %31 = vector.load %arg9[%c0_22, %c0_23] : memref<1x128xf32, #tpu.memory_space<vmem>>, vector<1x128xf32>
    %32 = vector.broadcast %31 : vector<1x128xf32> to vector<256x128xf32>
    %33 = arith.addf %30, %32 : vector<256x128xf32>
    %34 = arith.truncf %33 : vector<256x128xf32> to vector<256x128xbf16>
    %c0_24 = arith.constant 0 : index
    %c0_25 = arith.constant 0 : index
    %35 = vector.load %arg10[%c0_24, %c0_25] : memref<256x128xbf16, #tpu.memory_space<vmem>>, vector<256x128xbf16>
    tpu.vector_store %arg10[%c0_24, %c0_25], %34 {strides = array<i32>} : memref<256x128xbf16, #tpu.memory_space<vmem>>, vector<256x128xbf16>,
    return
  }
  func.func @transform_0(%arg0: i32) -> (i32, i32) {
    %c0_i32 = arith.constant 0 : i32
    %c0_i32_0 = arith.constant 0 : i32
    return %arg0, %c0_i32 : i32, i32
  }
  func.func @transform_1(%arg0: i32) -> (i32, i32) {
    %c0_i32 = arith.constant 0 : i32
    %c0_i32_0 = arith.constant 0 : i32
    %c0_i32_1 = arith.constant 0 : i32
    return %c0_i32, %c0_i32_0 : i32, i32
  }
  func.func @transform_2(%arg0: i32) -> (i32, i32) {
    %c0_i32 = arith.constant 0 : i32
    %c0_i32_0 = arith.constant 0 : i32
    %c0_i32_1 = arith.constant 0 : i32
    return %c0_i32, %c0_i32_0 : i32, i32
  }
  func.func @transform_3(%arg0: i32) -> (i32, i32) {
    %c0_i32 = arith.constant 0 : i32
    %c0_i32_0 = arith.constant 0 : i32
    %c0_i32_1 = arith.constant 0 : i32
    return %c0_i32, %c0_i32_0 : i32, i32
  }
  func.func @transform_4(%arg0: i32) -> (i32, i32) {
    %c0_i32 = arith.constant 0 : i32
    %c0_i32_0 = arith.constant 0 : i32
    %c0_i32_1 = arith.constant 0 : i32
    return %c0_i32, %c0_i32_0 : i32, i32
  }
  func.func @transform_5(%arg0: i32) -> (i32, i32) {
    %c0_i32 = arith.constant 0 : i32
    %c0_i32_0 = arith.constant 0 : i32
    %c0_i32_1 = arith.constant 0 : i32
    return %c0_i32, %c0_i32_0 : i32, i32
  }
  func.func @transform_6(%arg0: i32) -> (i32, i32) {
    %c0_i32 = arith.constant 0 : i32
    %c0_i32_0 = arith.constant 0 : i32
    %c0_i32_1 = arith.constant 0 : i32
    return %c0_i32, %c0_i32_0 : i32, i32
  }
  func.func @transform_7(%arg0: i32) -> (i32, i32) {
    %c0_i32 = arith.constant 0 : i32
    %c0_i32_0 = arith.constant 0 : i32
    %c0_i32_1 = arith.constant 0 : i32
    return %c0_i32, %c0_i32_0 : i32, i32
  }
  func.func @transform_8(%arg0: i32) -> (i32, i32) {
    %c0_i32 = arith.constant 0 : i32
    %c0_i32_0 = arith.constant 0 : i32
    %c0_i32_1 = arith.constant 0 : i32
    return %c0_i32, %c0_i32_0 : i32, i32
  }
  func.func @transform_9(%arg0: i32) -> (i32, i32) {
    %c0_i32 = arith.constant 0 : i32
    %c0_i32_0 = arith.constant 0 : i32
    return %arg0, %c0_i32 : i32, i32
  }
}

</mosaic_0001>

<llo_original>
// kernel: tpu_custom_call.1
$region0: #{tpu_custom_call.1}
  #allocation0 [shape = 'u32[]', space=smem, size = 0x4, offset = 0x4, fixed_abs, tag = 'smem constant byte address 0x4 - core index']
  #allocation1 [shape = 'u32[144,128]{1,0:T(1,128)}', space=vmem, size = 0x12000, scoped, tag = 'internal scratch']
  %s0 = inlined_call_operand.vmem [shape: f32[500,32], index: 0, kind: input, shape index: {}]
  %s1 = inlined_call_operand.hbm [shape: f32[32,256], index: 1, kind: input, shape index: {}]
  %s2 = inlined_call_operand.vmem [shape: f32[1,256], index: 2, kind: input, shape index: {}]
  %s3 = inlined_call_operand.vmem [shape: bf16[256,256], index: 3, kind: input, shape index: {}]
  %s4 = inlined_call_operand.vmem [shape: f32[1,256], index: 4, kind: input, shape index: {}]
  %s5 = inlined_call_operand.vmem [shape: bf16[256,256], index: 5, kind: input, shape index: {}]
  %s6 = inlined_call_operand.vmem [shape: f32[1,256], index: 6, kind: input, shape index: {}]
  %s7 = inlined_call_operand.vmem [shape: bf16[256,128], index: 7, kind: input, shape index: {}]
  %s8 = inlined_call_operand.vmem [shape: f32[1,128], index: 8, kind: input, shape index: {}]
  %s9 = inlined_call_operand.hbm [shape: bf16[500,128], index: 9, kind: output, shape index: {}]
  %s10 = sld [smem:[#allocation0]]
  $region73: #{tpu_custom_call.1} parent=0
    _
  %s12 = ssub.s32 1, %s10
  %s13 = scalar_select 0, %s12, %s10
  $region1: #{tpu_custom_call.1} parent=0
    #allocation2 [shape = 'u8[32768]{0}', space=vmem, size = 0x8000, scoped, tag = 'input window, operand 1, single buffered']
    #allocation3 [shape = 's32[2]{0}', space=sflag, size = 0x8, scoped, tag = 'scoped memory for tpu_custom_call.1']
    #allocation4 [shape = 's32[2]{0}', space=sflag, size = 0x8, scoped, tag = 'scoped memory for tpu_custom_call.1']
    #allocation5 [shape = 'u8[131072]{0}', space=vmem, size = 0x20000, scoped, tag = 'output window, operand 0']
    %14 = vsyncpa [#allocation3], 0
    %15 = vsyncpa [#allocation4], 0
    %s16 = scalar_lea.sflag [#allocation4], 1
    %17 = vsyncpa %s16, 0
    loop: start=0, step=1, limit=4
    $region2: #{tpu_custom_call.1} parent=1 // loop_pre_header
      _
    $region3: #{tpu_custom_call.1} parent=1 // loop_header
      %s19 = sphi 0, %s23
      %p20 = scmp.ge.s32.totalorder %s19, 4
      %s29 = sphi 0, %s31
      %s32 = sphi 0, %s29
      %s33 = sphi 0, %s32
      %s49 = sphi 0, %s33
      %s53 = sphi 0, %s53
      %s55 = sphi 0, %s53
      %s56 = sphi 0, %s55
      %s70 = sphi 0, %s56
      %s74 = sphi 0, %s74
      %s76 = sphi 0, %s74
      %s77 = sphi 0, %s76
      %s91 = sphi 0, %s77
      %s95 = sphi 0, %s95
      %s97 = sphi 0, %s95
      %s98 = sphi 0, %s97
      %s112 = sphi 0, %s98
      %s116 = sphi 0, %s116
      %s118 = sphi 0, %s116
      %s119 = sphi 0, %s118
      %s133 = sphi 0, %s119
      %s137 = sphi 0, %s137
      %s139 = sphi 0, %s137
      %s140 = sphi 0, %s139
      %s154 = sphi 0, %s140
      %s158 = sphi 0, %s158
      %s160 = sphi 0, %s158
      %s161 = sphi 0, %s160
      %s175 = sphi 0, %s161
      %s179 = sphi 0, %s179
      %s181 = sphi 0, %s179
      %s182 = sphi 0, %s181
      %s196 = sphi 0, %s182
      %s200 = sphi 0, %s200
      %s202 = sphi 0, %s200
      %s203 = sphi 0, %s202
      %s217 = sphi 0, %s203
      %s223 = sphi 0, %s225
      %s226 = sphi 0, %s223
      %s227 = sphi 0, %s226
      %s243 = sphi 0, %s227
    $region4: #{tpu_custom_call.1} parent=1 // loop_header_branch
      %22 = sbr.rel (%p20) target = $region8
    $region5: #{tpu_custom_call.1} parent=1 // loop_body
      %s24 = ssub.s32 %s19, 1
      %s25 = ssub.s32 %s19, 2
      %s26 = sadd.s32 %s19, 1
      %s27 = ssub.s32 %s19, %s26
      %p28 = scmp.eq.s32.totalorder %s27, 0
      %s30 = sadd.s32 %s29, 1
      %s31 = scalar_select %p28, %s29, %s30
      %p34 = pneg %p28
      %p35 = scmp.eq.s32.totalorder %s19, 1
      %p36 = por %p34, %p35
      %p37 = scmp.ne.s32.totalorder %s29, %s32
      %p38 = scmp.eq.s32.totalorder %s19, 0
      %p39 = por %p37, %p38
      %p40 = scmp.ne.s32.totalorder %s29, %s32
      %p41 = scmp.eq.s32.totalorder %s24, 1
      %p42 = por %p40, %p41
      %p43 = scmp.ne.s32.totalorder %s32, %s33
      %p44 = scmp.eq.s32.totalorder %s24, 0
      %p45 = por %p43, %p44
      %p46 = scmp.ne.s32.totalorder %s32, %s33
      %p47 = scmp.eq.s32.totalorder %s25, 1
      %p48 = por %p46, %p47
      %p50 = scmp.ne.s32.totalorder %s33, %s49
      %p51 = scmp.eq.s32.totalorder %s25, 0
      %p52 = por %p50, %p51
      %s54 = sadd.s32 %s53, 1
      %p57 = scmp.eq.s32.totalorder %s19, 1
      %p58 = scmp.ne.s32.totalorder %s53, %s55
      %p59 = scmp.eq.s32.totalorder %s19, 0
      %p60 = por %p58, %p59
      %p61 = scmp.ne.s32.totalorder %s53, %s55
      %p62 = scmp.eq.s32.totalorder %s24, 1
      %p63 = por %p61, %p62
      %p64 = scmp.ne.s32.totalorder %s55, %s56
      %p65 = scmp.eq.s32.totalorder %s24, 0
      %p66 = por %p64, %p65
      %p67 = scmp.ne.s32.totalorder %s55, %s56
      %p68 = scmp.eq.s32.totalorder %s25, 1
      %p69 = por %p67, %p68
      %p71 = scmp.ne.s32.totalorder %s56, %s70
      %p72 = scmp.eq.s32.totalorder %s25, 0
      %p73 = por %p71, %p72
      %s75 = sadd.s32 %s74, 1
      %p78 = scmp.eq.s32.totalorder %s19, 1
      %p79 = scmp.ne.s32.totalorder %s74, %s76
      %p80 = scmp.eq.s32.totalorder %s19, 0
      %p81 = por %p79, %p80
      %p82 = scmp.ne.s32.totalorder %s74, %s76
      %p83 = scmp.eq.s32.totalorder %s24, 1
      %p84 = por %p82, %p83
      %p85 = scmp.ne.s32.totalorder %s76, %s77
      %p86 = scmp.eq.s32.totalorder %s24, 0
      %p87 = por %p85, %p86
      %p88 = scmp.ne.s32.totalorder %s76, %s77
      %p89 = scmp.eq.s32.totalorder %s25, 1
      %p90 = por %p88, %p89
      %p92 = scmp.ne.s32.totalorder %s77, %s91
      %p93 = scmp.eq.s32.totalorder %s25, 0
      %p94 = por %p92, %p93
      %s96 = sadd.s32 %s95, 1
      %p99 = scmp.eq.s32.totalorder %s19, 1
      %p100 = scmp.ne.s32.totalorder %s95, %s97
      %p101 = scmp.eq.s32.totalorder %s19, 0
      %p102 = por %p100, %p101
      %p103 = scmp.ne.s32.totalorder %s95, %s97
      %p104 = scmp.eq.s32.totalorder %s24, 1
      %p105 = por %p103, %p104
      %p106 = scmp.ne.s32.totalorder %s97, %s98
      %p107 = scmp.eq.s32.totalorder %s24, 0
      %p108 = por %p106, %p107
      %p109 = scmp.ne.s32.totalorder %s97, %s98
      %p110 = scmp.eq.s32.totalorder %s25, 1
      %p111 = por %p109, %p110
      %p113 = scmp.ne.s32.totalorder %s98, %s112
      %p114 = scmp.eq.s32.totalorder %s25, 0
      %p115 = por %p113, %p114
      %s117 = sadd.s32 %s116, 1
      %p120 = scmp.eq.s32.totalorder %s19, 1
      %p121 = scmp.ne.s32.totalorder %s116, %s118
      %p122 = scmp.eq.s32.totalorder %s19, 0
      %p123 = por %p121, %p122
      %p124 = scmp.ne.s32.totalorder %s116, %s118
      %p125 = scmp.eq.s32.totalorder %s24, 1
      %p126 = por %p124, %p125
      %p127 = scmp.ne.s32.totalorder %s118, %s119
      %p128 = scmp.eq.s32.totalorder %s24, 0
      %p129 = por %p127, %p128
      %p130 = scmp.ne.s32.totalorder %s118, %s119
      %p131 = scmp.eq.s32.totalorder %s25, 1
      %p132 = por %p130, %p131
      %p134 = scmp.ne.s32.totalorder %s119, %s133
      %p135 = scmp.eq.s32.totalorder %s25, 0
      %p136 = por %p134, %p135
      %s138 = sadd.s32 %s137, 1
      %p141 = scmp.eq.s32.totalorder %s19, 1
      %p142 = scmp.ne.s32.totalorder %s137, %s139
      %p143 = scmp.eq.s32.totalorder %s19, 0
      %p144 = por %p142, %p143
      %p145 = scmp.ne.s32.totalorder %s137, %s139
      %p146 = scmp.eq.s32.totalorder %s24, 1
      %p147 = por %p145, %p146
      %p148 = scmp.ne.s32.totalorder %s139, %s140
      %p149 = scmp.eq.s32.totalorder %s24, 0
      %p150 = por %p148, %p149
      %p151 = scmp.ne.s32.totalorder %s139, %s140
      %p152 = scmp.eq.s32.totalorder %s25, 1
      %p153 = por %p151, %p152
      %p155 = scmp.ne.s32.totalorder %s140, %s154
      %p156 = scmp.eq.s32.totalorder %s25, 0
      %p157 = por %p155, %p156
      %s159 = sadd.s32 %s158, 1
      %p162 = scmp.eq.s32.totalorder %s19, 1
      %p163 = scmp.ne.s32.totalorder %s158, %s160
      %p164 = scmp.eq.s32.totalorder %s19, 0
      %p165 = por %p163, %p164
      %p166 = scmp.ne.s32.totalorder %s158, %s160
      %p167 = scmp.eq.s32.totalorder %s24, 1
      %p168 = por %p166, %p167
      %p169 = scmp.ne.s32.totalorder %s160, %s161
      %p170 = scmp.eq.s32.totalorder %s24, 0
      %p171 = por %p169, %p170
      %p172 = scmp.ne.s32.totalorder %s160, %s161
      %p173 = scmp.eq.s32.totalorder %s25, 1
      %p174 = por %p172, %p173
      %p176 = scmp.ne.s32.totalorder %s161, %s175
      %p177 = scmp.eq.s32.totalorder %s25, 0
      %p178 = por %p176, %p177
      %s180 = sadd.s32 %s179, 1
      %p183 = scmp.eq.s32.totalorder %s19, 1
      %p184 = scmp.ne.s32.totalorder %s179, %s181
      %p185 = scmp.eq.s32.totalorder %s19, 0
      %p186 = por %p184, %p185
      %p187 = scmp.ne.s32.totalorder %s179, %s181
      %p188 = scmp.eq.s32.totalorder %s24, 1
      %p189 = por %p187, %p188
      %p190 = scmp.ne.s32.totalorder %s181, %s182
      %p191 = scmp.eq.s32.totalorder %s24, 0
      %p192 = por %p190, %p191
      %p193 = scmp.ne.s32.totalorder %s181, %s182
      %p194 = scmp.eq.s32.totalorder %s25, 1
      %p195 = por %p193, %p194
      %p197 = scmp.ne.s32.totalorder %s182, %s196
      %p198 = scmp.eq.s32.totalorder %s25, 0
      %p199 = por %p197, %p198
      %s201 = sadd.s32 %s200, 1
      %p204 = scmp.eq.s32.totalorder %s19, 1
      %p205 = scmp.ne.s32.totalorder %s200, %s202
      %p206 = scmp.eq.s32.totalorder %s19, 0
      %p207 = por %p205, %p206
      %p208 = scmp.ne.s32.totalorder %s200, %s202
      %p209 = scmp.eq.s32.totalorder %s24, 1
      %p210 = por %p208, %p209
      %p211 = scmp.ne.s32.totalorder %s202, %s203
      %p212 = scmp.eq.s32.totalorder %s24, 0
      %p213 = por %p211, %p212
      %p214 = scmp.ne.s32.totalorder %s202, %s203
      %p215 = scmp.eq.s32.totalorder %s25, 1
      %p216 = por %p214, %p215
      %p218 = scmp.ne.s32.totalorder %s203, %s217
      %p219 = scmp.eq.s32.totalorder %s25, 0
      %p220 = por %p218, %p219
      %s221 = ssub.s32 %s19, %s26
      %p222 = scmp.eq.s32.totalorder %s221, 0
      %s224 = sadd.s32 %s223, 1
      %s225 = scalar_select %p222, %s223, %s224
      %p228 = pneg %p222
      %p229 = scmp.eq.s32.totalorder %s19, 1
      %p230 = por %p228, %p229
      %p231 = scmp.ne.s32.totalorder %s223, %s226
      %p232 = scmp.eq.s32.totalorder %s19, 0
      %p233 = por %p231, %p232
      %p234 = scmp.ne.s32.totalorder %s223, %s226
      %p235 = scmp.eq.s32.totalorder %s24, 1
      %p236 = por %p234, %p235
      %p237 = scmp.ne.s32.totalorder %s226, %s227
      %p238 = scmp.eq.s32.totalorder %s24, 0
      %p239 = por %p237, %p238
      %p240 = scmp.ne.s32.totalorder %s226, %s227
      %p241 = scmp.eq.s32.totalorder %s25, 1
      %p242 = por %p240, %p241
      %p244 = scmp.ne.s32.totalorder %s227, %s243
      %p245 = scmp.eq.s32.totalorder %s25, 0
      %p246 = por %p244, %p245
      %p247 = scmp.le.s32.totalorder 1, %s19
      %p248 = scmp.lt.s32.totalorder %s19, 3
      %p249 = pnand %p247, %p248
      %p250 = pneg %p249
      // Predicated region
      $region9: #{tpu_custom_call.1} parent=5 // pred_check
        _
      $region10: #{tpu_custom_call.1} parent=5 // pred_check_branch
        %252 = sbr.rel (%p249) target = $region12
      $region11: #{tpu_custom_call.1} parent=5 // pred_region
        %s253 = ssub.s32 %s19, 1
        // Predicated region
        $region13: #{tpu_custom_call.1} parent=11 // pred_check
          %p254 = pneg %p66
        $region14: #{tpu_custom_call.1} parent=11 // pred_check_branch
          %256 = sbr.rel (%p254) target = $region16
        $region15: #{tpu_custom_call.1} parent=11 // pred_region
          %s258 = ssub.s32 1024, 1024
          %259 = vsyncadd [#allocation3], %s258
          %s260 = sshll.u32 [#allocation2], 4
          %s261 = int_to_ptr.vmem [resolvable:$true] %s260
          %266 = dma.hbm_to_vmem [thread:$0]  %s1, 1024, %s261, [#allocation3], 256, 256, 16
        $region16: #{tpu_custom_call.1} parent=11 // pred_fallthru
          _
        // Predicated region
        $region17: #{tpu_custom_call.1} parent=11 // pred_check
          %p267 = pneg %p87
        $region18: #{tpu_custom_call.1} parent=11 // pred_check_branch
          %269 = sbr.rel (%p267) target = $region20
        $region19: #{tpu_custom_call.1} parent=11 // pred_region
          _
        $region20: #{tpu_custom_call.1} parent=11 // pred_fallthru
          _
        // Predicated region
        $region21: #{tpu_custom_call.1} parent=11 // pred_check
          %p270 = pneg %p108
        $region22: #{tpu_custom_call.1} parent=11 // pred_check_branch
          %272 = sbr.rel (%p270) target = $region24
        $region23: #{tpu_custom_call.1} parent=11 // pred_region
          _
        $region24: #{tpu_custom_call.1} parent=11 // pred_fallthru
          _
        // Predicated region
        $region25: #{tpu_custom_call.1} parent=11 // pred_check
          %p273 = pneg %p129
        $region26: #{tpu_custom_call.1} parent=11 // pred_check_branch
          %275 = sbr.rel (%p273) target = $region28
        $region27: #{tpu_custom_call.1} parent=11 // pred_region
          _
        $region28: #{tpu_custom_call.1} parent=11 // pred_fallthru
          _
        // Predicated region
        $region29: #{tpu_custom_call.1} parent=11 // pred_check
          %p276 = pneg %p150
        $region30: #{tpu_custom_call.1} parent=11 // pred_check_branch
          %278 = sbr.rel (%p276) target = $region32
        $region31: #{tpu_custom_call.1} parent=11 // pred_region
          _
        $region32: #{tpu_custom_call.1} parent=11 // pred_fallthru
          _
        // Predicated region
        $region33: #{tpu_custom_call.1} parent=11 // pred_check
          %p279 = pneg %p171
        $region34: #{tpu_custom_call.1} parent=11 // pred_check_branch
          %281 = sbr.rel (%p279) target = $region36
        $region35: #{tpu_custom_call.1} parent=11 // pred_region
          _
        $region36: #{tpu_custom_call.1} parent=11 // pred_fallthru
          _
        // Predicated region
        $region37: #{tpu_custom_call.1} parent=11 // pred_check
          %p282 = pneg %p192
        $region38: #{tpu_custom_call.1} parent=11 // pred_check_branch
          %284 = sbr.rel (%p282) target = $region40
        $region39: #{tpu_custom_call.1} parent=11 // pred_region
          _
        $region40: #{tpu_custom_call.1} parent=11 // pred_fallthru
          _
        // Predicated region
        $region41: #{tpu_custom_call.1} parent=11 // pred_check
          %p285 = pneg %p213
        $region42: #{tpu_custom_call.1} parent=11 // pred_check_branch
          %287 = sbr.rel (%p285) target = $region44
        $region43: #{tpu_custom_call.1} parent=11 // pred_region
          _
        $region44: #{tpu_custom_call.1} parent=11 // pred_fallthru
          _
      $region12: #{tpu_custom_call.1} parent=5 // pred_fallthru
        _
      %p288 = scmp.lt.s32.totalorder %s19, 2
      // Predicated region
      $region45: #{tpu_custom_call.1} parent=5 // pred_check
        %p289 = pneg %p288
      $region46: #{tpu_custom_call.1} parent=5 // pred_check_branch
        %291 = sbr.rel (%p289) target = $region48
      $region47: #{tpu_custom_call.1} parent=5 // pred_region
        // Predicated region
        $region49: #{tpu_custom_call.1} parent=47 // pred_check
          %p292 = pneg %p39
        $region50: #{tpu_custom_call.1} parent=47 // pred_check_branch
          %294 = sbr.rel (%p292) target = $region52
        $region51: #{tpu_custom_call.1} parent=47 // pred_region
          %s295 = smul.u32 32, %s19
          %s296 = ssub.s32 63, %s295
          %p297 = scmp.lt.s32.totalorder %s296, 32
          %s298 = scalar_select %p297, %s296, 32
          %s299 = smul.u32 128, %s298
          %p300 = scmp.lt.s32.totalorder %s295, 62
          %s301 = scalar_select %p300, %s295, 62
          %s302 = smul.addr %s301, 8
          %s303 = scalar_lea.vmem %s0, %s302
          %s304 = smul.u32 32, %s19
          %s305 = ssub.s32 63, %s304
          %p306 = scmp.lt.s32.totalorder %s305, 32
          %s307 = scalar_select %p306, %s305, 32
          %s308 = smul.u32 128, %s307
        $region52: #{tpu_custom_call.1} parent=47 // pred_fallthru
          _
      $region48: #{tpu_custom_call.1} parent=5 // pred_fallthru
        _
      %p309 = scmp.le.s32.totalorder 1, %s19
      %p310 = scmp.lt.s32.totalorder %s19, 3
      %p311 = pnand %p309, %p310
      %p312 = pneg %p311
      // Predicated region
      $region53: #{tpu_custom_call.1} parent=5 // pred_check
        _
      $region54: #{tpu_custom_call.1} parent=5 // pred_check_branch
        %314 = sbr.rel (%p311) target = $region56
      $region55: #{tpu_custom_call.1} parent=5 // pred_region
        %s315 = ssub.s32 %s19, 1
        // Predicated region
        $region57: #{tpu_custom_call.1} parent=55 // pred_check
          %p316 = pneg %p66
        $region58: #{tpu_custom_call.1} parent=55 // pred_check_branch
          %318 = sbr.rel (%p316) target = $region60
        $region59: #{tpu_custom_call.1} parent=55 // pred_region
          %319 = dma.done [#allocation3], 1024
        $region60: #{tpu_custom_call.1} parent=55 // pred_fallthru
          _
        %s320 = smul.u32 32, %s24
        %s321 = ssub.s32 63, %s320
        %p322 = scmp.lt.s32.totalorder %s321, 32
        %s323 = scalar_select %p322, %s321, 32
        %s324 = smul.u32 128, %s323
        %p325 = scmp.lt.s32.totalorder %s320, 62
        %s326 = scalar_select %p325, %s320, 62
        %s327 = smul.addr %s326, 8
        %s328 = scalar_lea.vmem %s0, %s327
        %p329 = pneg %p45
        %p330 = pneg %p42
        %p331 = pneg %p66
        %p332 = pneg %p63
        %p333 = pneg %p87
        %p334 = pneg %p84
        %p335 = pneg %p108
        %p336 = pneg %p105
        %p337 = pneg %p129
        %p338 = pneg %p126
        %p339 = pneg %p150
        %p340 = pneg %p147
        %p341 = pneg %p171
        %p342 = pneg %p168
        %p343 = pneg %p192
        %p344 = pneg %p189
        %p345 = pneg %p213
        %p346 = pneg %p210
        %p347 = pneg %p239
        %p348 = pneg %p236
        %s349 = sand.u32 %s226, 1
        %s350 = scalar_lea.sflag [#allocation4], %s349
        %s351 = sand.u32 %s226, 1
        %s352 = smul.addr %s351, 128
        %s353 = scalar_lea.vmem [#allocation5], %s352
        %s354 = smul.u32 32, %s24
        %s355 = ssub.s32 63, %s354
        %p356 = scmp.lt.s32.totalorder %s355, 32
        %s357 = scalar_select %p356, %s355, 32
        %s358 = smul.u32 128, %s357
        %p359 = scmp.lt.s32.totalorder %s354, 62
        %s360 = scalar_select %p359, %s354, 62
        %s361 = smul.addr %s360, 8
        %s362 = scalar_lea.vmem %s0, %s361
        %s363 = smul.u32 32, %s24
        %s364 = ssub.s32 63, %s363
        %p365 = scmp.lt.s32.totalorder %s364, 32
        %s366 = scalar_select %p365, %s364, 32
        %s367 = smul.u32 128, %s366
        %s368 = smul.u32 32, %s24
        %s369 = ssub.s32 63, %s368
        %p370 = scmp.lt.s32.totalorder %s369, 32
        %s371 = scalar_select %p370, %s369, 32
        %s372 = smul.u32 64, %s371
        %v374 = vld [vmem:[%s362] sm:$0xff]
        %v375 = vld [vmem:[%s362 + $0x8] sm:$0xff]
        %v376 = vld [vmem:[%s362 + $0x10] sm:$0xff]
        %v377 = vld [vmem:[%s362 + $0x18] sm:$0xff]
        %v378 = vld [vmem:[%s362 + $0x20] sm:$0xff]
        %v379 = vld [vmem:[%s362 + $0x28] sm:$0xff]
        %v380 = vld [vmem:[%s362 + $0x30] sm:$0xff]
        %v381 = vld [vmem:[%s362 + $0x38] sm:$0xff]
        %v382 = vld [vmem:[%s362 + $0x40] sm:$0xff]
        %v383 = vld [vmem:[%s362 + $0x48] sm:$0xff]
        %v384 = vld [vmem:[%s362 + $0x50] sm:$0xff]
        %v385 = vld [vmem:[%s362 + $0x58] sm:$0xff]
        %v386 = vld [vmem:[%s362 + $0x60] sm:$0xff]
        %v387 = vld [vmem:[%s362 + $0x68] sm:$0xff]
        %v388 = vld [vmem:[%s362 + $0x70] sm:$0xff]
        %v389 = vld [vmem:[%s362 + $0x78] sm:$0xff]
        %v390 = vld [vmem:[%s362 + $0x80] sm:$0xff]
        %v391 = vld [vmem:[%s362 + $0x88] sm:$0xff]
        %v392 = vld [vmem:[%s362 + $0x90] sm:$0xff]
        %v393 = vld [vmem:[%s362 + $0x98] sm:$0xff]
        %v394 = vld [vmem:[%s362 + $0xa0] sm:$0xff]
        %v395 = vld [vmem:[%s362 + $0xa8] sm:$0xff]
        %v396 = vld [vmem:[%s362 + $0xb0] sm:$0xff]
        %v397 = vld [vmem:[%s362 + $0xb8] sm:$0xff]
        %v398 = vld [vmem:[%s362 + $0xc0] sm:$0xff]
        %v399 = vld [vmem:[%s362 + $0xc8] sm:$0xff]
        %v400 = vld [vmem:[%s362 + $0xd0] sm:$0xff]
        %v401 = vld [vmem:[%s362 + $0xd8] sm:$0xff]
        %v402 = vld [vmem:[%s362 + $0xe0] sm:$0xff]
        %v403 = vld [vmem:[%s362 + $0xe8] sm:$0xff]
        %v404 = vld [vmem:[%s362 + $0xf0] sm:$0xff]
        %v405 = vld [vmem:[%s362 + $0xf8] sm:$0xff]
        %v406 = vld [vmem:[#allocation2] sm:$0xff]
        %v407 = vld [vmem:[#allocation2 + $0x8] sm:$0xff]
        %v408 = vld [vmem:[#allocation2 + $0x10] sm:$0xff]
        %v409 = vld [vmem:[#allocation2 + $0x18] sm:$0xff]
        %v410 = vld [vmem:[#allocation2 + $0x20] sm:$0xff]
        %v411 = vld [vmem:[#allocation2 + $0x28] sm:$0xff]
        %v412 = vld [vmem:[#allocation2 + $0x30] sm:$0xff]
        %v413 = vld [vmem:[#allocation2 + $0x38] sm:$0xff]
        %v414 = vld [vmem:[%s2] sm:$0x3]
        %v416 = vlaneseq
        %v417 = vshrl.u32 %v416, 7
        %v418 = vsub.s32 0, %v417
        %v419 = vrot.slane %v414, %v418
        %v420 = vlaneseq
        %v421 = vshrl.u32 %v420, 7
        %v422 = vsub.s32 1, %v421
        %v423 = vrot.slane %v414, %v422
        %vm426 = vcmask 261120
        %v428 = vsel %vm426, %v374, 0
        %v431 = vsel %vm426, %v375, 0
        %v434 = vsel %vm426, %v376, 0
        %v437 = vsel %vm426, %v377, 0
        %v440 = vsel %vm426, %v378, 0
        %v443 = vsel %vm426, %v379, 0
        %v446 = vsel %vm426, %v380, 0
        %v449 = vsel %vm426, %v381, 0
        %v452 = vsel %vm426, %v382, 0
        %v455 = vsel %vm426, %v383, 0
        %v458 = vsel %vm426, %v384, 0
        %v461 = vsel %vm426, %v385, 0
        %v464 = vsel %vm426, %v386, 0
        %v467 = vsel %vm426, %v387, 0
        %v470 = vsel %vm426, %v388, 0
        %v473 = vsel %vm426, %v389, 0
        %v476 = vsel %vm426, %v390, 0
        %v479 = vsel %vm426, %v391, 0
        %v482 = vsel %vm426, %v392, 0
        %v485 = vsel %vm426, %v393, 0
        %v488 = vsel %vm426, %v394, 0
        %v491 = vsel %vm426, %v395, 0
        %v494 = vsel %vm426, %v396, 0
        %v497 = vsel %vm426, %v397, 0
        %v500 = vsel %vm426, %v398, 0
        %v503 = vsel %vm426, %v399, 0
        %v506 = vsel %vm426, %v400, 0
        %v509 = vsel %vm426, %v401, 0
        %v512 = vsel %vm426, %v402, 0
        %v515 = vsel %vm426, %v403, 0
        %v518 = vsel %vm426, %v404, 0
        %v521 = vsel %vm426, %v405, 0
        %523 = vmatprep.subr.mxu0 %v407
        %524 = vmatpush1.msra.mxu0 %v406
        %525 = vmatprep.subr.mxu0 %v409
        %526 = vmatpush1.msra.mxu0 %v408
        %527 = vmatprep.subr.mxu0 %v411
        %528 = vmatpush1.msra.mxu0 %v410
        %529 = vmatprep.subr.mxu0 %v413
        %530 = vmatpush1.msra.mxu0 %v412
        %531 = vmatprep.subr.mxu0 0.0
        %532 = vmatpush1.msra.mxu0 0.0
        %533 = vmatprep.subr.mxu0 0.0
        %534 = vmatpush1.msra.mxu0 0.0
        %535 = vmatprep.subr.mxu0 0.0
        %536 = vmatpush1.msra.mxu0 0.0
        %537 = vmatprep.subr.mxu0 0.0
        %538 = vmatpush1.msra.mxu0 0.0
        %539 = vmatprep.subr.mxu0 0.0
        %540 = vmatpush1.msra.mxu0 0.0
        %541 = vmatprep.subr.mxu0 0.0
        %542 = vmatpush1.msra.mxu0 0.0
        %543 = vmatprep.subr.mxu0 0.0
        %544 = vmatpush1.msra.mxu0 0.0
        %545 = vmatprep.subr.mxu0 0.0
        %546 = vmatpush1.msra.mxu0 0.0
        %547 = vmatprep.subr.mxu0 0.0
        %548 = vmatpush1.msra.mxu0 0.0
        %549 = vmatprep.subr.mxu0 0.0
        %550 = vmatpush1.msra.mxu0 0.0
        %551 = vmatprep.subr.mxu0 0.0
        %552 = vmatpush1.msra.mxu0 0.0
        %553 = vmatprep.subr.mxu0 0.0
        %554 = vmatpush1.msra.mxu0 0.0
        %555 = vmatprep.subr.mxu0 0.0
        %556 = vmatpush1.msra.mxu0 0.0
        %557 = vmatprep.subr.mxu0 0.0
        %558 = vmatpush1.msra.mxu0 0.0
        %559 = vmatprep.subr.mxu0 0.0
        %560 = vmatpush1.msra.mxu0 0.0
        %561 = vmatprep.subr.mxu0 0.0
        %562 = vmatpush1.msra.mxu0 0.0
        %563 = vmatprep.subr.mxu0 0.0
        %564 = vmatpush1.msra.mxu0 0.0
        %565 = vmatprep.subr.mxu0 0.0
        %566 = vmatpush1.msra.mxu0 0.0
        %567 = vmatprep.subr.mxu0 0.0
        %568 = vmatpush1.msra.mxu0 0.0
        %569 = vmatprep.subr.mxu0 0.0
        %570 = vmatpush1.msra.mxu0 0.0
        %571 = vmatprep.subr.mxu0 0.0
        %572 = vmatpush1.msra.mxu0 0.0
        %573 = vmatprep.subr.mxu0 0.0
        %574 = vmatpush1.msra.mxu0 0.0
        %575 = vmatprep.subr.mxu0 0.0
        %576 = vmatpush1.msra.mxu0 0.0
        %577 = vmatprep.subr.mxu0 0.0
        %578 = vmatpush1.msra.mxu0 0.0
        %579 = vmatprep.subr.mxu0 0.0
        %580 = vmatpush1.msra.mxu0 0.0
        %581 = vmatprep.subr.mxu0 0.0
        %582 = vmatpush1.msra.mxu0 0.0
        %583 = vmatprep.subr.mxu0 0.0
        %584 = vmatpush1.msra.mxu0 0.0
        %585 = vmatprep.subr.mxu0 0.0
        %586 = vmatpush1.msra.mxu0 0.0
        %587 = vmatprep.mubr.f32.mxu0 0.0
        %588 = vmatmul.mubr.f32.gmra.mrb[0].mxu0 %v428
        %v589 = vpop.f32.mrb[0].mxu0
        %v590 = vadd.f32 %v419, %v589
        %v591 = vpop.f32.mrb[0].mxu0
        %v592 = vadd.f32 %v423, %v591
        %593 = vmatprep.mubr.f32.mxu0 0.0
        %594 = vmatmul.mubr.f32.gmra.mrb[0].mxu0 %v431
        %v595 = vpop.f32.mrb[0].mxu0
        %v596 = vadd.f32 %v419, %v595
        %v597 = vpop.f32.mrb[0].mxu0
        %v598 = vadd.f32 %v423, %v597
        %599 = vmatprep.mubr.f32.mxu0 0.0
        %600 = vmatmul.mubr.f32.gmra.mrb[0].mxu0 %v434
        %v601 = vpop.f32.mrb[0].mxu0
        %v602 = vadd.f32 %v419, %v601
        %v603 = vpop.f32.mrb[0].mxu0
        %v604 = vadd.f32 %v423, %v603
        %605 = vmatprep.mubr.f32.mxu0 0.0
        %606 = vmatmul.mubr.f32.gmra.mrb[0].mxu0 %v437
        %v607 = vpop.f32.mrb[0].mxu0
        %v608 = vadd.f32 %v419, %v607
        %v609 = vpop.f32.mrb[0].mxu0
        %v610 = vadd.f32 %v423, %v609
        %611 = vmatprep.mubr.f32.mxu0 0.0
        %612 = vmatmul.mubr.f32.gmra.mrb[0].mxu0 %v440
        %v613 = vpop.f32.mrb[0].mxu0
        %v614 = vadd.f32 %v419, %v613
        %v615 = vpop.f32.mrb[0].mxu0
        %v616 = vadd.f32 %v423, %v615
        %617 = vmatprep.mubr.f32.mxu0 0.0
        %618 = vmatmul.mubr.f32.gmra.mrb[0].mxu0 %v443
        %v619 = vpop.f32.mrb[0].mxu0
        %v620 = vadd.f32 %v419, %v619
        %v621 = vpop.f32.mrb[0].mxu0
        %v622 = vadd.f32 %v423, %v621
        %623 = vmatprep.mubr.f32.mxu0 0.0
        %624 = vmatmul.mubr.f32.gmra.mrb[0].mxu0 %v446
        %v625 = vpop.f32.mrb[0].mxu0
        %v626 = vadd.f32 %v419, %v625
        %v627 = vpop.f32.mrb[0].mxu0
        %v628 = vadd.f32 %v423, %v627
        %629 = vmatprep.mubr.f32.mxu0 0.0
        %630 = vmatmul.mubr.f32.gmra.mrb[0].mxu0 %v449
        %v631 = vpop.f32.mrb[0].mxu0
        %v632 = vadd.f32 %v419, %v631
        %v633 = vpop.f32.mrb[0].mxu0
        %v634 = vadd.f32 %v423, %v633
        %635 = vmatprep.mubr.f32.mxu0 0.0
        %636 = vmatmul.mubr.f32.gmra.mrb[0].mxu0 %v452
        %v637 = vpop.f32.mrb[0].mxu0
        %v638 = vadd.f32 %v419, %v637
        %v639 = vpop.f32.mrb[0].mxu0
        %v640 = vadd.f32 %v423, %v639
        %641 = vmatprep.mubr.f32.mxu0 0.0
        %642 = vmatmul.mubr.f32.gmra.mrb[0].mxu0 %v455
        %v643 = vpop.f32.mrb[0].mxu0
        %v644 = vadd.f32 %v419, %v643
        %v645 = vpop.f32.mrb[0].mxu0
        %v646 = vadd.f32 %v423, %v645
        %647 = vmatprep.mubr.f32.mxu0 0.0
        %648 = vmatmul.mubr.f32.gmra.mrb[0].mxu0 %v458
        %v649 = vpop.f32.mrb[0].mxu0
        %v650 = vadd.f32 %v419, %v649
        %v651 = vpop.f32.mrb[0].mxu0
        %v652 = vadd.f32 %v423, %v651
        %653 = vmatprep.mubr.f32.mxu0 0.0
        %654 = vmatmul.mubr.f32.gmra.mrb[0].mxu0 %v461
        %v655 = vpop.f32.mrb[0].mxu0
        %v656 = vadd.f32 %v419, %v655
        %v657 = vpop.f32.mrb[0].mxu0
        %v658 = vadd.f32 %v423, %v657
        %659 = vmatprep.mubr.f32.mxu0 0.0
        %660 = vmatmul.mubr.f32.gmra.mrb[0].mxu0 %v464
        %v661 = vpop.f32.mrb[0].mxu0
        %v662 = vadd.f32 %v419, %v661
        %v663 = vpop.f32.mrb[0].mxu0
        %v664 = vadd.f32 %v423, %v663
        %665 = vmatprep.mubr.f32.mxu0 0.0
        %666 = vmatmul.mubr.f32.gmra.mrb[0].mxu0 %v467
        %v667 = vpop.f32.mrb[0].mxu0
        %v668 = vadd.f32 %v419, %v667
        %v669 = vpop.f32.mrb[0].mxu0
        %v670 = vadd.f32 %v423, %v669
        %671 = vmatprep.mubr.f32.mxu0 0.0
        %672 = vmatmul.mubr.f32.gmra.mrb[0].mxu0 %v470
        %v673 = vpop.f32.mrb[0].mxu0
        %v674 = vadd.f32 %v419, %v673
        %v675 = vpop.f32.mrb[0].mxu0
        %v676 = vadd.f32 %v423, %v675
        %677 = vmatprep.mubr.f32.mxu0 0.0
        %678 = vmatmul.mubr.f32.gmra.mrb[0].mxu0 %v473
        %v679 = vpop.f32.mrb[0].mxu0
        %v680 = vadd.f32 %v419, %v679
        %v681 = vpop.f32.mrb[0].mxu0
        %v682 = vadd.f32 %v423, %v681
        %683 = vmatprep.mubr.f32.mxu0 0.0
        %684 = vmatmul.mubr.f32.gmra.mrb[0].mxu0 %v476
        %v685 = vpop.f32.mrb[0].mxu0
        %v686 = vadd.f32 %v419, %v685
        %v687 = vpop.f32.mrb[0].mxu0
        %v688 = vadd.f32 %v423, %v687
        %689 = vmatprep.mubr.f32.mxu0 0.0
        %690 = vmatmul.mubr.f32.gmra.mrb[0].mxu0 %v479
        %v691 = vpop.f32.mrb[0].mxu0
        %v692 = vadd.f32 %v419, %v691
        %v693 = vpop.f32.mrb[0].mxu0
        %v694 = vadd.f32 %v423, %v693
        %695 = vmatprep.mubr.f32.mxu0 0.0
        %696 = vmatmul.mubr.f32.gmra.mrb[0].mxu0 %v482
        %v697 = vpop.f32.mrb[0].mxu0
        %v698 = vadd.f32 %v419, %v697
        %v699 = vpop.f32.mrb[0].mxu0
        %v700 = vadd.f32 %v423, %v699
        %701 = vmatprep.mubr.f32.mxu0 0.0
        %702 = vmatmul.mubr.f32.gmra.mrb[0].mxu0 %v485
        %v703 = vpop.f32.mrb[0].mxu0
        %v704 = vadd.f32 %v419, %v703
        %v705 = vpop.f32.mrb[0].mxu0
        %v706 = vadd.f32 %v423, %v705
        %707 = vmatprep.mubr.f32.mxu0 0.0
        %708 = vmatmul.mubr.f32.gmra.mrb[0].mxu0 %v488
        %v709 = vpop.f32.mrb[0].mxu0
        %v710 = vadd.f32 %v419, %v709
        %v711 = vpop.f32.mrb[0].mxu0
        %v712 = vadd.f32 %v423, %v711
        %713 = vmatprep.mubr.f32.mxu0 0.0
        %714 = vmatmul.mubr.f32.gmra.mrb[0].mxu0 %v491
        %v715 = vpop.f32.mrb[0].mxu0
        %v716 = vadd.f32 %v419, %v715
        %v717 = vpop.f32.mrb[0].mxu0
        %v718 = vadd.f32 %v423, %v717
        %719 = vmatprep.mubr.f32.mxu0 0.0
        %720 = vmatmul.mubr.f32.gmra.mrb[0].mxu0 %v494
        %v721 = vpop.f32.mrb[0].mxu0
        %v722 = vadd.f32 %v419, %v721
        %v723 = vpop.f32.mrb[0].mxu0
        %v724 = vadd.f32 %v423, %v723
        %725 = vmatprep.mubr.f32.mxu0 0.0
        %726 = vmatmul.mubr.f32.gmra.mrb[0].mxu0 %v497
        %v727 = vpop.f32.mrb[0].mxu0
        %v728 = vadd.f32 %v419, %v727
        %v729 = vpop.f32.mrb[0].mxu0
        %v730 = vadd.f32 %v423, %v729
        %731 = vmatprep.mubr.f32.mxu0 0.0
        %732 = vmatmul.mubr.f32.gmra.mrb[0].mxu0 %v500
        %v733 = vpop.f32.mrb[0].mxu0
        %v734 = vadd.f32 %v419, %v733
        %v735 = vpop.f32.mrb[0].mxu0
        %v736 = vadd.f32 %v423, %v735
        %737 = vmatprep.mubr.f32.mxu0 0.0
        %738 = vmatmul.mubr.f32.gmra.mrb[0].mxu0 %v503
        %v739 = vpop.f32.mrb[0].mxu0
        %v740 = vadd.f32 %v419, %v739
        %v741 = vpop.f32.mrb[0].mxu0
        %v742 = vadd.f32 %v423, %v741
        %743 = vmatprep.mubr.f32.mxu0 0.0
        %744 = vmatmul.mubr.f32.gmra.mrb[0].mxu0 %v506
        %v745 = vpop.f32.mrb[0].mxu0
        %v746 = vadd.f32 %v419, %v745
        %v747 = vpop.f32.mrb[0].mxu0
        %v748 = vadd.f32 %v423, %v747
        %749 = vmatprep.mubr.f32.mxu0 0.0
        %750 = vmatmul.mubr.f32.gmra.mrb[0].mxu0 %v509
        %v751 = vpop.f32.mrb[0].mxu0
        %v752 = vadd.f32 %v419, %v751
        %v753 = vpop.f32.mrb[0].mxu0
        %v754 = vadd.f32 %v423, %v753
        %755 = vmatprep.mubr.f32.mxu0 0.0
        %756 = vmatmul.mubr.f32.gmra.mrb[0].mxu0 %v512
        %v757 = vpop.f32.mrb[0].mxu0
        %v758 = vadd.f32 %v419, %v757
        %v759 = vpop.f32.mrb[0].mxu0
        %v760 = vadd.f32 %v423, %v759
        %761 = vmatprep.mubr.f32.mxu0 0.0
        %762 = vmatmul.mubr.f32.gmra.mrb[0].mxu0 %v515
        %v763 = vpop.f32.mrb[0].mxu0
        %v764 = vadd.f32 %v419, %v763
        %v765 = vpop.f32.mrb[0].mxu0
        %v766 = vadd.f32 %v423, %v765
        %767 = vmatprep.mubr.f32.mxu0 0.0
        %768 = vmatmul.mubr.f32.gmra.mrb[0].mxu0 %v518
        %v769 = vpop.f32.mrb[0].mxu0
        %v770 = vadd.f32 %v419, %v769
        %v771 = vpop.f32.mrb[0].mxu0
        %v772 = vadd.f32 %v423, %v771
        %773 = vmatprep.mubr.f32.mxu0 0.0
        %774 = vmatmul.mubr.f32.gmra.mrb[0].mxu0 %v521
        %v775 = vpop.f32.mrb[0].mxu0
        %v776 = vadd.f32 %v419, %v775
        %v777 = vpop.f32.mrb[0].mxu0
        %v778 = vadd.f32 %v423, %v777
        %779 = vdwg.mxu0
        %v780 = vmax.f32 %v590, 0.0
        %v781 = vmax.f32 %v592, 0.0
        %v782 = vmax.f32 %v596, 0.0
        %v783 = vmax.f32 %v598, 0.0
        %v784 = vmax.f32 %v602, 0.0
        %v785 = vmax.f32 %v604, 0.0
        %v786 = vmax.f32 %v608, 0.0
        %v787 = vmax.f32 %v610, 0.0
        %v788 = vmax.f32 %v614, 0.0
        %v789 = vmax.f32 %v616, 0.0
        %v790 = vmax.f32 %v620, 0.0
        %v791 = vmax.f32 %v622, 0.0
        %v792 = vmax.f32 %v626, 0.0
        %v793 = vmax.f32 %v628, 0.0
        %v794 = vmax.f32 %v632, 0.0
        %v795 = vmax.f32 %v634, 0.0
        %v796 = vmax.f32 %v638, 0.0
        %v797 = vmax.f32 %v640, 0.0
        %v798 = vmax.f32 %v644, 0.0
        %v799 = vmax.f32 %v646, 0.0
        %v800 = vmax.f32 %v650, 0.0
        %v801 = vmax.f32 %v652, 0.0
        %v802 = vmax.f32 %v656, 0.0
        %v803 = vmax.f32 %v658, 0.0
        %v804 = vmax.f32 %v662, 0.0
        %v805 = vmax.f32 %v664, 0.0
        %v806 = vmax.f32 %v668, 0.0
        %v807 = vmax.f32 %v670, 0.0
        %v808 = vmax.f32 %v674, 0.0
        %v809 = vmax.f32 %v676, 0.0
        %v810 = vmax.f32 %v680, 0.0
        %v811 = vmax.f32 %v682, 0.0
        %v812 = vmax.f32 %v686, 0.0
        %v813 = vmax.f32 %v688, 0.0
        %v814 = vmax.f32 %v692, 0.0
        %v815 = vmax.f32 %v694, 0.0
        %v816 = vmax.f32 %v698, 0.0
        %v817 = vmax.f32 %v700, 0.0
        %v818 = vmax.f32 %v704, 0.0
        %v819 = vmax.f32 %v706, 0.0
        %v820 = vmax.f32 %v710, 0.0
        %v821 = vmax.f32 %v712, 0.0
        %v822 = vmax.f32 %v716, 0.0
        %v823 = vmax.f32 %v718, 0.0
        %v824 = vmax.f32 %v722, 0.0
        %v825 = vmax.f32 %v724, 0.0
        %v826 = vmax.f32 %v728, 0.0
        %v827 = vmax.f32 %v730, 0.0
        %v828 = vmax.f32 %v734, 0.0
        %v829 = vmax.f32 %v736, 0.0
        %v830 = vmax.f32 %v740, 0.0
        %v831 = vmax.f32 %v742, 0.0
        %v832 = vmax.f32 %v746, 0.0
        %v833 = vmax.f32 %v748, 0.0
        %v834 = vmax.f32 %v752, 0.0
        %v835 = vmax.f32 %v754, 0.0
        %v836 = vmax.f32 %v758, 0.0
        %v837 = vmax.f32 %v760, 0.0
        %v838 = vmax.f32 %v764, 0.0
        %v839 = vmax.f32 %v766, 0.0
        %v840 = vmax.f32 %v770, 0.0
        %v841 = vmax.f32 %v772, 0.0
        %v842 = vmax.f32 %v776, 0.0
        %v843 = vmax.f32 %v778, 0.0
        %v844 = vpack.c.bf16 %v782, %v780
        %v845 = vpack.c.bf16 %v783, %v781
        %v846 = vpack.c.bf16 %v786, %v784
        %v847 = vpack.c.bf16 %v787, %v785
        %v848 = vpack.c.bf16 %v790, %v788
        %v849 = vpack.c.bf16 %v791, %v789
        %v850 = vpack.c.bf16 %v794, %v792
        %v851 = vpack.c.bf16 %v795, %v793
        %v852 = vpack.c.bf16 %v798, %v796
        %v853 = vpack.c.bf16 %v799, %v797
        %v854 = vpack.c.bf16 %v802, %v800
        %v855 = vpack.c.bf16 %v803, %v801
        %v856 = vpack.c.bf16 %v806, %v804
        %v857 = vpack.c.bf16 %v807, %v805
        %v858 = vpack.c.bf16 %v810, %v808
        %v859 = vpack.c.bf16 %v811, %v809
        %v860 = vpack.c.bf16 %v814, %v812
        %v861 = vpack.c.bf16 %v815, %v813
        %v862 = vpack.c.bf16 %v818, %v816
        %v863 = vpack.c.bf16 %v819, %v817
        %v864 = vpack.c.bf16 %v822, %v820
        %v865 = vpack.c.bf16 %v823, %v821
        %v866 = vpack.c.bf16 %v826, %v824
        %v867 = vpack.c.bf16 %v827, %v825
        %v868 = vpack.c.bf16 %v830, %v828
        %v869 = vpack.c.bf16 %v831, %v829
        %v870 = vpack.c.bf16 %v834, %v832
        %v871 = vpack.c.bf16 %v835, %v833
        %v872 = vpack.c.bf16 %v838, %v836
        %v873 = vpack.c.bf16 %v839, %v837
        %v874 = vpack.c.bf16 %v842, %v840
        %v875 = vpack.c.bf16 %v843, %v841
        %v876 = vld [vmem:[%s3] sm:$0xff]
        %v877 = vld [vmem:[%s3 + $0x8] sm:$0xff]
        %v878 = vld [vmem:[%s3 + $0x10] sm:$0xff]
        %v879 = vld [vmem:[%s3 + $0x18] sm:$0xff]
        %v880 = vld [vmem:[%s3 + $0x20] sm:$0xff]
        %v881 = vld [vmem:[%s3 + $0x28] sm:$0xff]
        %v882 = vld [vmem:[%s3 + $0x30] sm:$0xff]
        %v883 = vld [vmem:[%s3 + $0x38] sm:$0xff]
        %v884 = vld [vmem:[%s3 + $0x40] sm:$0xff]
        %v885 = vld [vmem:[%s3 + $0x48] sm:$0xff]
        %v886 = vld [vmem:[%s3 + $0x50] sm:$0xff]
        %v887 = vld [vmem:[%s3 + $0x58] sm:$0xff]
        %v888 = vld [vmem:[%s3 + $0x60] sm:$0xff]
        %v889 = vld [vmem:[%s3 + $0x68] sm:$0xff]
        %v890 = vld [vmem:[%s3 + $0x70] sm:$0xff]
        %v891 = vld [vmem:[%s3 + $0x78] sm:$0xff]
        %v892 = vld [vmem:[%s3 + $0x80] sm:$0xff]
        %v893 = vld [vmem:[%s3 + $0x88] sm:$0xff]
        %v894 = vld [vmem:[%s3 + $0x90] sm:$0xff]
        %v895 = vld [vmem:[%s3 + $0x98] sm:$0xff]
        %v896 = vld [vmem:[%s3 + $0xa0] sm:$0xff]
        %v897 = vld [vmem:[%s3 + $0xa8] sm:$0xff]
        %v898 = vld [vmem:[%s3 + $0xb0] sm:$0xff]
        %v899 = vld [vmem:[%s3 + $0xb8] sm:$0xff]
        %v900 = vld [vmem:[%s3 + $0xc0] sm:$0xff]
        %v901 = vld [vmem:[%s3 + $0xc8] sm:$0xff]
        %v902 = vld [vmem:[%s3 + $0xd0] sm:$0xff]
        %v903 = vld [vmem:[%s3 + $0xd8] sm:$0xff]
        %v904 = vld [vmem:[%s3 + $0xe0] sm:$0xff]
        %v905 = vld [vmem:[%s3 + $0xe8] sm:$0xff]
        %v906 = vld [vmem:[%s3 + $0xf0] sm:$0xff]
        %v907 = vld [vmem:[%s3 + $0xf8] sm:$0xff]
        %v908 = vld [vmem:[%s4] sm:$0x3]
        %v910 = vlaneseq
        %v911 = vshrl.u32 %v910, 7
        %v912 = vsub.s32 0, %v911
        %v913 = vrot.slane %v908, %v912
        %v914 = vlaneseq
        %v915 = vshrl.u32 %v914, 7
        %v916 = vsub.s32 1, %v915
        %v917 = vrot.slane %v908, %v916
        %v952 = vunpack.c.l.b16 %v876
        %v953 = vunpack.c.h.b16 %v876
        %v954 = vunpack.c.l.b16 %v877
        %v955 = vunpack.c.h.b16 %v877
        %v956 = vunpack.c.l.b16 %v878
        %v957 = vunpack.c.h.b16 %v878
        %v958 = vunpack.c.l.b16 %v879
        %v959 = vunpack.c.h.b16 %v879
        %v960 = vunpack.c.l.b16 %v880
        %v961 = vunpack.c.h.b16 %v880
        %v962 = vunpack.c.l.b16 %v881
        %v963 = vunpack.c.h.b16 %v881
        %v964 = vunpack.c.l.b16 %v882
        %v965 = vunpack.c.h.b16 %v882
        %v966 = vunpack.c.l.b16 %v883
        %v967 = vunpack.c.h.b16 %v883
        %v968 = vunpack.c.l.b16 %v884
        %v969 = vunpack.c.h.b16 %v884
        %v970 = vunpack.c.l.b16 %v885
        %v971 = vunpack.c.h.b16 %v885
        %v972 = vunpack.c.l.b16 %v886
        %v973 = vunpack.c.h.b16 %v886
        %v974 = vunpack.c.l.b16 %v887
        %v975 = vunpack.c.h.b16 %v887
        %v976 = vunpack.c.l.b16 %v888
        %v977 = vunpack.c.h.b16 %v888
        %v978 = vunpack.c.l.b16 %v889
        %v979 = vunpack.c.h.b16 %v889
        %v980 = vunpack.c.l.b16 %v890
        %v981 = vunpack.c.h.b16 %v890
        %v982 = vunpack.c.l.b16 %v891
        %v983 = vunpack.c.h.b16 %v891
        %v984 = vunpack.c.l.b16 %v892
        %v985 = vunpack.c.h.b16 %v892
        %v986 = vunpack.c.l.b16 %v893
        %v987 = vunpack.c.h.b16 %v893
        %v988 = vunpack.c.l.b16 %v894
        %v989 = vunpack.c.h.b16 %v894
        %v990 = vunpack.c.l.b16 %v895
        %v991 = vunpack.c.h.b16 %v895
        %v992 = vunpack.c.l.b16 %v896
        %v993 = vunpack.c.h.b16 %v896
        %v994 = vunpack.c.l.b16 %v897
        %v995 = vunpack.c.h.b16 %v897
        %v996 = vunpack.c.l.b16 %v898
        %v997 = vunpack.c.h.b16 %v898
        %v998 = vunpack.c.l.b16 %v899
        %v999 = vunpack.c.h.b16 %v899
        %v1000 = vunpack.c.l.b16 %v900
        %v1001 = vunpack.c.h.b16 %v900
        %v1002 = vunpack.c.l.b16 %v901
        %v1003 = vunpack.c.h.b16 %v901
        %v1004 = vunpack.c.l.b16 %v902
        %v1005 = vunpack.c.h.b16 %v902
        %v1006 = vunpack.c.l.b16 %v903
        %v1007 = vunpack.c.h.b16 %v903
        %v1008 = vunpack.c.l.b16 %v904
        %v1009 = vunpack.c.h.b16 %v904
        %v1010 = vunpack.c.l.b16 %v905
        %v1011 = vunpack.c.h.b16 %v905
        %v1012 = vunpack.c.l.b16 %v906
        %v1013 = vunpack.c.h.b16 %v906
        %v1014 = vunpack.c.l.b16 %v907
        %v1015 = vunpack.c.h.b16 %v907
        %v1016 = vpack.c.b16 %v954, %v952
        %v1017 = vpack.c.b16 %v955, %v953
        %v1018 = vpack.c.b16 %v958, %v956
        %v1019 = vpack.c.b16 %v959, %v957
        %v1020 = vpack.c.b16 %v962, %v960
        %v1021 = vpack.c.b16 %v963, %v961
        %v1022 = vpack.c.b16 %v966, %v964
        %v1023 = vpack.c.b16 %v967, %v965
        %v1024 = vpack.c.b16 %v970, %v968
        %v1025 = vpack.c.b16 %v971, %v969
        %v1026 = vpack.c.b16 %v974, %v972
        %v1027 = vpack.c.b16 %v975, %v973
        %v1028 = vpack.c.b16 %v978, %v976
        %v1029 = vpack.c.b16 %v979, %v977
        %v1030 = vpack.c.b16 %v982, %v980
        %v1031 = vpack.c.b16 %v983, %v981
        %v1032 = vpack.c.b16 %v986, %v984
        %v1033 = vpack.c.b16 %v987, %v985
        %v1034 = vpack.c.b16 %v990, %v988
        %v1035 = vpack.c.b16 %v991, %v989
        %v1036 = vpack.c.b16 %v994, %v992
        %v1037 = vpack.c.b16 %v995, %v993
        %v1038 = vpack.c.b16 %v998, %v996
        %v1039 = vpack.c.b16 %v999, %v997
        %v1040 = vpack.c.b16 %v1002, %v1000
        %v1041 = vpack.c.b16 %v1003, %v1001
        %v1042 = vpack.c.b16 %v1006, %v1004
        %v1043 = vpack.c.b16 %v1007, %v1005
        %v1044 = vpack.c.b16 %v1010, %v1008
        %v1045 = vpack.c.b16 %v1011, %v1009
        %v1046 = vpack.c.b16 %v1014, %v1012
        %v1047 = vpack.c.b16 %v1015, %v1013
        %1080 = vmatprep.subr.bf16.mxu0 %v1017
        %1081 = vmatpush1.bf16.msra.mxu0 %v1016
        %1082 = vmatprep.subr.bf16.mxu0 %v1019
        %1083 = vmatpush1.bf16.msra.mxu0 %v1018
        %1084 = vmatprep.subr.bf16.mxu0 %v1021
        %1085 = vmatpush1.bf16.msra.mxu0 %v1020
        %1086 = vmatprep.subr.bf16.mxu0 %v1023
        %1087 = vmatpush1.bf16.msra.mxu0 %v1022
        %1088 = vmatprep.subr.bf16.mxu0 %v1025
        %1089 = vmatpush1.bf16.msra.mxu0 %v1024
        %1090 = vmatprep.subr.bf16.mxu0 %v1027
        %1091 = vmatpush1.bf16.msra.mxu0 %v1026
        %1092 = vmatprep.subr.bf16.mxu0 %v1029
        %1093 = vmatpush1.bf16.msra.mxu0 %v1028
        %1094 = vmatprep.subr.bf16.mxu0 %v1031
        %1095 = vmatpush1.bf16.msra.mxu0 %v1030
        %1096 = vmatprep.subr.bf16.mxu0 %v1033
        %1097 = vmatpush1.bf16.msra.mxu0 %v1032
        %1098 = vmatprep.subr.bf16.mxu0 %v1035
        %1099 = vmatpush1.bf16.msra.mxu0 %v1034
        %1100 = vmatprep.subr.bf16.mxu0 %v1037
        %1101 = vmatpush1.bf16.msra.mxu0 %v1036
        %1102 = vmatprep.subr.bf16.mxu0 %v1039
        %1103 = vmatpush1.bf16.msra.mxu0 %v1038
        %1104 = vmatprep.subr.bf16.mxu0 %v1041
        %1105 = vmatpush1.bf16.msra.mxu0 %v1040
        %1106 = vmatprep.subr.bf16.mxu0 %v1043
        %1107 = vmatpush1.bf16.msra.mxu0 %v1042
        %1108 = vmatprep.subr.bf16.mxu0 %v1045
        %1109 = vmatpush1.bf16.msra.mxu0 %v1044
        %1110 = vmatprep.subr.bf16.mxu0 %v1047
        %1111 = vmatpush1.bf16.msra.mxu0 %v1046
        %1112 = vmatprep.mubr.bf16.mxu0 %v845
        %1113 = vmatmul.mubr.bf16.gmra.mrb[0].mxu0 %v844
        %v1114 = vpop.f32.mrb[0].mxu0
        %v1115 = vadd.f32 %v913, %v1114
        %v1116 = vpop.f32.mrb[0].mxu0
        %v1117 = vadd.f32 %v917, %v1116
        %v1118 = vpop.f32.mrb[0].mxu0
        %v1119 = vadd.f32 %v913, %v1118
        %v1120 = vpop.f32.mrb[0].mxu0
        %v1121 = vadd.f32 %v917, %v1120
        %1122 = vmatprep.mubr.bf16.mxu0 %v847
        %1123 = vmatmul.mubr.bf16.gmra.mrb[0].mxu0 %v846
        %v1124 = vpop.f32.mrb[0].mxu0
        %v1125 = vadd.f32 %v913, %v1124
        %v1126 = vpop.f32.mrb[0].mxu0
        %v1127 = vadd.f32 %v917, %v1126
        %v1128 = vpop.f32.mrb[0].mxu0
        %v1129 = vadd.f32 %v913, %v1128
        %v1130 = vpop.f32.mrb[0].mxu0
        %v1131 = vadd.f32 %v917, %v1130
        %1132 = vmatprep.mubr.bf16.mxu0 %v849
        %1133 = vmatmul.mubr.bf16.gmra.mrb[0].mxu0 %v848
        %v1134 = vpop.f32.mrb[0].mxu0
        %v1135 = vadd.f32 %v913, %v1134
        %v1136 = vpop.f32.mrb[0].mxu0
        %v1137 = vadd.f32 %v917, %v1136
        %v1138 = vpop.f32.mrb[0].mxu0
        %v1139 = vadd.f32 %v913, %v1138
        %v1140 = vpop.f32.mrb[0].mxu0
        %v1141 = vadd.f32 %v917, %v1140
        %1142 = vmatprep.mubr.bf16.mxu0 %v851
        %1143 = vmatmul.mubr.bf16.gmra.mrb[0].mxu0 %v850
        %v1144 = vpop.f32.mrb[0].mxu0
        %v1145 = vadd.f32 %v913, %v1144
        %v1146 = vpop.f32.mrb[0].mxu0
        %v1147 = vadd.f32 %v917, %v1146
        %v1148 = vpop.f32.mrb[0].mxu0
        %v1149 = vadd.f32 %v913, %v1148
        %v1150 = vpop.f32.mrb[0].mxu0
        %v1151 = vadd.f32 %v917, %v1150
        %1152 = vmatprep.mubr.bf16.mxu0 %v853
        %1153 = vmatmul.mubr.bf16.gmra.mrb[0].mxu0 %v852
        %v1154 = vpop.f32.mrb[0].mxu0
        %v1155 = vadd.f32 %v913, %v1154
        %v1156 = vpop.f32.mrb[0].mxu0
        %v1157 = vadd.f32 %v917, %v1156
        %v1158 = vpop.f32.mrb[0].mxu0
        %v1159 = vadd.f32 %v913, %v1158
        %v1160 = vpop.f32.mrb[0].mxu0
        %v1161 = vadd.f32 %v917, %v1160
        %1162 = vmatprep.mubr.bf16.mxu0 %v855
        %1163 = vmatmul.mubr.bf16.gmra.mrb[0].mxu0 %v854
        %v1164 = vpop.f32.mrb[0].mxu0
        %v1165 = vadd.f32 %v913, %v1164
        %v1166 = vpop.f32.mrb[0].mxu0
        %v1167 = vadd.f32 %v917, %v1166
        %v1168 = vpop.f32.mrb[0].mxu0
        %v1169 = vadd.f32 %v913, %v1168
        %v1170 = vpop.f32.mrb[0].mxu0
        %v1171 = vadd.f32 %v917, %v1170
        %1172 = vmatprep.mubr.bf16.mxu0 %v857
        %1173 = vmatmul.mubr.bf16.gmra.mrb[0].mxu0 %v856
        %v1174 = vpop.f32.mrb[0].mxu0
        %v1175 = vadd.f32 %v913, %v1174
        %v1176 = vpop.f32.mrb[0].mxu0
        %v1177 = vadd.f32 %v917, %v1176
        %v1178 = vpop.f32.mrb[0].mxu0
        %v1179 = vadd.f32 %v913, %v1178
        %v1180 = vpop.f32.mrb[0].mxu0
        %v1181 = vadd.f32 %v917, %v1180
        %1182 = vmatprep.mubr.bf16.mxu0 %v859
        %1183 = vmatmul.mubr.bf16.gmra.mrb[0].mxu0 %v858
        %v1184 = vpop.f32.mrb[0].mxu0
        %v1185 = vadd.f32 %v913, %v1184
        %v1186 = vpop.f32.mrb[0].mxu0
        %v1187 = vadd.f32 %v917, %v1186
        %v1188 = vpop.f32.mrb[0].mxu0
        %v1189 = vadd.f32 %v913, %v1188
        %v1190 = vpop.f32.mrb[0].mxu0
        %v1191 = vadd.f32 %v917, %v1190
        %1192 = vmatprep.mubr.bf16.mxu0 %v861
        %1193 = vmatmul.mubr.bf16.gmra.mrb[0].mxu0 %v860
        %v1194 = vpop.f32.mrb[0].mxu0
        %v1195 = vadd.f32 %v913, %v1194
        %v1196 = vpop.f32.mrb[0].mxu0
        %v1197 = vadd.f32 %v917, %v1196
        %v1198 = vpop.f32.mrb[0].mxu0
        %v1199 = vadd.f32 %v913, %v1198
        %v1200 = vpop.f32.mrb[0].mxu0
        %v1201 = vadd.f32 %v917, %v1200
        %1202 = vmatprep.mubr.bf16.mxu0 %v863
        %1203 = vmatmul.mubr.bf16.gmra.mrb[0].mxu0 %v862
        %v1204 = vpop.f32.mrb[0].mxu0
        %v1205 = vadd.f32 %v913, %v1204
        %v1206 = vpop.f32.mrb[0].mxu0
        %v1207 = vadd.f32 %v917, %v1206
        %v1208 = vpop.f32.mrb[0].mxu0
        %v1209 = vadd.f32 %v913, %v1208
        %v1210 = vpop.f32.mrb[0].mxu0
        %v1211 = vadd.f32 %v917, %v1210
        %1212 = vmatprep.mubr.bf16.mxu0 %v865
        %1213 = vmatmul.mubr.bf16.gmra.mrb[0].mxu0 %v864
        %v1214 = vpop.f32.mrb[0].mxu0
        %v1215 = vadd.f32 %v913, %v1214
        %v1216 = vpop.f32.mrb[0].mxu0
        %v1217 = vadd.f32 %v917, %v1216
        %v1218 = vpop.f32.mrb[0].mxu0
        %v1219 = vadd.f32 %v913, %v1218
        %v1220 = vpop.f32.mrb[0].mxu0
        %v1221 = vadd.f32 %v917, %v1220
        %1222 = vmatprep.mubr.bf16.mxu0 %v867
        %1223 = vmatmul.mubr.bf16.gmra.mrb[0].mxu0 %v866
        %v1224 = vpop.f32.mrb[0].mxu0
        %v1225 = vadd.f32 %v913, %v1224
        %v1226 = vpop.f32.mrb[0].mxu0
        %v1227 = vadd.f32 %v917, %v1226
        %v1228 = vpop.f32.mrb[0].mxu0
        %v1229 = vadd.f32 %v913, %v1228
        %v1230 = vpop.f32.mrb[0].mxu0
        %v1231 = vadd.f32 %v917, %v1230
        %1232 = vmatprep.mubr.bf16.mxu0 %v869
        %1233 = vmatmul.mubr.bf16.gmra.mrb[0].mxu0 %v868
        %v1234 = vpop.f32.mrb[0].mxu0
        %v1235 = vadd.f32 %v913, %v1234
        %v1236 = vpop.f32.mrb[0].mxu0
        %v1237 = vadd.f32 %v917, %v1236
        %v1238 = vpop.f32.mrb[0].mxu0
        %v1239 = vadd.f32 %v913, %v1238
        %v1240 = vpop.f32.mrb[0].mxu0
        %v1241 = vadd.f32 %v917, %v1240
        %1242 = vmatprep.mubr.bf16.mxu0 %v871
        %1243 = vmatmul.mubr.bf16.gmra.mrb[0].mxu0 %v870
        %v1244 = vpop.f32.mrb[0].mxu0
        %v1245 = vadd.f32 %v913, %v1244
        %v1246 = vpop.f32.mrb[0].mxu0
        %v1247 = vadd.f32 %v917, %v1246
        %v1248 = vpop.f32.mrb[0].mxu0
        %v1249 = vadd.f32 %v913, %v1248
        %v1250 = vpop.f32.mrb[0].mxu0
        %v1251 = vadd.f32 %v917, %v1250
        %1252 = vmatprep.mubr.bf16.mxu0 %v873
        %1253 = vmatmul.mubr.bf16.gmra.mrb[0].mxu0 %v872
        %v1254 = vpop.f32.mrb[0].mxu0
        %v1255 = vadd.f32 %v913, %v1254
        %v1256 = vpop.f32.mrb[0].mxu0
        %v1257 = vadd.f32 %v917, %v1256
        %v1258 = vpop.f32.mrb[0].mxu0
        %v1259 = vadd.f32 %v913, %v1258
        %v1260 = vpop.f32.mrb[0].mxu0
        %v1261 = vadd.f32 %v917, %v1260
        %1262 = vmatprep.mubr.bf16.mxu0 %v875
        %1263 = vmatmul.mubr.bf16.gmra.mrb[0].mxu0 %v874
        %v1264 = vpop.f32.mrb[0].mxu0
        %v1265 = vadd.f32 %v913, %v1264
        %v1266 = vpop.f32.mrb[0].mxu0
        %v1267 = vadd.f32 %v917, %v1266
        %v1268 = vpop.f32.mrb[0].mxu0
        %v1269 = vadd.f32 %v913, %v1268
        %v1270 = vpop.f32.mrb[0].mxu0
        %v1271 = vadd.f32 %v917, %v1270
        %1272 = vdwg.mxu0
        %v1273 = vmax.f32 %v1115, 0.0
        %v1274 = vmax.f32 %v1117, 0.0
        %v1275 = vmax.f32 %v1119, 0.0
        %v1276 = vmax.f32 %v1121, 0.0
        %v1277 = vmax.f32 %v1125, 0.0
        %v1278 = vmax.f32 %v1127, 0.0
        %v1279 = vmax.f32 %v1129, 0.0
        %v1280 = vmax.f32 %v1131, 0.0
        %v1281 = vmax.f32 %v1135, 0.0
        %v1282 = vmax.f32 %v1137, 0.0
        %v1283 = vmax.f32 %v1139, 0.0
        %v1284 = vmax.f32 %v1141, 0.0
        %v1285 = vmax.f32 %v1145, 0.0
        %v1286 = vmax.f32 %v1147, 0.0
        %v1287 = vmax.f32 %v1149, 0.0
        %v1288 = vmax.f32 %v1151, 0.0
        %v1289 = vmax.f32 %v1155, 0.0
        %v1290 = vmax.f32 %v1157, 0.0
        %v1291 = vmax.f32 %v1159, 0.0
        %v1292 = vmax.f32 %v1161, 0.0
        %v1293 = vmax.f32 %v1165, 0.0
        %v1294 = vmax.f32 %v1167, 0.0
        %v1295 = vmax.f32 %v1169, 0.0
        %v1296 = vmax.f32 %v1171, 0.0
        %v1297 = vmax.f32 %v1175, 0.0
        %v1298 = vmax.f32 %v1177, 0.0
        %v1299 = vmax.f32 %v1179, 0.0
        %v1300 = vmax.f32 %v1181, 0.0
        %v1301 = vmax.f32 %v1185, 0.0
        %v1302 = vmax.f32 %v1187, 0.0
        %v1303 = vmax.f32 %v1189, 0.0
        %v1304 = vmax.f32 %v1191, 0.0
        %v1305 = vmax.f32 %v1195, 0.0
        %v1306 = vmax.f32 %v1197, 0.0
        %v1307 = vmax.f32 %v1199, 0.0
        %v1308 = vmax.f32 %v1201, 0.0
        %v1309 = vmax.f32 %v1205, 0.0
        %v1310 = vmax.f32 %v1207, 0.0
        %v1311 = vmax.f32 %v1209, 0.0
        %v1312 = vmax.f32 %v1211, 0.0
        %v1313 = vmax.f32 %v1215, 0.0
        %v1314 = vmax.f32 %v1217, 0.0
        %v1315 = vmax.f32 %v1219, 0.0
        %v1316 = vmax.f32 %v1221, 0.0
        %v1317 = vmax.f32 %v1225, 0.0
        %v1318 = vmax.f32 %v1227, 0.0
        %v1319 = vmax.f32 %v1229, 0.0
        %v1320 = vmax.f32 %v1231, 0.0
        %v1321 = vmax.f32 %v1235, 0.0
        %v1322 = vmax.f32 %v1237, 0.0
        %v1323 = vmax.f32 %v1239, 0.0
        %v1324 = vmax.f32 %v1241, 0.0
        %v1325 = vmax.f32 %v1245, 0.0
        %v1326 = vmax.f32 %v1247, 0.0
        %v1327 = vmax.f32 %v1249, 0.0
        %v1328 = vmax.f32 %v1251, 0.0
        %v1329 = vmax.f32 %v1255, 0.0
        %v1330 = vmax.f32 %v1257, 0.0
        %v1331 = vmax.f32 %v1259, 0.0
        %v1332 = vmax.f32 %v1261, 0.0
        %v1333 = vmax.f32 %v1265, 0.0
        %v1334 = vmax.f32 %v1267, 0.0
        %v1335 = vmax.f32 %v1269, 0.0
        %v1336 = vmax.f32 %v1271, 0.0
        %v1337 = vadd.f32 %v780, %v1273
        %v1338 = vadd.f32 %v781, %v1274
        %v1339 = vadd.f32 %v782, %v1275
        %v1340 = vadd.f32 %v783, %v1276
        %v1341 = vadd.f32 %v784, %v1277
        %v1342 = vadd.f32 %v785, %v1278
        %v1343 = vadd.f32 %v786, %v1279
        %v1344 = vadd.f32 %v787, %v1280
        %v1345 = vadd.f32 %v788, %v1281
        %v1346 = vadd.f32 %v789, %v1282
        %v1347 = vadd.f32 %v790, %v1283
        %v1348 = vadd.f32 %v791, %v1284
        %v1349 = vadd.f32 %v792, %v1285
        %v1350 = vadd.f32 %v793, %v1286
        %v1351 = vadd.f32 %v794, %v1287
        %v1352 = vadd.f32 %v795, %v1288
        %v1353 = vadd.f32 %v796, %v1289
        %v1354 = vadd.f32 %v797, %v1290
        %v1355 = vadd.f32 %v798, %v1291
        %v1356 = vadd.f32 %v799, %v1292
        %v1357 = vadd.f32 %v800, %v1293
        %v1358 = vadd.f32 %v801, %v1294
        %v1359 = vadd.f32 %v802, %v1295
        %v1360 = vadd.f32 %v803, %v1296
        %v1361 = vadd.f32 %v804, %v1297
        %v1362 = vadd.f32 %v805, %v1298
        %v1363 = vadd.f32 %v806, %v1299
        %v1364 = vadd.f32 %v807, %v1300
        %v1365 = vadd.f32 %v808, %v1301
        %v1366 = vadd.f32 %v809, %v1302
        %v1367 = vadd.f32 %v810, %v1303
        %v1368 = vadd.f32 %v811, %v1304
        %v1369 = vadd.f32 %v812, %v1305
        %v1370 = vadd.f32 %v813, %v1306
        %v1371 = vadd.f32 %v814, %v1307
        %v1372 = vadd.f32 %v815, %v1308
        %v1373 = vadd.f32 %v816, %v1309
        %v1374 = vadd.f32 %v817, %v1310
        %v1375 = vadd.f32 %v818, %v1311
        %v1376 = vadd.f32 %v819, %v1312
        %v1377 = vadd.f32 %v820, %v1313
        %v1378 = vadd.f32 %v821, %v1314
        %v1379 = vadd.f32 %v822, %v1315
        %v1380 = vadd.f32 %v823, %v1316
        %v1381 = vadd.f32 %v824, %v1317
        %v1382 = vadd.f32 %v825, %v1318
        %v1383 = vadd.f32 %v826, %v1319
        %v1384 = vadd.f32 %v827, %v1320
        %v1385 = vadd.f32 %v828, %v1321
        %v1386 = vadd.f32 %v829, %v1322
        %v1387 = vadd.f32 %v830, %v1323
        %v1388 = vadd.f32 %v831, %v1324
        %v1389 = vadd.f32 %v832, %v1325
        %v1390 = vadd.f32 %v833, %v1326
        %v1391 = vadd.f32 %v834, %v1327
        %v1392 = vadd.f32 %v835, %v1328
        %v1393 = vadd.f32 %v836, %v1329
        %v1394 = vadd.f32 %v837, %v1330
        %v1395 = vadd.f32 %v838, %v1331
        %v1396 = vadd.f32 %v839, %v1332
        %v1397 = vadd.f32 %v840, %v1333
        %v1398 = vadd.f32 %v841, %v1334
        %v1399 = vadd.f32 %v842, %v1335
        %v1400 = vadd.f32 %v843, %v1336
        %v1401 = vpack.c.bf16 %v1339, %v1337
        %v1402 = vpack.c.bf16 %v1340, %v1338
        %v1403 = vpack.c.bf16 %v1343, %v1341
        %v1404 = vpack.c.bf16 %v1344, %v1342
        %v1405 = vpack.c.bf16 %v1347, %v1345
        %v1406 = vpack.c.bf16 %v1348, %v1346
        %v1407 = vpack.c.bf16 %v1351, %v1349
        %v1408 = vpack.c.bf16 %v1352, %v1350
        %v1409 = vpack.c.bf16 %v1355, %v1353
        %v1410 = vpack.c.bf16 %v1356, %v1354
        %v1411 = vpack.c.bf16 %v1359, %v1357
        %v1412 = vpack.c.bf16 %v1360, %v1358
        %v1413 = vpack.c.bf16 %v1363, %v1361
        %v1414 = vpack.c.bf16 %v1364, %v1362
        %v1415 = vpack.c.bf16 %v1367, %v1365
        %v1416 = vpack.c.bf16 %v1368, %v1366
        %v1417 = vpack.c.bf16 %v1371, %v1369
        %v1418 = vpack.c.bf16 %v1372, %v1370
        %v1419 = vpack.c.bf16 %v1375, %v1373
        %v1420 = vpack.c.bf16 %v1376, %v1374
        %v1421 = vpack.c.bf16 %v1379, %v1377
        %v1422 = vpack.c.bf16 %v1380, %v1378
        %v1423 = vpack.c.bf16 %v1383, %v1381
        %v1424 = vpack.c.bf16 %v1384, %v1382
        %v1425 = vpack.c.bf16 %v1387, %v1385
        %v1426 = vpack.c.bf16 %v1388, %v1386
        %v1427 = vpack.c.bf16 %v1391, %v1389
        %v1428 = vpack.c.bf16 %v1392, %v1390
        %v1429 = vpack.c.bf16 %v1395, %v1393
        %v1430 = vpack.c.bf16 %v1396, %v1394
        %v1431 = vpack.c.bf16 %v1399, %v1397
        %v1432 = vpack.c.bf16 %v1400, %v1398
        %v1433 = vld [vmem:[%s5] sm:$0xff]
        %v1434 = vld [vmem:[%s5 + $0x8] sm:$0xff]
        %v1435 = vld [vmem:[%s5 + $0x10] sm:$0xff]
        %v1436 = vld [vmem:[%s5 + $0x18] sm:$0xff]
        %v1437 = vld [vmem:[%s5 + $0x20] sm:$0xff]
        %v1438 = vld [vmem:[%s5 + $0x28] sm:$0xff]
        %v1439 = vld [vmem:[%s5 + $0x30] sm:$0xff]
        %v1440 = vld [vmem:[%s5 + $0x38] sm:$0xff]
        %v1441 = vld [vmem:[%s5 + $0x40] sm:$0xff]
        %v1442 = vld [vmem:[%s5 + $0x48] sm:$0xff]
        %v1443 = vld [vmem:[%s5 + $0x50] sm:$0xff]
        %v1444 = vld [vmem:[%s5 + $0x58] sm:$0xff]
        %v1445 = vld [vmem:[%s5 + $0x60] sm:$0xff]
        %v1446 = vld [vmem:[%s5 + $0x68] sm:$0xff]
        %v1447 = vld [vmem:[%s5 + $0x70] sm:$0xff]
        %v1448 = vld [vmem:[%s5 + $0x78] sm:$0xff]
        %v1449 = vld [vmem:[%s5 + $0x80] sm:$0xff]
        %v1450 = vld [vmem:[%s5 + $0x88] sm:$0xff]
        %v1451 = vld [vmem:[%s5 + $0x90] sm:$0xff]
        %v1452 = vld [vmem:[%s5 + $0x98] sm:$0xff]
        %v1453 = vld [vmem:[%s5 + $0xa0] sm:$0xff]
        %v1454 = vld [vmem:[%s5 + $0xa8] sm:$0xff]
        %v1455 = vld [vmem:[%s5 + $0xb0] sm:$0xff]
        %v1456 = vld [vmem:[%s5 + $0xb8] sm:$0xff]
        %v1457 = vld [vmem:[%s5 + $0xc0] sm:$0xff]
        %v1458 = vld [vmem:[%s5 + $0xc8] sm:$0xff]
        %v1459 = vld [vmem:[%s5 + $0xd0] sm:$0xff]
        %v1460 = vld [vmem:[%s5 + $0xd8] sm:$0xff]
        %v1461 = vld [vmem:[%s5 + $0xe0] sm:$0xff]
        %v1462 = vld [vmem:[%s5 + $0xe8] sm:$0xff]
        %v1463 = vld [vmem:[%s5 + $0xf0] sm:$0xff]
        %v1464 = vld [vmem:[%s5 + $0xf8] sm:$0xff]
        %v1465 = vld [vmem:[%s6] sm:$0x3]
        %v1467 = vlaneseq
        %v1468 = vshrl.u32 %v1467, 7
        %v1469 = vsub.s32 0, %v1468
        %v1470 = vrot.slane %v1465, %v1469
        %v1471 = vlaneseq
        %v1472 = vshrl.u32 %v1471, 7
        %v1473 = vsub.s32 1, %v1472
        %v1474 = vrot.slane %v1465, %v1473
        %v1509 = vunpack.c.l.b16 %v1433
        %v1510 = vunpack.c.h.b16 %v1433
        %v1511 = vunpack.c.l.b16 %v1434
        %v1512 = vunpack.c.h.b16 %v1434
        %v1513 = vunpack.c.l.b16 %v1435
        %v1514 = vunpack.c.h.b16 %v1435
        %v1515 = vunpack.c.l.b16 %v1436
        %v1516 = vunpack.c.h.b16 %v1436
        %v1517 = vunpack.c.l.b16 %v1437
        %v1518 = vunpack.c.h.b16 %v1437
        %v1519 = vunpack.c.l.b16 %v1438
        %v1520 = vunpack.c.h.b16 %v1438
        %v1521 = vunpack.c.l.b16 %v1439
        %v1522 = vunpack.c.h.b16 %v1439
        %v1523 = vunpack.c.l.b16 %v1440
        %v1524 = vunpack.c.h.b16 %v1440
        %v1525 = vunpack.c.l.b16 %v1441
        %v1526 = vunpack.c.h.b16 %v1441
        %v1527 = vunpack.c.l.b16 %v1442
        %v1528 = vunpack.c.h.b16 %v1442
        %v1529 = vunpack.c.l.b16 %v1443
        %v1530 = vunpack.c.h.b16 %v1443
        %v1531 = vunpack.c.l.b16 %v1444
        %v1532 = vunpack.c.h.b16 %v1444
        %v1533 = vunpack.c.l.b16 %v1445
        %v1534 = vunpack.c.h.b16 %v1445
        %v1535 = vunpack.c.l.b16 %v1446
        %v1536 = vunpack.c.h.b16 %v1446
        %v1537 = vunpack.c.l.b16 %v1447
        %v1538 = vunpack.c.h.b16 %v1447
        %v1539 = vunpack.c.l.b16 %v1448
        %v1540 = vunpack.c.h.b16 %v1448
        %v1541 = vunpack.c.l.b16 %v1449
        %v1542 = vunpack.c.h.b16 %v1449
        %v1543 = vunpack.c.l.b16 %v1450
        %v1544 = vunpack.c.h.b16 %v1450
        %v1545 = vunpack.c.l.b16 %v1451
        %v1546 = vunpack.c.h.b16 %v1451
        %v1547 = vunpack.c.l.b16 %v1452
        %v1548 = vunpack.c.h.b16 %v1452
        %v1549 = vunpack.c.l.b16 %v1453
        %v1550 = vunpack.c.h.b16 %v1453
        %v1551 = vunpack.c.l.b16 %v1454
        %v1552 = vunpack.c.h.b16 %v1454
        %v1553 = vunpack.c.l.b16 %v1455
        %v1554 = vunpack.c.h.b16 %v1455
        %v1555 = vunpack.c.l.b16 %v1456
        %v1556 = vunpack.c.h.b16 %v1456
        %v1557 = vunpack.c.l.b16 %v1457
        %v1558 = vunpack.c.h.b16 %v1457
        %v1559 = vunpack.c.l.b16 %v1458
        %v1560 = vunpack.c.h.b16 %v1458
        %v1561 = vunpack.c.l.b16 %v1459
        %v1562 = vunpack.c.h.b16 %v1459
        %v1563 = vunpack.c.l.b16 %v1460
        %v1564 = vunpack.c.h.b16 %v1460
        %v1565 = vunpack.c.l.b16 %v1461
        %v1566 = vunpack.c.h.b16 %v1461
        %v1567 = vunpack.c.l.b16 %v1462
        %v1568 = vunpack.c.h.b16 %v1462
        %v1569 = vunpack.c.l.b16 %v1463
        %v1570 = vunpack.c.h.b16 %v1463
        %v1571 = vunpack.c.l.b16 %v1464
        %v1572 = vunpack.c.h.b16 %v1464
        %v1573 = vpack.c.b16 %v1511, %v1509
        %v1574 = vpack.c.b16 %v1512, %v1510
        %v1575 = vpack.c.b16 %v1515, %v1513
        %v1576 = vpack.c.b16 %v1516, %v1514
        %v1577 = vpack.c.b16 %v1519, %v1517
        %v1578 = vpack.c.b16 %v1520, %v1518
        %v1579 = vpack.c.b16 %v1523, %v1521
        %v1580 = vpack.c.b16 %v1524, %v1522
        %v1581 = vpack.c.b16 %v1527, %v1525
        %v1582 = vpack.c.b16 %v1528, %v1526
        %v1583 = vpack.c.b16 %v1531, %v1529
        %v1584 = vpack.c.b16 %v1532, %v1530
        %v1585 = vpack.c.b16 %v1535, %v1533
        %v1586 = vpack.c.b16 %v1536, %v1534
        %v1587 = vpack.c.b16 %v1539, %v1537
        %v1588 = vpack.c.b16 %v1540, %v1538
        %v1589 = vpack.c.b16 %v1543, %v1541
        %v1590 = vpack.c.b16 %v1544, %v1542
        %v1591 = vpack.c.b16 %v1547, %v1545
        %v1592 = vpack.c.b16 %v1548, %v1546
        %v1593 = vpack.c.b16 %v1551, %v1549
        %v1594 = vpack.c.b16 %v1552, %v1550
        %v1595 = vpack.c.b16 %v1555, %v1553
        %v1596 = vpack.c.b16 %v1556, %v1554
        %v1597 = vpack.c.b16 %v1559, %v1557
        %v1598 = vpack.c.b16 %v1560, %v1558
        %v1599 = vpack.c.b16 %v1563, %v1561
        %v1600 = vpack.c.b16 %v1564, %v1562
        %v1601 = vpack.c.b16 %v1567, %v1565
        %v1602 = vpack.c.b16 %v1568, %v1566
        %v1603 = vpack.c.b16 %v1571, %v1569
        %v1604 = vpack.c.b16 %v1572, %v1570
        %1637 = vmatprep.subr.bf16.mxu0 %v1574
        %1638 = vmatpush1.bf16.msra.mxu0 %v1573
        %1639 = vmatprep.subr.bf16.mxu0 %v1576
        %1640 = vmatpush1.bf16.msra.mxu0 %v1575
        %1641 = vmatprep.subr.bf16.mxu0 %v1578
        %1642 = vmatpush1.bf16.msra.mxu0 %v1577
        %1643 = vmatprep.subr.bf16.mxu0 %v1580
        %1644 = vmatpush1.bf16.msra.mxu0 %v1579
        %1645 = vmatprep.subr.bf16.mxu0 %v1582
        %1646 = vmatpush1.bf16.msra.mxu0 %v1581
        %1647 = vmatprep.subr.bf16.mxu0 %v1584
        %1648 = vmatpush1.bf16.msra.mxu0 %v1583
        %1649 = vmatprep.subr.bf16.mxu0 %v1586
        %1650 = vmatpush1.bf16.msra.mxu0 %v1585
        %1651 = vmatprep.subr.bf16.mxu0 %v1588
        %1652 = vmatpush1.bf16.msra.mxu0 %v1587
        %1653 = vmatprep.subr.bf16.mxu0 %v1590
        %1654 = vmatpush1.bf16.msra.mxu0 %v1589
        %1655 = vmatprep.subr.bf16.mxu0 %v1592
        %1656 = vmatpush1.bf16.msra.mxu0 %v1591
        %1657 = vmatprep.subr.bf16.mxu0 %v1594
        %1658 = vmatpush1.bf16.msra.mxu0 %v1593
        %1659 = vmatprep.subr.bf16.mxu0 %v1596
        %1660 = vmatpush1.bf16.msra.mxu0 %v1595
        %1661 = vmatprep.subr.bf16.mxu0 %v1598
        %1662 = vmatpush1.bf16.msra.mxu0 %v1597
        %1663 = vmatprep.subr.bf16.mxu0 %v1600
        %1664 = vmatpush1.bf16.msra.mxu0 %v1599
        %1665 = vmatprep.subr.bf16.mxu0 %v1602
        %1666 = vmatpush1.bf16.msra.mxu0 %v1601
        %1667 = vmatprep.subr.bf16.mxu0 %v1604
        %1668 = vmatpush1.bf16.msra.mxu0 %v1603
        %1669 = vmatprep.mubr.bf16.mxu0 %v1402
        %1670 = vmatmul.mubr.bf16.gmra.mrb[0].mxu0 %v1401
        %v1671 = vpop.f32.mrb[0].mxu0
        %v1672 = vadd.f32 %v1470, %v1671
        %v1673 = vpop.f32.mrb[0].mxu0
        %v1674 = vadd.f32 %v1474, %v1673
        %v1675 = vpop.f32.mrb[0].mxu0
        %v1676 = vadd.f32 %v1470, %v1675
        %v1677 = vpop.f32.mrb[0].mxu0
        %v1678 = vadd.f32 %v1474, %v1677
        %1679 = vmatprep.mubr.bf16.mxu0 %v1404
        %1680 = vmatmul.mubr.bf16.gmra.mrb[0].mxu0 %v1403
        %v1681 = vpop.f32.mrb[0].mxu0
        %v1682 = vadd.f32 %v1470, %v1681
        %v1683 = vpop.f32.mrb[0].mxu0
        %v1684 = vadd.f32 %v1474, %v1683
        %v1685 = vpop.f32.mrb[0].mxu0
        %v1686 = vadd.f32 %v1470, %v1685
        %v1687 = vpop.f32.mrb[0].mxu0
        %v1688 = vadd.f32 %v1474, %v1687
        %1689 = vmatprep.mubr.bf16.mxu0 %v1406
        %1690 = vmatmul.mubr.bf16.gmra.mrb[0].mxu0 %v1405
        %v1691 = vpop.f32.mrb[0].mxu0
        %v1692 = vadd.f32 %v1470, %v1691
        %v1693 = vpop.f32.mrb[0].mxu0
        %v1694 = vadd.f32 %v1474, %v1693
        %v1695 = vpop.f32.mrb[0].mxu0
        %v1696 = vadd.f32 %v1470, %v1695
        %v1697 = vpop.f32.mrb[0].mxu0
        %v1698 = vadd.f32 %v1474, %v1697
        %1699 = vmatprep.mubr.bf16.mxu0 %v1408
        %1700 = vmatmul.mubr.bf16.gmra.mrb[0].mxu0 %v1407
        %v1701 = vpop.f32.mrb[0].mxu0
        %v1702 = vadd.f32 %v1470, %v1701
        %v1703 = vpop.f32.mrb[0].mxu0
        %v1704 = vadd.f32 %v1474, %v1703
        %v1705 = vpop.f32.mrb[0].mxu0
        %v1706 = vadd.f32 %v1470, %v1705
        %v1707 = vpop.f32.mrb[0].mxu0
        %v1708 = vadd.f32 %v1474, %v1707
        %1709 = vmatprep.mubr.bf16.mxu0 %v1410
        %1710 = vmatmul.mubr.bf16.gmra.mrb[0].mxu0 %v1409
        %v1711 = vpop.f32.mrb[0].mxu0
        %v1712 = vadd.f32 %v1470, %v1711
        %v1713 = vpop.f32.mrb[0].mxu0
        %v1714 = vadd.f32 %v1474, %v1713
        %v1715 = vpop.f32.mrb[0].mxu0
        %v1716 = vadd.f32 %v1470, %v1715
        %v1717 = vpop.f32.mrb[0].mxu0
        %v1718 = vadd.f32 %v1474, %v1717
        %1719 = vmatprep.mubr.bf16.mxu0 %v1412
        %1720 = vmatmul.mubr.bf16.gmra.mrb[0].mxu0 %v1411
        %v1721 = vpop.f32.mrb[0].mxu0
        %v1722 = vadd.f32 %v1470, %v1721
        %v1723 = vpop.f32.mrb[0].mxu0
        %v1724 = vadd.f32 %v1474, %v1723
        %v1725 = vpop.f32.mrb[0].mxu0
        %v1726 = vadd.f32 %v1470, %v1725
        %v1727 = vpop.f32.mrb[0].mxu0
        %v1728 = vadd.f32 %v1474, %v1727
        %1729 = vmatprep.mubr.bf16.mxu0 %v1414
        %1730 = vmatmul.mubr.bf16.gmra.mrb[0].mxu0 %v1413
        %v1731 = vpop.f32.mrb[0].mxu0
        %v1732 = vadd.f32 %v1470, %v1731
        %v1733 = vpop.f32.mrb[0].mxu0
        %v1734 = vadd.f32 %v1474, %v1733
        %v1735 = vpop.f32.mrb[0].mxu0
        %v1736 = vadd.f32 %v1470, %v1735
        %v1737 = vpop.f32.mrb[0].mxu0
        %v1738 = vadd.f32 %v1474, %v1737
        %1739 = vmatprep.mubr.bf16.mxu0 %v1416
        %1740 = vmatmul.mubr.bf16.gmra.mrb[0].mxu0 %v1415
        %v1741 = vpop.f32.mrb[0].mxu0
        %v1742 = vadd.f32 %v1470, %v1741
        %v1743 = vpop.f32.mrb[0].mxu0
        %v1744 = vadd.f32 %v1474, %v1743
        %v1745 = vpop.f32.mrb[0].mxu0
        %v1746 = vadd.f32 %v1470, %v1745
        %v1747 = vpop.f32.mrb[0].mxu0
        %v1748 = vadd.f32 %v1474, %v1747
        %1749 = vmatprep.mubr.bf16.mxu0 %v1418
        %1750 = vmatmul.mubr.bf16.gmra.mrb[0].mxu0 %v1417
        %v1751 = vpop.f32.mrb[0].mxu0
        %v1752 = vadd.f32 %v1470, %v1751
        %v1753 = vpop.f32.mrb[0].mxu0
        %v1754 = vadd.f32 %v1474, %v1753
        %v1755 = vpop.f32.mrb[0].mxu0
        %v1756 = vadd.f32 %v1470, %v1755
        %v1757 = vpop.f32.mrb[0].mxu0
        %v1758 = vadd.f32 %v1474, %v1757
        %1759 = vmatprep.mubr.bf16.mxu0 %v1420
        %1760 = vmatmul.mubr.bf16.gmra.mrb[0].mxu0 %v1419
        %v1761 = vpop.f32.mrb[0].mxu0
        %v1762 = vadd.f32 %v1470, %v1761
        %v1763 = vpop.f32.mrb[0].mxu0
        %v1764 = vadd.f32 %v1474, %v1763
        %v1765 = vpop.f32.mrb[0].mxu0
        %v1766 = vadd.f32 %v1470, %v1765
        %v1767 = vpop.f32.mrb[0].mxu0
        %v1768 = vadd.f32 %v1474, %v1767
        %1769 = vmatprep.mubr.bf16.mxu0 %v1422
        %1770 = vmatmul.mubr.bf16.gmra.mrb[0].mxu0 %v1421
        %v1771 = vpop.f32.mrb[0].mxu0
        %v1772 = vadd.f32 %v1470, %v1771
        %v1773 = vpop.f32.mrb[0].mxu0
        %v1774 = vadd.f32 %v1474, %v1773
        %v1775 = vpop.f32.mrb[0].mxu0
        %v1776 = vadd.f32 %v1470, %v1775
        %v1777 = vpop.f32.mrb[0].mxu0
        %v1778 = vadd.f32 %v1474, %v1777
        %1779 = vmatprep.mubr.bf16.mxu0 %v1424
        %1780 = vmatmul.mubr.bf16.gmra.mrb[0].mxu0 %v1423
        %v1781 = vpop.f32.mrb[0].mxu0
        %v1782 = vadd.f32 %v1470, %v1781
        %v1783 = vpop.f32.mrb[0].mxu0
        %v1784 = vadd.f32 %v1474, %v1783
        %v1785 = vpop.f32.mrb[0].mxu0
        %v1786 = vadd.f32 %v1470, %v1785
        %v1787 = vpop.f32.mrb[0].mxu0
        %v1788 = vadd.f32 %v1474, %v1787
        %1789 = vmatprep.mubr.bf16.mxu0 %v1426
        %1790 = vmatmul.mubr.bf16.gmra.mrb[0].mxu0 %v1425
        %v1791 = vpop.f32.mrb[0].mxu0
        %v1792 = vadd.f32 %v1470, %v1791
        %v1793 = vpop.f32.mrb[0].mxu0
        %v1794 = vadd.f32 %v1474, %v1793
        %v1795 = vpop.f32.mrb[0].mxu0
        %v1796 = vadd.f32 %v1470, %v1795
        %v1797 = vpop.f32.mrb[0].mxu0
        %v1798 = vadd.f32 %v1474, %v1797
        %1799 = vmatprep.mubr.bf16.mxu0 %v1428
        %1800 = vmatmul.mubr.bf16.gmra.mrb[0].mxu0 %v1427
        %v1801 = vpop.f32.mrb[0].mxu0
        %v1802 = vadd.f32 %v1470, %v1801
        %v1803 = vpop.f32.mrb[0].mxu0
        %v1804 = vadd.f32 %v1474, %v1803
        %v1805 = vpop.f32.mrb[0].mxu0
        %v1806 = vadd.f32 %v1470, %v1805
        %v1807 = vpop.f32.mrb[0].mxu0
        %v1808 = vadd.f32 %v1474, %v1807
        %1809 = vmatprep.mubr.bf16.mxu0 %v1430
        %1810 = vmatmul.mubr.bf16.gmra.mrb[0].mxu0 %v1429
        %v1811 = vpop.f32.mrb[0].mxu0
        %v1812 = vadd.f32 %v1470, %v1811
        %v1813 = vpop.f32.mrb[0].mxu0
        %v1814 = vadd.f32 %v1474, %v1813
        %v1815 = vpop.f32.mrb[0].mxu0
        %v1816 = vadd.f32 %v1470, %v1815
        %v1817 = vpop.f32.mrb[0].mxu0
        %v1818 = vadd.f32 %v1474, %v1817
        %1819 = vmatprep.mubr.bf16.mxu0 %v1432
        %1820 = vmatmul.mubr.bf16.gmra.mrb[0].mxu0 %v1431
        %v1821 = vpop.f32.mrb[0].mxu0
        %v1822 = vadd.f32 %v1470, %v1821
        %v1823 = vpop.f32.mrb[0].mxu0
        %v1824 = vadd.f32 %v1474, %v1823
        %v1825 = vpop.f32.mrb[0].mxu0
        %v1826 = vadd.f32 %v1470, %v1825
        %v1827 = vpop.f32.mrb[0].mxu0
        %v1828 = vadd.f32 %v1474, %v1827
        %1829 = vdwg.mxu0
        %v1830 = vmax.f32 %v1672, 0.0
        %v1831 = vmax.f32 %v1674, 0.0
        %v1832 = vmax.f32 %v1676, 0.0
        %v1833 = vmax.f32 %v1678, 0.0
        %v1834 = vmax.f32 %v1682, 0.0
        %v1835 = vmax.f32 %v1684, 0.0
        %v1836 = vmax.f32 %v1686, 0.0
        %v1837 = vmax.f32 %v1688, 0.0
        %v1838 = vmax.f32 %v1692, 0.0
        %v1839 = vmax.f32 %v1694, 0.0
        %v1840 = vmax.f32 %v1696, 0.0
        %v1841 = vmax.f32 %v1698, 0.0
        %v1842 = vmax.f32 %v1702, 0.0
        %v1843 = vmax.f32 %v1704, 0.0
        %v1844 = vmax.f32 %v1706, 0.0
        %v1845 = vmax.f32 %v1708, 0.0
        %v1846 = vmax.f32 %v1712, 0.0
        %v1847 = vmax.f32 %v1714, 0.0
        %v1848 = vmax.f32 %v1716, 0.0
        %v1849 = vmax.f32 %v1718, 0.0
        %v1850 = vmax.f32 %v1722, 0.0
        %v1851 = vmax.f32 %v1724, 0.0
        %v1852 = vmax.f32 %v1726, 0.0
        %v1853 = vmax.f32 %v1728, 0.0
        %v1854 = vmax.f32 %v1732, 0.0
        %v1855 = vmax.f32 %v1734, 0.0
        %v1856 = vmax.f32 %v1736, 0.0
        %v1857 = vmax.f32 %v1738, 0.0
        %v1858 = vmax.f32 %v1742, 0.0
        %v1859 = vmax.f32 %v1744, 0.0
        %v1860 = vmax.f32 %v1746, 0.0
        %v1861 = vmax.f32 %v1748, 0.0
        %v1862 = vmax.f32 %v1752, 0.0
        %v1863 = vmax.f32 %v1754, 0.0
        %v1864 = vmax.f32 %v1756, 0.0
        %v1865 = vmax.f32 %v1758, 0.0
        %v1866 = vmax.f32 %v1762, 0.0
        %v1867 = vmax.f32 %v1764, 0.0
        %v1868 = vmax.f32 %v1766, 0.0
        %v1869 = vmax.f32 %v1768, 0.0
        %v1870 = vmax.f32 %v1772, 0.0
        %v1871 = vmax.f32 %v1774, 0.0
        %v1872 = vmax.f32 %v1776, 0.0
        %v1873 = vmax.f32 %v1778, 0.0
        %v1874 = vmax.f32 %v1782, 0.0
        %v1875 = vmax.f32 %v1784, 0.0
        %v1876 = vmax.f32 %v1786, 0.0
        %v1877 = vmax.f32 %v1788, 0.0
        %v1878 = vmax.f32 %v1792, 0.0
        %v1879 = vmax.f32 %v1794, 0.0
        %v1880 = vmax.f32 %v1796, 0.0
        %v1881 = vmax.f32 %v1798, 0.0
        %v1882 = vmax.f32 %v1802, 0.0
        %v1883 = vmax.f32 %v1804, 0.0
        %v1884 = vmax.f32 %v1806, 0.0
        %v1885 = vmax.f32 %v1808, 0.0
        %v1886 = vmax.f32 %v1812, 0.0
        %v1887 = vmax.f32 %v1814, 0.0
        %v1888 = vmax.f32 %v1816, 0.0
        %v1889 = vmax.f32 %v1818, 0.0
        %v1890 = vmax.f32 %v1822, 0.0
        %v1891 = vmax.f32 %v1824, 0.0
        %v1892 = vmax.f32 %v1826, 0.0
        %v1893 = vmax.f32 %v1828, 0.0
        %v1894 = vadd.f32 %v1337, %v1830
        %v1895 = vadd.f32 %v1338, %v1831
        %v1896 = vadd.f32 %v1339, %v1832
        %v1897 = vadd.f32 %v1340, %v1833
        %v1898 = vadd.f32 %v1341, %v1834
        %v1899 = vadd.f32 %v1342, %v1835
        %v1900 = vadd.f32 %v1343, %v1836
        %v1901 = vadd.f32 %v1344, %v1837
        %v1902 = vadd.f32 %v1345, %v1838
        %v1903 = vadd.f32 %v1346, %v1839
        %v1904 = vadd.f32 %v1347, %v1840
        %v1905 = vadd.f32 %v1348, %v1841
        %v1906 = vadd.f32 %v1349, %v1842
        %v1907 = vadd.f32 %v1350, %v1843
        %v1908 = vadd.f32 %v1351, %v1844
        %v1909 = vadd.f32 %v1352, %v1845
        %v1910 = vadd.f32 %v1353, %v1846
        %v1911 = vadd.f32 %v1354, %v1847
        %v1912 = vadd.f32 %v1355, %v1848
        %v1913 = vadd.f32 %v1356, %v1849
        %v1914 = vadd.f32 %v1357, %v1850
        %v1915 = vadd.f32 %v1358, %v1851
        %v1916 = vadd.f32 %v1359, %v1852
        %v1917 = vadd.f32 %v1360, %v1853
        %v1918 = vadd.f32 %v1361, %v1854
        %v1919 = vadd.f32 %v1362, %v1855
        %v1920 = vadd.f32 %v1363, %v1856
        %v1921 = vadd.f32 %v1364, %v1857
        %v1922 = vadd.f32 %v1365, %v1858
        %v1923 = vadd.f32 %v1366, %v1859
        %v1924 = vadd.f32 %v1367, %v1860
        %v1925 = vadd.f32 %v1368, %v1861
        %v1926 = vadd.f32 %v1369, %v1862
        %v1927 = vadd.f32 %v1370, %v1863
        %v1928 = vadd.f32 %v1371, %v1864
        %v1929 = vadd.f32 %v1372, %v1865
        %v1930 = vadd.f32 %v1373, %v1866
        %v1931 = vadd.f32 %v1374, %v1867
        %v1932 = vadd.f32 %v1375, %v1868
        %v1933 = vadd.f32 %v1376, %v1869
        %v1934 = vadd.f32 %v1377, %v1870
        %v1935 = vadd.f32 %v1378, %v1871
        %v1936 = vadd.f32 %v1379, %v1872
        %v1937 = vadd.f32 %v1380, %v1873
        %v1938 = vadd.f32 %v1381, %v1874
        %v1939 = vadd.f32 %v1382, %v1875
        %v1940 = vadd.f32 %v1383, %v1876
        %v1941 = vadd.f32 %v1384, %v1877
        %v1942 = vadd.f32 %v1385, %v1878
        %v1943 = vadd.f32 %v1386, %v1879
        %v1944 = vadd.f32 %v1387, %v1880
        %v1945 = vadd.f32 %v1388, %v1881
        %v1946 = vadd.f32 %v1389, %v1882
        %v1947 = vadd.f32 %v1390, %v1883
        %v1948 = vadd.f32 %v1391, %v1884
        %v1949 = vadd.f32 %v1392, %v1885
        %v1950 = vadd.f32 %v1393, %v1886
        %v1951 = vadd.f32 %v1394, %v1887
        %v1952 = vadd.f32 %v1395, %v1888
        %v1953 = vadd.f32 %v1396, %v1889
        %v1954 = vadd.f32 %v1397, %v1890
        %v1955 = vadd.f32 %v1398, %v1891
        %v1956 = vadd.f32 %v1399, %v1892
        %v1957 = vadd.f32 %v1400, %v1893
        %v1958 = vmax.f32 %v1894, 0.0
        %v1959 = vmax.f32 %v1895, 0.0
        %v1960 = vmax.f32 %v1896, 0.0
        %v1961 = vmax.f32 %v1897, 0.0
        %v1962 = vmax.f32 %v1898, 0.0
        %v1963 = vmax.f32 %v1899, 0.0
        %v1964 = vmax.f32 %v1900, 0.0
        %v1965 = vmax.f32 %v1901, 0.0
        %v1966 = vmax.f32 %v1902, 0.0
        %v1967 = vmax.f32 %v1903, 0.0
        %v1968 = vmax.f32 %v1904, 0.0
        %v1969 = vmax.f32 %v1905, 0.0
        %v1970 = vmax.f32 %v1906, 0.0
        %v1971 = vmax.f32 %v1907, 0.0
        %v1972 = vmax.f32 %v1908, 0.0
        %v1973 = vmax.f32 %v1909, 0.0
        %v1974 = vmax.f32 %v1910, 0.0
        %v1975 = vmax.f32 %v1911, 0.0
        %v1976 = vmax.f32 %v1912, 0.0
        %v1977 = vmax.f32 %v1913, 0.0
        %v1978 = vmax.f32 %v1914, 0.0
        %v1979 = vmax.f32 %v1915, 0.0
        %v1980 = vmax.f32 %v1916, 0.0
        %v1981 = vmax.f32 %v1917, 0.0
        %v1982 = vmax.f32 %v1918, 0.0
        %v1983 = vmax.f32 %v1919, 0.0
        %v1984 = vmax.f32 %v1920, 0.0
        %v1985 = vmax.f32 %v1921, 0.0
        %v1986 = vmax.f32 %v1922, 0.0
        %v1987 = vmax.f32 %v1923, 0.0
        %v1988 = vmax.f32 %v1924, 0.0
        %v1989 = vmax.f32 %v1925, 0.0
        %v1990 = vmax.f32 %v1926, 0.0
        %v1991 = vmax.f32 %v1927, 0.0
        %v1992 = vmax.f32 %v1928, 0.0
        %v1993 = vmax.f32 %v1929, 0.0
        %v1994 = vmax.f32 %v1930, 0.0
        %v1995 = vmax.f32 %v1931, 0.0
        %v1996 = vmax.f32 %v1932, 0.0
        %v1997 = vmax.f32 %v1933, 0.0
        %v1998 = vmax.f32 %v1934, 0.0
        %v1999 = vmax.f32 %v1935, 0.0
        %v2000 = vmax.f32 %v1936, 0.0
        %v2001 = vmax.f32 %v1937, 0.0
        %v2002 = vmax.f32 %v1938, 0.0
        %v2003 = vmax.f32 %v1939, 0.0
        %v2004 = vmax.f32 %v1940, 0.0
        %v2005 = vmax.f32 %v1941, 0.0
        %v2006 = vmax.f32 %v1942, 0.0
        %v2007 = vmax.f32 %v1943, 0.0
        %v2008 = vmax.f32 %v1944, 0.0
        %v2009 = vmax.f32 %v1945, 0.0
        %v2010 = vmax.f32 %v1946, 0.0
        %v2011 = vmax.f32 %v1947, 0.0
        %v2012 = vmax.f32 %v1948, 0.0
        %v2013 = vmax.f32 %v1949, 0.0
        %v2014 = vmax.f32 %v1950, 0.0
        %v2015 = vmax.f32 %v1951, 0.0
        %v2016 = vmax.f32 %v1952, 0.0
        %v2017 = vmax.f32 %v1953, 0.0
        %v2018 = vmax.f32 %v1954, 0.0
        %v2019 = vmax.f32 %v1955, 0.0
        %v2020 = vmax.f32 %v1956, 0.0
        %v2021 = vmax.f32 %v1957, 0.0
        %v2022 = vpack.c.bf16 %v1960, %v1958
        %v2023 = vpack.c.bf16 %v1961, %v1959
        %v2024 = vpack.c.bf16 %v1964, %v1962
        %v2025 = vpack.c.bf16 %v1965, %v1963
        %v2026 = vpack.c.bf16 %v1968, %v1966
        %v2027 = vpack.c.bf16 %v1969, %v1967
        %v2028 = vpack.c.bf16 %v1972, %v1970
        %v2029 = vpack.c.bf16 %v1973, %v1971
        %v2030 = vpack.c.bf16 %v1976, %v1974
        %v2031 = vpack.c.bf16 %v1977, %v1975
        %v2032 = vpack.c.bf16 %v1980, %v1978
        %v2033 = vpack.c.bf16 %v1981, %v1979
        %v2034 = vpack.c.bf16 %v1984, %v1982
        %v2035 = vpack.c.bf16 %v1985, %v1983
        %v2036 = vpack.c.bf16 %v1988, %v1986
        %v2037 = vpack.c.bf16 %v1989, %v1987
        %v2038 = vpack.c.bf16 %v1992, %v1990
        %v2039 = vpack.c.bf16 %v1993, %v1991
        %v2040 = vpack.c.bf16 %v1996, %v1994
        %v2041 = vpack.c.bf16 %v1997, %v1995
        %v2042 = vpack.c.bf16 %v2000, %v1998
        %v2043 = vpack.c.bf16 %v2001, %v1999
        %v2044 = vpack.c.bf16 %v2004, %v2002
        %v2045 = vpack.c.bf16 %v2005, %v2003
        %v2046 = vpack.c.bf16 %v2008, %v2006
        %v2047 = vpack.c.bf16 %v2009, %v2007
        %v2048 = vpack.c.bf16 %v2012, %v2010
        %v2049 = vpack.c.bf16 %v2013, %v2011
        %v2050 = vpack.c.bf16 %v2016, %v2014
        %v2051 = vpack.c.bf16 %v2017, %v2015
        %v2052 = vpack.c.bf16 %v2020, %v2018
        %v2053 = vpack.c.bf16 %v2021, %v2019
        %v2054 = vld [vmem:[%s7] sm:$0xf]
        %v2055 = vld [vmem:[%s7 + $0x4] sm:$0xf]
        %v2056 = vld [vmem:[%s7 + $0x8] sm:$0xf]
        %v2057 = vld [vmem:[%s7 + $0xc] sm:$0xf]
        %v2058 = vld [vmem:[%s7 + $0x10] sm:$0xf]
        %v2059 = vld [vmem:[%s7 + $0x14] sm:$0xf]
        %v2060 = vld [vmem:[%s7 + $0x18] sm:$0xf]
        %v2061 = vld [vmem:[%s7 + $0x1c] sm:$0xf]
        %v2062 = vld [vmem:[%s7 + $0x20] sm:$0xf]
        %v2063 = vld [vmem:[%s7 + $0x24] sm:$0xf]
        %v2064 = vld [vmem:[%s7 + $0x28] sm:$0xf]
        %v2065 = vld [vmem:[%s7 + $0x2c] sm:$0xf]
        %v2066 = vld [vmem:[%s7 + $0x30] sm:$0xf]
        %v2067 = vld [vmem:[%s7 + $0x34] sm:$0xf]
        %v2068 = vld [vmem:[%s7 + $0x38] sm:$0xf]
        %v2069 = vld [vmem:[%s7 + $0x3c] sm:$0xf]
        %v2070 = vld [vmem:[%s7 + $0x40] sm:$0xf]
        %v2071 = vld [vmem:[%s7 + $0x44] sm:$0xf]
        %v2072 = vld [vmem:[%s7 + $0x48] sm:$0xf]
        %v2073 = vld [vmem:[%s7 + $0x4c] sm:$0xf]
        %v2074 = vld [vmem:[%s7 + $0x50] sm:$0xf]
        %v2075 = vld [vmem:[%s7 + $0x54] sm:$0xf]
        %v2076 = vld [vmem:[%s7 + $0x58] sm:$0xf]
        %v2077 = vld [vmem:[%s7 + $0x5c] sm:$0xf]
        %v2078 = vld [vmem:[%s7 + $0x60] sm:$0xf]
        %v2079 = vld [vmem:[%s7 + $0x64] sm:$0xf]
        %v2080 = vld [vmem:[%s7 + $0x68] sm:$0xf]
        %v2081 = vld [vmem:[%s7 + $0x6c] sm:$0xf]
        %v2082 = vld [vmem:[%s7 + $0x70] sm:$0xf]
        %v2083 = vld [vmem:[%s7 + $0x74] sm:$0xf]
        %v2084 = vld [vmem:[%s7 + $0x78] sm:$0xf]
        %v2085 = vld [vmem:[%s7 + $0x7c] sm:$0xf]
        %v2086 = vld [vmem:[%s8] sm:$0x1]
        %v2088 = vlaneseq
        %v2089 = vshrl.u32 %v2088, 7
        %v2090 = vsub.s32 0, %v2089
        %v2091 = vrot.slane %v2086, %v2090
        %v2125 = vunpack.c.l.b16 %v2054
        %v2126 = vunpack.c.l.b16 %v2055
        %v2127 = vunpack.c.l.b16 %v2056
        %v2128 = vunpack.c.l.b16 %v2057
        %v2129 = vunpack.c.l.b16 %v2058
        %v2130 = vunpack.c.l.b16 %v2059
        %v2131 = vunpack.c.l.b16 %v2060
        %v2132 = vunpack.c.l.b16 %v2061
        %v2133 = vunpack.c.l.b16 %v2062
        %v2134 = vunpack.c.l.b16 %v2063
        %v2135 = vunpack.c.l.b16 %v2064
        %v2136 = vunpack.c.l.b16 %v2065
        %v2137 = vunpack.c.l.b16 %v2066
        %v2138 = vunpack.c.l.b16 %v2067
        %v2139 = vunpack.c.l.b16 %v2068
        %v2140 = vunpack.c.l.b16 %v2069
        %v2141 = vunpack.c.l.b16 %v2070
        %v2142 = vunpack.c.l.b16 %v2071
        %v2143 = vunpack.c.l.b16 %v2072
        %v2144 = vunpack.c.l.b16 %v2073
        %v2145 = vunpack.c.l.b16 %v2074
        %v2146 = vunpack.c.l.b16 %v2075
        %v2147 = vunpack.c.l.b16 %v2076
        %v2148 = vunpack.c.l.b16 %v2077
        %v2149 = vunpack.c.l.b16 %v2078
        %v2150 = vunpack.c.l.b16 %v2079
        %v2151 = vunpack.c.l.b16 %v2080
        %v2152 = vunpack.c.l.b16 %v2081
        %v2153 = vunpack.c.l.b16 %v2082
        %v2154 = vunpack.c.l.b16 %v2083
        %v2155 = vunpack.c.l.b16 %v2084
        %v2156 = vunpack.c.l.b16 %v2085
        %v2157 = vpack.c.b16 %v2126, %v2125
        %v2158 = vpack.c.b16 %v2128, %v2127
        %v2159 = vpack.c.b16 %v2130, %v2129
        %v2160 = vpack.c.b16 %v2132, %v2131
        %v2161 = vpack.c.b16 %v2134, %v2133
        %v2162 = vpack.c.b16 %v2136, %v2135
        %v2163 = vpack.c.b16 %v2138, %v2137
        %v2164 = vpack.c.b16 %v2140, %v2139
        %v2165 = vpack.c.b16 %v2142, %v2141
        %v2166 = vpack.c.b16 %v2144, %v2143
        %v2167 = vpack.c.b16 %v2146, %v2145
        %v2168 = vpack.c.b16 %v2148, %v2147
        %v2169 = vpack.c.b16 %v2150, %v2149
        %v2170 = vpack.c.b16 %v2152, %v2151
        %v2171 = vpack.c.b16 %v2154, %v2153
        %v2172 = vpack.c.b16 %v2156, %v2155
        %2189 = vmatprep.subr.bf16.mxu0 0
        %2190 = vmatpush1.bf16.msra.mxu0 %v2157
        %2191 = vmatprep.subr.bf16.mxu0 0
        %2192 = vmatpush1.bf16.msra.mxu0 %v2158
        %2193 = vmatprep.subr.bf16.mxu0 0
        %2194 = vmatpush1.bf16.msra.mxu0 %v2159
        %2195 = vmatprep.subr.bf16.mxu0 0
        %2196 = vmatpush1.bf16.msra.mxu0 %v2160
        %2197 = vmatprep.subr.bf16.mxu0 0
        %2198 = vmatpush1.bf16.msra.mxu0 %v2161
        %2199 = vmatprep.subr.bf16.mxu0 0
        %2200 = vmatpush1.bf16.msra.mxu0 %v2162
        %2201 = vmatprep.subr.bf16.mxu0 0
        %2202 = vmatpush1.bf16.msra.mxu0 %v2163
        %2203 = vmatprep.subr.bf16.mxu0 0
        %2204 = vmatpush1.bf16.msra.mxu0 %v2164
        %2205 = vmatprep.subr.bf16.mxu0 0
        %2206 = vmatpush1.bf16.msra.mxu0 %v2165
        %2207 = vmatprep.subr.bf16.mxu0 0
        %2208 = vmatpush1.bf16.msra.mxu0 %v2166
        %2209 = vmatprep.subr.bf16.mxu0 0
        %2210 = vmatpush1.bf16.msra.mxu0 %v2167
        %2211 = vmatprep.subr.bf16.mxu0 0
        %2212 = vmatpush1.bf16.msra.mxu0 %v2168
        %2213 = vmatprep.subr.bf16.mxu0 0
        %2214 = vmatpush1.bf16.msra.mxu0 %v2169
        %2215 = vmatprep.subr.bf16.mxu0 0
        %2216 = vmatpush1.bf16.msra.mxu0 %v2170
        %2217 = vmatprep.subr.bf16.mxu0 0
        %2218 = vmatpush1.bf16.msra.mxu0 %v2171
        %2219 = vmatprep.subr.bf16.mxu0 0
        %2220 = vmatpush1.bf16.msra.mxu0 %v2172
        %2221 = vmatprep.mubr.bf16.mxu0 %v2023
        %2222 = vmatmul.mubr.bf16.gmra.mrb[0].mxu0 %v2022
        %v2223 = vpop.f32.mrb[0].mxu0
        %v2224 = vadd.f32 %v2091, %v2223
        %v2225 = vpop.f32.mrb[0].mxu0
        %v2226 = vpop.f32.mrb[0].mxu0
        %v2227 = vadd.f32 %v2091, %v2226
        %v2228 = vpop.f32.mrb[0].mxu0
        %2229 = vmatprep.mubr.bf16.mxu0 %v2025
        %2230 = vmatmul.mubr.bf16.gmra.mrb[0].mxu0 %v2024
        %v2231 = vpop.f32.mrb[0].mxu0
        %v2232 = vadd.f32 %v2091, %v2231
        %v2233 = vpop.f32.mrb[0].mxu0
        %v2234 = vpop.f32.mrb[0].mxu0
        %v2235 = vadd.f32 %v2091, %v2234
        %v2236 = vpop.f32.mrb[0].mxu0
        %2237 = vmatprep.mubr.bf16.mxu0 %v2027
        %2238 = vmatmul.mubr.bf16.gmra.mrb[0].mxu0 %v2026
        %v2239 = vpop.f32.mrb[0].mxu0
        %v2240 = vadd.f32 %v2091, %v2239
        %v2241 = vpop.f32.mrb[0].mxu0
        %v2242 = vpop.f32.mrb[0].mxu0
        %v2243 = vadd.f32 %v2091, %v2242
        %v2244 = vpop.f32.mrb[0].mxu0
        %2245 = vmatprep.mubr.bf16.mxu0 %v2029
        %2246 = vmatmul.mubr.bf16.gmra.mrb[0].mxu0 %v2028
        %v2247 = vpop.f32.mrb[0].mxu0
        %v2248 = vadd.f32 %v2091, %v2247
        %v2249 = vpop.f32.mrb[0].mxu0
        %v2250 = vpop.f32.mrb[0].mxu0
        %v2251 = vadd.f32 %v2091, %v2250
        %v2252 = vpop.f32.mrb[0].mxu0
        %2253 = vmatprep.mubr.bf16.mxu0 %v2031
        %2254 = vmatmul.mubr.bf16.gmra.mrb[0].mxu0 %v2030
        %v2255 = vpop.f32.mrb[0].mxu0
        %v2256 = vadd.f32 %v2091, %v2255
        %v2257 = vpop.f32.mrb[0].mxu0
        %v2258 = vpop.f32.mrb[0].mxu0
        %v2259 = vadd.f32 %v2091, %v2258
        %v2260 = vpop.f32.mrb[0].mxu0
        %2261 = vmatprep.mubr.bf16.mxu0 %v2033
        %2262 = vmatmul.mubr.bf16.gmra.mrb[0].mxu0 %v2032
        %v2263 = vpop.f32.mrb[0].mxu0
        %v2264 = vadd.f32 %v2091, %v2263
        %v2265 = vpop.f32.mrb[0].mxu0
        %v2266 = vpop.f32.mrb[0].mxu0
        %v2267 = vadd.f32 %v2091, %v2266
        %v2268 = vpop.f32.mrb[0].mxu0
        %2269 = vmatprep.mubr.bf16.mxu0 %v2035
        %2270 = vmatmul.mubr.bf16.gmra.mrb[0].mxu0 %v2034
        %v2271 = vpop.f32.mrb[0].mxu0
        %v2272 = vadd.f32 %v2091, %v2271
        %v2273 = vpop.f32.mrb[0].mxu0
        %v2274 = vpop.f32.mrb[0].mxu0
        %v2275 = vadd.f32 %v2091, %v2274
        %v2276 = vpop.f32.mrb[0].mxu0
        %2277 = vmatprep.mubr.bf16.mxu0 %v2037
        %2278 = vmatmul.mubr.bf16.gmra.mrb[0].mxu0 %v2036
        %v2279 = vpop.f32.mrb[0].mxu0
        %v2280 = vadd.f32 %v2091, %v2279
        %v2281 = vpop.f32.mrb[0].mxu0
        %v2282 = vpop.f32.mrb[0].mxu0
        %v2283 = vadd.f32 %v2091, %v2282
        %v2284 = vpop.f32.mrb[0].mxu0
        %2285 = vmatprep.mubr.bf16.mxu0 %v2039
        %2286 = vmatmul.mubr.bf16.gmra.mrb[0].mxu0 %v2038
        %v2287 = vpop.f32.mrb[0].mxu0
        %v2288 = vadd.f32 %v2091, %v2287
        %v2289 = vpop.f32.mrb[0].mxu0
        %v2290 = vpop.f32.mrb[0].mxu0
        %v2291 = vadd.f32 %v2091, %v2290
        %v2292 = vpop.f32.mrb[0].mxu0
        %2293 = vmatprep.mubr.bf16.mxu0 %v2041
        %2294 = vmatmul.mubr.bf16.gmra.mrb[0].mxu0 %v2040
        %v2295 = vpop.f32.mrb[0].mxu0
        %v2296 = vadd.f32 %v2091, %v2295
        %v2297 = vpop.f32.mrb[0].mxu0
        %v2298 = vpop.f32.mrb[0].mxu0
        %v2299 = vadd.f32 %v2091, %v2298
        %v2300 = vpop.f32.mrb[0].mxu0
        %2301 = vmatprep.mubr.bf16.mxu0 %v2043
        %2302 = vmatmul.mubr.bf16.gmra.mrb[0].mxu0 %v2042
        %v2303 = vpop.f32.mrb[0].mxu0
        %v2304 = vadd.f32 %v2091, %v2303
        %v2305 = vpop.f32.mrb[0].mxu0
        %v2306 = vpop.f32.mrb[0].mxu0
        %v2307 = vadd.f32 %v2091, %v2306
        %v2308 = vpop.f32.mrb[0].mxu0
        %2309 = vmatprep.mubr.bf16.mxu0 %v2045
        %2310 = vmatmul.mubr.bf16.gmra.mrb[0].mxu0 %v2044
        %v2311 = vpop.f32.mrb[0].mxu0
        %v2312 = vadd.f32 %v2091, %v2311
        %v2313 = vpop.f32.mrb[0].mxu0
        %v2314 = vpop.f32.mrb[0].mxu0
        %v2315 = vadd.f32 %v2091, %v2314
        %v2316 = vpop.f32.mrb[0].mxu0
        %2317 = vmatprep.mubr.bf16.mxu0 %v2047
        %2318 = vmatmul.mubr.bf16.gmra.mrb[0].mxu0 %v2046
        %v2319 = vpop.f32.mrb[0].mxu0
        %v2320 = vadd.f32 %v2091, %v2319
        %v2321 = vpop.f32.mrb[0].mxu0
        %v2322 = vpop.f32.mrb[0].mxu0
        %v2323 = vadd.f32 %v2091, %v2322
        %v2324 = vpop.f32.mrb[0].mxu0
        %2325 = vmatprep.mubr.bf16.mxu0 %v2049
        %2326 = vmatmul.mubr.bf16.gmra.mrb[0].mxu0 %v2048
        %v2327 = vpop.f32.mrb[0].mxu0
        %v2328 = vadd.f32 %v2091, %v2327
        %v2329 = vpop.f32.mrb[0].mxu0
        %v2330 = vpop.f32.mrb[0].mxu0
        %v2331 = vadd.f32 %v2091, %v2330
        %v2332 = vpop.f32.mrb[0].mxu0
        %2333 = vmatprep.mubr.bf16.mxu0 %v2051
        %2334 = vmatmul.mubr.bf16.gmra.mrb[0].mxu0 %v2050
        %v2335 = vpop.f32.mrb[0].mxu0
        %v2336 = vadd.f32 %v2091, %v2335
        %v2337 = vpop.f32.mrb[0].mxu0
        %v2338 = vpop.f32.mrb[0].mxu0
        %v2339 = vadd.f32 %v2091, %v2338
        %v2340 = vpop.f32.mrb[0].mxu0
        %2341 = vmatprep.mubr.bf16.mxu0 %v2053
        %2342 = vmatmul.mubr.bf16.gmra.mrb[0].mxu0 %v2052
        %v2343 = vpop.f32.mrb[0].mxu0
        %v2344 = vadd.f32 %v2091, %v2343
        %v2345 = vpop.f32.mrb[0].mxu0
        %v2346 = vpop.f32.mrb[0].mxu0
        %v2347 = vadd.f32 %v2091, %v2346
        %v2348 = vpop.f32.mrb[0].mxu0
        %2349 = vdwg.mxu0
        %v2350 = vpack.c.bf16 %v2227, %v2224
        %v2351 = vpack.c.bf16 %v2235, %v2232
        %v2352 = vpack.c.bf16 %v2243, %v2240
        %v2353 = vpack.c.bf16 %v2251, %v2248
        %v2354 = vpack.c.bf16 %v2259, %v2256
        %v2355 = vpack.c.bf16 %v2267, %v2264
        %v2356 = vpack.c.bf16 %v2275, %v2272
        %v2357 = vpack.c.bf16 %v2283, %v2280
        %v2358 = vpack.c.bf16 %v2291, %v2288
        %v2359 = vpack.c.bf16 %v2299, %v2296
        %v2360 = vpack.c.bf16 %v2307, %v2304
        %v2361 = vpack.c.bf16 %v2315, %v2312
        %v2362 = vpack.c.bf16 %v2323, %v2320
        %v2363 = vpack.c.bf16 %v2331, %v2328
        %v2364 = vpack.c.bf16 %v2339, %v2336
        %v2365 = vpack.c.bf16 %v2347, %v2344
        %v2382 = vunpack.c.l.b16 %v2350
        %v2383 = vunpack.c.h.b16 %v2350
        %v2384 = vunpack.c.l.b16 %v2351
        %v2385 = vunpack.c.h.b16 %v2351
        %v2386 = vunpack.c.l.b16 %v2352
        %v2387 = vunpack.c.h.b16 %v2352
        %v2388 = vunpack.c.l.b16 %v2353
        %v2389 = vunpack.c.h.b16 %v2353
        %v2390 = vunpack.c.l.b16 %v2354
        %v2391 = vunpack.c.h.b16 %v2354
        %v2392 = vunpack.c.l.b16 %v2355
        %v2393 = vunpack.c.h.b16 %v2355
        %v2394 = vunpack.c.l.b16 %v2356
        %v2395 = vunpack.c.h.b16 %v2356
        %v2396 = vunpack.c.l.b16 %v2357
        %v2397 = vunpack.c.h.b16 %v2357
        %v2398 = vunpack.c.l.b16 %v2358
        %v2399 = vunpack.c.h.b16 %v2358
        %v2400 = vunpack.c.l.b16 %v2359
        %v2401 = vunpack.c.h.b16 %v2359
        %v2402 = vunpack.c.l.b16 %v2360
        %v2403 = vunpack.c.h.b16 %v2360
        %v2404 = vunpack.c.l.b16 %v2361
        %v2405 = vunpack.c.h.b16 %v2361
        %v2406 = vunpack.c.l.b16 %v2362
        %v2407 = vunpack.c.h.b16 %v2362
        %v2408 = vunpack.c.l.b16 %v2363
        %v2409 = vunpack.c.h.b16 %v2363
        %v2410 = vunpack.c.l.b16 %v2364
        %v2411 = vunpack.c.h.b16 %v2364
        %v2412 = vunpack.c.l.b16 %v2365
        %v2413 = vunpack.c.h.b16 %v2365
        %v2414 = vpack.c.b16 %v2382, %v2382
        %v2415 = vpack.c.b16 %v2383, %v2383
        %v2416 = vpack.c.b16 %v2384, %v2384
        %v2417 = vpack.c.b16 %v2385, %v2385
        %v2418 = vpack.c.b16 %v2386, %v2386
        %v2419 = vpack.c.b16 %v2387, %v2387
        %v2420 = vpack.c.b16 %v2388, %v2388
        %v2421 = vpack.c.b16 %v2389, %v2389
        %v2422 = vpack.c.b16 %v2390, %v2390
        %v2423 = vpack.c.b16 %v2391, %v2391
        %v2424 = vpack.c.b16 %v2392, %v2392
        %v2425 = vpack.c.b16 %v2393, %v2393
        %v2426 = vpack.c.b16 %v2394, %v2394
        %v2427 = vpack.c.b16 %v2395, %v2395
        %v2428 = vpack.c.b16 %v2396, %v2396
        %v2429 = vpack.c.b16 %v2397, %v2397
        %v2430 = vpack.c.b16 %v2398, %v2398
        %v2431 = vpack.c.b16 %v2399, %v2399
        %v2432 = vpack.c.b16 %v2400, %v2400
        %v2433 = vpack.c.b16 %v2401, %v2401
        %v2434 = vpack.c.b16 %v2402, %v2402
        %v2435 = vpack.c.b16 %v2403, %v2403
        %v2436 = vpack.c.b16 %v2404, %v2404
        %v2437 = vpack.c.b16 %v2405, %v2405
        %v2438 = vpack.c.b16 %v2406, %v2406
        %v2439 = vpack.c.b16 %v2407, %v2407
        %v2440 = vpack.c.b16 %v2408, %v2408
        %v2441 = vpack.c.b16 %v2409, %v2409
        %v2442 = vpack.c.b16 %v2410, %v2410
        %v2443 = vpack.c.b16 %v2411, %v2411
        %v2444 = vpack.c.b16 %v2412, %v2412
        %v2445 = vpack.c.b16 %v2413, %v2413
        %2478 = vst [vmem:[%s353] sm:$0xf] %v2414
        %2479 = vst [vmem:[%s353 + $0x4] sm:$0xf] %v2415
        %2480 = vst [vmem:[%s353 + $0x8] sm:$0xf] %v2416
        %2481 = vst [vmem:[%s353 + $0xc] sm:$0xf] %v2417
        %2482 = vst [vmem:[%s353 + $0x10] sm:$0xf] %v2418
        %2483 = vst [vmem:[%s353 + $0x14] sm:$0xf] %v2419
        %2484 = vst [vmem:[%s353 + $0x18] sm:$0xf] %v2420
        %2485 = vst [vmem:[%s353 + $0x1c] sm:$0xf] %v2421
        %2486 = vst [vmem:[%s353 + $0x20] sm:$0xf] %v2422
        %2487 = vst [vmem:[%s353 + $0x24] sm:$0xf] %v2423
        %2488 = vst [vmem:[%s353 + $0x28] sm:$0xf] %v2424
        %2489 = vst [vmem:[%s353 + $0x2c] sm:$0xf] %v2425
        %2490 = vst [vmem:[%s353 + $0x30] sm:$0xf] %v2426
        %2491 = vst [vmem:[%s353 + $0x34] sm:$0xf] %v2427
        %2492 = vst [vmem:[%s353 + $0x38] sm:$0xf] %v2428
        %2493 = vst [vmem:[%s353 + $0x3c] sm:$0xf] %v2429
        %2494 = vst [vmem:[%s353 + $0x40] sm:$0xf] %v2430
        %2495 = vst [vmem:[%s353 + $0x44] sm:$0xf] %v2431
        %2496 = vst [vmem:[%s353 + $0x48] sm:$0xf] %v2432
        %2497 = vst [vmem:[%s353 + $0x4c] sm:$0xf] %v2433
        %2498 = vst [vmem:[%s353 + $0x50] sm:$0xf] %v2434
        %2499 = vst [vmem:[%s353 + $0x54] sm:$0xf] %v2435
        %2500 = vst [vmem:[%s353 + $0x58] sm:$0xf] %v2436
        %2501 = vst [vmem:[%s353 + $0x5c] sm:$0xf] %v2437
        %2502 = vst [vmem:[%s353 + $0x60] sm:$0xf] %v2438
        %2503 = vst [vmem:[%s353 + $0x64] sm:$0xf] %v2439
        %2504 = vst [vmem:[%s353 + $0x68] sm:$0xf] %v2440
        %2505 = vst [vmem:[%s353 + $0x6c] sm:$0xf] %v2441
        %2506 = vst [vmem:[%s353 + $0x70] sm:$0xf] %v2442
        %2507 = vst [vmem:[%s353 + $0x74] sm:$0xf] %v2443
        %2508 = vst [vmem:[%s353 + $0x78] sm:$0xf] %v2444
        %2509 = vst [vmem:[%s353 + $0x7c] sm:$0xf] %v2445
        %s2510 = sand.u32 %s226, 1
        %s2511 = scalar_lea.sflag [#allocation4], %s2510
        %s2512 = sand.u32 %s226, 1
        %s2513 = smul.addr %s2512, 128
        %s2514 = scalar_lea.vmem [#allocation5], %s2513
        // Predicated region
        $region61: #{tpu_custom_call.1} parent=55 // pred_check
          %p2515 = pneg %p236
        $region62: #{tpu_custom_call.1} parent=55 // pred_check_branch
          %2517 = sbr.rel (%p2515) target = $region64
        $region63: #{tpu_custom_call.1} parent=55 // pred_region
          %s2518 = smul.u32 32, %s24
          %s2519 = ssub.s32 63, %s2518
          %p2520 = scmp.lt.s32.totalorder %s2519, 32
          %s2521 = scalar_select %p2520, %s2519, 32
          %s2522 = smul.u32 64, %s2521
          %s2524 = ssub.s32 2048, %s2522
          %2525 = vsyncadd %s2511, %s2524
          %p2526 = scmp.ne.s32.totalorder 0, %s2522
          %s2527 = smul.addr %s2518, 64
          %s2528 = scalar_lea.hbm %s9, %s2527
          %s2529 = smul.u32 4, %s2521
          %s2530 = sshll.u32 %s2514, 4
          %s2531 = int_to_ptr.vmem [resolvable:$true] %s2530
          %s2532 = sshll.u32 %s2529, 4
          %2536 = dma.vmem_to_hbm [thread:$0]  (%p2526), %s2531, %s2532, %s2528, %s2511, 64, 64, 4
        $region64: #{tpu_custom_call.1} parent=55 // pred_fallthru
          _
      $region56: #{tpu_custom_call.1} parent=5 // pred_fallthru
        _
      %p2537 = scmp.le.s32.totalorder 2, %s19
      // Predicated region
      $region65: #{tpu_custom_call.1} parent=5 // pred_check
        %p2538 = pneg %p2537
      $region66: #{tpu_custom_call.1} parent=5 // pred_check_branch
        %2540 = sbr.rel (%p2538) target = $region68
      $region67: #{tpu_custom_call.1} parent=5 // pred_region
        %s2541 = ssub.s32 %s19, 2
        // Predicated region
        $region69: #{tpu_custom_call.1} parent=67 // pred_check
          %p2542 = pneg %p242
        $region70: #{tpu_custom_call.1} parent=67 // pred_check_branch
          %2544 = sbr.rel (%p2542) target = $region72
        $region71: #{tpu_custom_call.1} parent=67 // pred_region
          %s2545 = sand.u32 %s227, 1
          %s2546 = scalar_lea.sflag [#allocation4], %s2545
          %s2547 = sand.u32 %s227, 1
          %s2548 = smul.addr %s2547, 128
          %s2549 = scalar_lea.vmem [#allocation5], %s2548
          %2550 = dma.done %s2546, 2048
        $region72: #{tpu_custom_call.1} parent=67 // pred_fallthru
          _
      $region68: #{tpu_custom_call.1} parent=5 // pred_fallthru
        _
    $region6: #{tpu_custom_call.1} parent=1 // loop_footer
      %s23 = sadd.s32 1, %s19
    $region7: #{tpu_custom_call.1} parent=1 // loop_footer_branch
      %18 = sbr.rel target = $region3
    $region8: #{tpu_custom_call.1} parent=1 // loop_exit
      _
    %2551 = vsyncpa [#allocation3], 1
    %s2552 = scalar_lea.sflag [#allocation3], 1
    %2553 = vsyncpa %s2552, 1
    %2554 = vsyncpa [#allocation4], 1
    %s2555 = scalar_lea.sflag [#allocation4], 1
    %2556 = vsyncpa %s2555, 1

// kernel: tpu_custom_call.1
$region0: #{tpu_custom_call.1}
  #allocation0 [shape = 'u32[]', space=smem, size = 0x4, offset = 0x4, fixed_abs, tag = 'smem constant byte address 0x4 - core index']
  #allocation1 [shape = 'u32[144,128]{1,0:T(1,128)}', space=vmem, size = 0x12000, scoped, tag = 'internal scratch']
  %s0 = inlined_call_operand.vmem [shape: f32[500,32], index: 0, kind: input, shape index: {}]
  %s1 = inlined_call_operand.hbm [shape: f32[32,256], index: 1, kind: input, shape index: {}]
  %s2 = inlined_call_operand.vmem [shape: f32[1,256], index: 2, kind: input, shape index: {}]
  %s3 = inlined_call_operand.vmem [shape: bf16[256,256], index: 3, kind: input, shape index: {}]
  %s4 = inlined_call_operand.vmem [shape: f32[1,256], index: 4, kind: input, shape index: {}]
  %s5 = inlined_call_operand.vmem [shape: bf16[256,256], index: 5, kind: input, shape index: {}]
  %s6 = inlined_call_operand.vmem [shape: f32[1,256], index: 6, kind: input, shape index: {}]
  %s7 = inlined_call_operand.vmem [shape: bf16[256,128], index: 7, kind: input, shape index: {}]
  %s8 = inlined_call_operand.vmem [shape: f32[1,128], index: 8, kind: input, shape index: {}]
  %s9 = inlined_call_operand.hbm [shape: bf16[500,128], index: 9, kind: output, shape index: {}]
  %s10 = sld [smem:[#allocation0]]
  $region73: #{tpu_custom_call.1} parent=0
    _
  %s12 = ssub.s32 1, %s10
  %s13 = scalar_select 0, %s12, %s10
  $region1: #{tpu_custom_call.1} parent=0
    #allocation2 [shape = 'u8[32768]{0}', space=vmem, size = 0x8000, scoped, tag = 'input window, operand 1, single buffered']
    #allocation3 [shape = 's32[2]{0}', space=sflag, size = 0x8, scoped, tag = 'scoped memory for tpu_custom_call.1']
    #allocation4 [shape = 's32[2]{0}', space=sflag, size = 0x8, scoped, tag = 'scoped memory for tpu_custom_call.1']
    #allocation5 [shape = 'u8[131072]{0}', space=vmem, size = 0x20000, scoped, tag = 'output window, operand 0']
    %14 = vsyncpa [#allocation3], 0
    %15 = vsyncpa [#allocation4], 0
    %s16 = scalar_lea.sflag [#allocation4], 1
    %17 = vsyncpa %s16, 0
    loop: start=0, step=1, limit=4
    $region2: #{tpu_custom_call.1} parent=1 // loop_pre_header
      _
    $region3: #{tpu_custom_call.1} parent=1 // loop_header
      %s19 = sphi 0, %s23
      %p20 = scmp.ge.s32.totalorder %s19, 4
      %s29 = sphi 0, %s31
      %s32 = sphi 0, %s29
      %s33 = sphi 0, %s32
      %s49 = sphi 0, %s33
      %s53 = sphi 0, %s53
      %s55 = sphi 0, %s53
      %s56 = sphi 0, %s55
      %s70 = sphi 0, %s56
      %s74 = sphi 0, %s74
      %s76 = sphi 0, %s74
      %s77 = sphi 0, %s76
      %s91 = sphi 0, %s77
      %s95 = sphi 0, %s95
      %s97 = sphi 0, %s95
      %s98 = sphi 0, %s97
      %s112 = sphi 0, %s98
      %s116 = sphi 0, %s116
      %s118 = sphi 0, %s116
      %s119 = sphi 0, %s118
      %s133 = sphi 0, %s119
      %s137 = sphi 0, %s137
      %s139 = sphi 0, %s137
      %s140 = sphi 0, %s139
      %s154 = sphi 0, %s140
      %s158 = sphi 0, %s158
      %s160 = sphi 0, %s158
      %s161 = sphi 0, %s160
      %s175 = sphi 0, %s161
      %s179 = sphi 0, %s179
      %s181 = sphi 0, %s179
      %s182 = sphi 0, %s181
      %s196 = sphi 0, %s182
      %s200 = sphi 0, %s200
      %s202 = sphi 0, %s200
      %s203 = sphi 0, %s202
      %s217 = sphi 0, %s203
      %s223 = sphi 0, %s225
      %s226 = sphi 0, %s223
      %s227 = sphi 0, %s226
      %s243 = sphi 0, %s227
    $region4: #{tpu_custom_call.1} parent=1 // loop_header_branch
      %22 = sbr.rel (%p20) target = $region8
    $region5: #{tpu_custom_call.1} parent=1 // loop_body
      %s24 = ssub.s32 %s19, 1
      %s25 = ssub.s32 %s19, 2
      %s26 = sadd.s32 %s19, 1
      %s27 = ssub.s32 %s19, %s26
      %p28 = scmp.eq.s32.totalorder %s27, 0
      %s30 = sadd.s32 %s29, 1
      %s31 = scalar_select %p28, %s29, %s30
      %p34 = pneg %p28
      %p35 = scmp.eq.s32.totalorder %s19, 1
      %p36 = por %p34, %p35
      %p37 = scmp.ne.s32.totalorder %s29, %s32
      %p38 = scmp.eq.s32.totalorder %s19, 0
      %p39 = por %p37, %p38
      %p40 = scmp.ne.s32.totalorder %s29, %s32
      %p41 = scmp.eq.s32.totalorder %s24, 1
      %p42 = por %p40, %p41
      %p43 = scmp.ne.s32.totalorder %s32, %s33
      %p44 = scmp.eq.s32.totalorder %s24, 0
      %p45 = por %p43, %p44
      %p46 = scmp.ne.s32.totalorder %s32, %s33
      %p47 = scmp.eq.s32.totalorder %s25, 1
      %p48 = por %p46, %p47
      %p50 = scmp.ne.s32.totalorder %s33, %s49
      %p51 = scmp.eq.s32.totalorder %s25, 0
      %p52 = por %p50, %p51
      %s54 = sadd.s32 %s53, 1
      %p57 = scmp.eq.s32.totalorder %s19, 1
      %p58 = scmp.ne.s32.totalorder %s53, %s55
      %p59 = scmp.eq.s32.totalorder %s19, 0
      %p60 = por %p58, %p59
      %p61 = scmp.ne.s32.totalorder %s53, %s55
      %p62 = scmp.eq.s32.totalorder %s24, 1
      %p63 = por %p61, %p62
      %p64 = scmp.ne.s32.totalorder %s55, %s56
      %p65 = scmp.eq.s32.totalorder %s24, 0
      %p66 = por %p64, %p65
      %p67 = scmp.ne.s32.totalorder %s55, %s56
      %p68 = scmp.eq.s32.totalorder %s25, 1
      %p69 = por %p67, %p68
      %p71 = scmp.ne.s32.totalorder %s56, %s70
      %p72 = scmp.eq.s32.totalorder %s25, 0
      %p73 = por %p71, %p72
      %s75 = sadd.s32 %s74, 1
      %p78 = scmp.eq.s32.totalorder %s19, 1
      %p79 = scmp.ne.s32.totalorder %s74, %s76
      %p80 = scmp.eq.s32.totalorder %s19, 0
      %p81 = por %p79, %p80
      %p82 = scmp.ne.s32.totalorder %s74, %s76
      %p83 = scmp.eq.s32.totalorder %s24, 1
      %p84 = por %p82, %p83
      %p85 = scmp.ne.s32.totalorder %s76, %s77
      %p86 = scmp.eq.s32.totalorder %s24, 0
      %p87 = por %p85, %p86
      %p88 = scmp.ne.s32.totalorder %s76, %s77
      %p89 = scmp.eq.s32.totalorder %s25, 1
      %p90 = por %p88, %p89
      %p92 = scmp.ne.s32.totalorder %s77, %s91
      %p93 = scmp.eq.s32.totalorder %s25, 0
      %p94 = por %p92, %p93
      %s96 = sadd.s32 %s95, 1
      %p99 = scmp.eq.s32.totalorder %s19, 1
      %p100 = scmp.ne.s32.totalorder %s95, %s97
      %p101 = scmp.eq.s32.totalorder %s19, 0
      %p102 = por %p100, %p101
      %p103 = scmp.ne.s32.totalorder %s95, %s97
      %p104 = scmp.eq.s32.totalorder %s24, 1
      %p105 = por %p103, %p104
      %p106 = scmp.ne.s32.totalorder %s97, %s98
      %p107 = scmp.eq.s32.totalorder %s24, 0
      %p108 = por %p106, %p107
      %p109 = scmp.ne.s32.totalorder %s97, %s98
      %p110 = scmp.eq.s32.totalorder %s25, 1
      %p111 = por %p109, %p110
      %p113 = scmp.ne.s32.totalorder %s98, %s112
      %p114 = scmp.eq.s32.totalorder %s25, 0
      %p115 = por %p113, %p114
      %s117 = sadd.s32 %s116, 1
      %p120 = scmp.eq.s32.totalorder %s19, 1
      %p121 = scmp.ne.s32.totalorder %s116, %s118
      %p122 = scmp.eq.s32.totalorder %s19, 0
      %p123 = por %p121, %p122
      %p124 = scmp.ne.s32.totalorder %s116, %s118
      %p125 = scmp.eq.s32.totalorder %s24, 1
      %p126 = por %p124, %p125
      %p127 = scmp.ne.s32.totalorder %s118, %s119
      %p128 = scmp.eq.s32.totalorder %s24, 0
      %p129 = por %p127, %p128
      %p130 = scmp.ne.s32.totalorder %s118, %s119
      %p131 = scmp.eq.s32.totalorder %s25, 1
      %p132 = por %p130, %p131
      %p134 = scmp.ne.s32.totalorder %s119, %s133
      %p135 = scmp.eq.s32.totalorder %s25, 0
      %p136 = por %p134, %p135
      %s138 = sadd.s32 %s137, 1
      %p141 = scmp.eq.s32.totalorder %s19, 1
      %p142 = scmp.ne.s32.totalorder %s137, %s139
      %p143 = scmp.eq.s32.totalorder %s19, 0
      %p144 = por %p142, %p143
      %p145 = scmp.ne.s32.totalorder %s137, %s139
      %p146 = scmp.eq.s32.totalorder %s24, 1
      %p147 = por %p145, %p146
      %p148 = scmp.ne.s32.totalorder %s139, %s140
      %p149 = scmp.eq.s32.totalorder %s24, 0
      %p150 = por %p148, %p149
      %p151 = scmp.ne.s32.totalorder %s139, %s140
      %p152 = scmp.eq.s32.totalorder %s25, 1
      %p153 = por %p151, %p152
      %p155 = scmp.ne.s32.totalorder %s140, %s154
      %p156 = scmp.eq.s32.totalorder %s25, 0
      %p157 = por %p155, %p156
      %s159 = sadd.s32 %s158, 1
      %p162 = scmp.eq.s32.totalorder %s19, 1
      %p163 = scmp.ne.s32.totalorder %s158, %s160
      %p164 = scmp.eq.s32.totalorder %s19, 0
      %p165 = por %p163, %p164
      %p166 = scmp.ne.s32.totalorder %s158, %s160
      %p167 = scmp.eq.s32.totalorder %s24, 1
      %p168 = por %p166, %p167
      %p169 = scmp.ne.s32.totalorder %s160, %s161
      %p170 = scmp.eq.s32.totalorder %s24, 0
      %p171 = por %p169, %p170
      %p172 = scmp.ne.s32.totalorder %s160, %s161
      %p173 = scmp.eq.s32.totalorder %s25, 1
      %p174 = por %p172, %p173
      %p176 = scmp.ne.s32.totalorder %s161, %s175
      %p177 = scmp.eq.s32.totalorder %s25, 0
      %p178 = por %p176, %p177
      %s180 = sadd.s32 %s179, 1
      %p183 = scmp.eq.s32.totalorder %s19, 1
      %p184 = scmp.ne.s32.totalorder %s179, %s181
      %p185 = scmp.eq.s32.totalorder %s19, 0
      %p186 = por %p184, %p185
      %p187 = scmp.ne.s32.totalorder %s179, %s181
      %p188 = scmp.eq.s32.totalorder %s24, 1
      %p189 = por %p187, %p188
      %p190 = scmp.ne.s32.totalorder %s181, %s182
      %p191 = scmp.eq.s32.totalorder %s24, 0
      %p192 = por %p190, %p191
      %p193 = scmp.ne.s32.totalorder %s181, %s182
      %p194 = scmp.eq.s32.totalorder %s25, 1
      %p195 = por %p193, %p194
      %p197 = scmp.ne.s32.totalorder %s182, %s196
      %p198 = scmp.eq.s32.totalorder %s25, 0
      %p199 = por %p197, %p198
      %s201 = sadd.s32 %s200, 1
      %p204 = scmp.eq.s32.totalorder %s19, 1
      %p205 = scmp.ne.s32.totalorder %s200, %s202
      %p206 = scmp.eq.s32.totalorder %s19, 0
      %p207 = por %p205, %p206
      %p208 = scmp.ne.s32.totalorder %s200, %s202
      %p209 = scmp.eq.s32.totalorder %s24, 1
      %p210 = por %p208, %p209
      %p211 = scmp.ne.s32.totalorder %s202, %s203
      %p212 = scmp.eq.s32.totalorder %s24, 0
      %p213 = por %p211, %p212
      %p214 = scmp.ne.s32.totalorder %s202, %s203
      %p215 = scmp.eq.s32.totalorder %s25, 1
      %p216 = por %p214, %p215
      %p218 = scmp.ne.s32.totalorder %s203, %s217
      %p219 = scmp.eq.s32.totalorder %s25, 0
      %p220 = por %p218, %p219
      %s221 = ssub.s32 %s19, %s26
      %p222 = scmp.eq.s32.totalorder %s221, 0
      %s224 = sadd.s32 %s223, 1
      %s225 = scalar_select %p222, %s223, %s224
      %p228 = pneg %p222
      %p229 = scmp.eq.s32.totalorder %s19, 1
      %p230 = por %p228, %p229
      %p231 = scmp.ne.s32.totalorder %s223, %s226
      %p232 = scmp.eq.s32.totalorder %s19, 0
      %p233 = por %p231, %p232
      %p234 = scmp.ne.s32.totalorder %s223, %s226
      %p235 = scmp.eq.s32.totalorder %s24, 1
      %p236 = por %p234, %p235
      %p237 = scmp.ne.s32.totalorder %s226, %s227
      %p238 = scmp.eq.s32.totalorder %s24, 0
      %p239 = por %p237, %p238
      %p240 = scmp.ne.s32.totalorder %s226, %s227
      %p241 = scmp.eq.s32.totalorder %s25, 1
      %p242 = por %p240, %p241
      %p244 = scmp.ne.s32.totalorder %s227, %s243
      %p245 = scmp.eq.s32.totalorder %s25, 0
      %p246 = por %p244, %p245
      %p247 = scmp.le.s32.totalorder 1, %s19
      %p248 = scmp.lt.s32.totalorder %s19, 3
      %p249 = pnand %p247, %p248
      %p250 = pneg %p249
      // Predicated region
      $region9: #{tpu_custom_call.1} parent=5 // pred_check
        _
      $region10: #{tpu_custom_call.1} parent=5 // pred_check_branch
        %252 = sbr.rel (%p249) target = $region12
      $region11: #{tpu_custom_call.1} parent=5 // pred_region
        %s253 = ssub.s32 %s19, 1
        // Predicated region
        $region13: #{tpu_custom_call.1} parent=11 // pred_check
          %p254 = pneg %p66
        $region14: #{tpu_custom_call.1} parent=11 // pred_check_branch
          %256 = sbr.rel (%p254) target = $region16
        $region15: #{tpu_custom_call.1} parent=11 // pred_region
          %s258 = ssub.s32 1024, 1024
          %259 = vsyncadd [#allocation3], %s258
          %s260 = sshll.u32 [#allocation2], 4
          %s261 = int_to_ptr.vmem [resolvable:$true] %s260
          %266 = dma.hbm_to_vmem [thread:$0]  %s1, 1024, %s261, [#allocation3], 256, 256, 16
        $region16: #{tpu_custom_call.1} parent=11 // pred_fallthru
          _
        // Predicated region
        $region17: #{tpu_custom_call.1} parent=11 // pred_check
          %p267 = pneg %p87
        $region18: #{tpu_custom_call.1} parent=11 // pred_check_branch
          %269 = sbr.rel (%p267) target = $region20
        $region19: #{tpu_custom_call.1} parent=11 // pred_region
          _
        $region20: #{tpu_custom_call.1} parent=11 // pred_fallthru
          _
        // Predicated region
        $region21: #{tpu_custom_call.1} parent=11 // pred_check
          %p270 = pneg %p108
        $region22: #{tpu_custom_call.1} parent=11 // pred_check_branch
          %272 = sbr.rel (%p270) target = $region24
        $region23: #{tpu_custom_call.1} parent=11 // pred_region
          _
        $region24: #{tpu_custom_call.1} parent=11 // pred_fallthru
          _
        // Predicated region
        $region25: #{tpu_custom_call.1} parent=11 // pred_check
          %p273 = pneg %p129
        $region26: #{tpu_custom_call.1} parent=11 // pred_check_branch
          %275 = sbr.rel (%p273) target = $region28
        $region27: #{tpu_custom_call.1} parent=11 // pred_region
          _
        $region28: #{tpu_custom_call.1} parent=11 // pred_fallthru
          _
        // Predicated region
        $region29: #{tpu_custom_call.1} parent=11 // pred_check
          %p276 = pneg %p150
        $region30: #{tpu_custom_call.1} parent=11 // pred_check_branch
          %278 = sbr.rel (%p276) target = $region32
        $region31: #{tpu_custom_call.1} parent=11 // pred_region
          _
        $region32: #{tpu_custom_call.1} parent=11 // pred_fallthru
          _
        // Predicated region
        $region33: #{tpu_custom_call.1} parent=11 // pred_check
          %p279 = pneg %p171
        $region34: #{tpu_custom_call.1} parent=11 // pred_check_branch
          %281 = sbr.rel (%p279) target = $region36
        $region35: #{tpu_custom_call.1} parent=11 // pred_region
          _
        $region36: #{tpu_custom_call.1} parent=11 // pred_fallthru
          _
        // Predicated region
        $region37: #{tpu_custom_call.1} parent=11 // pred_check
          %p282 = pneg %p192
        $region38: #{tpu_custom_call.1} parent=11 // pred_check_branch
          %284 = sbr.rel (%p282) target = $region40
        $region39: #{tpu_custom_call.1} parent=11 // pred_region
          _
        $region40: #{tpu_custom_call.1} parent=11 // pred_fallthru
          _
        // Predicated region
        $region41: #{tpu_custom_call.1} parent=11 // pred_check
          %p285 = pneg %p213
        $region42: #{tpu_custom_call.1} parent=11 // pred_check_branch
          %287 = sbr.rel (%p285) target = $region44
        $region43: #{tpu_custom_call.1} parent=11 // pred_region
          _
        $region44: #{tpu_custom_call.1} parent=11 // pred_fallthru
          _
      $region12: #{tpu_custom_call.1} parent=5 // pred_fallthru
        _
      %p288 = scmp.lt.s32.totalorder %s19, 2
      // Predicated region
      $region45: #{tpu_custom_call.1} parent=5 // pred_check
        %p289 = pneg %p288
      $region46: #{tpu_custom_call.1} parent=5 // pred_check_branch
        %291 = sbr.rel (%p289) target = $region48
      $region47: #{tpu_custom_call.1} parent=5 // pred_region
        // Predicated region
        $region49: #{tpu_custom_call.1} parent=47 // pred_check
          %p292 = pneg %p39
        $region50: #{tpu_custom_call.1} parent=47 // pred_check_branch
          %294 = sbr.rel (%p292) target = $region52
        $region51: #{tpu_custom_call.1} parent=47 // pred_region
          %s295 = smul.u32 32, %s19
          %s296 = ssub.s32 63, %s295
          %p297 = scmp.lt.s32.totalorder %s296, 32
          %s298 = scalar_select %p297, %s296, 32
          %s299 = smul.u32 128, %s298
          %p300 = scmp.lt.s32.totalorder %s295, 62
          %s301 = scalar_select %p300, %s295, 62
          %s302 = smul.addr %s301, 8
          %s303 = scalar_lea.vmem %s0, %s302
          %s304 = smul.u32 32, %s19
          %s305 = ssub.s32 63, %s304
          %p306 = scmp.lt.s32.totalorder %s305, 32
          %s307 = scalar_select %p306, %s305, 32
          %s308 = smul.u32 128, %s307
        $region52: #{tpu_custom_call.1} parent=47 // pred_fallthru
          _
      $region48: #{tpu_custom_call.1} parent=5 // pred_fallthru
        _
      %p309 = scmp.le.s32.totalorder 1, %s19
      %p310 = scmp.lt.s32.totalorder %s19, 3
      %p311 = pnand %p309, %p310
      %p312 = pneg %p311
      // Predicated region
      $region53: #{tpu_custom_call.1} parent=5 // pred_check
        _
      $region54: #{tpu_custom_call.1} parent=5 // pred_check_branch
        %314 = sbr.rel (%p311) target = $region56
      $region55: #{tpu_custom_call.1} parent=5 // pred_region
        %s315 = ssub.s32 %s19, 1
        // Predicated region
        $region57: #{tpu_custom_call.1} parent=55 // pred_check
          %p316 = pneg %p66
        $region58: #{tpu_custom_call.1} parent=55 // pred_check_branch
          %318 = sbr.rel (%p316) target = $region60
        $region59: #{tpu_custom_call.1} parent=55 // pred_region
          %319 = dma.done [#allocation3], 1024
        $region60: #{tpu_custom_call.1} parent=55 // pred_fallthru
          _
        %s320 = smul.u32 32, %s24
        %s321 = ssub.s32 63, %s320
        %p322 = scmp.lt.s32.totalorder %s321, 32
        %s323 = scalar_select %p322, %s321, 32
        %s324 = smul.u32 128, %s323
        %p325 = scmp.lt.s32.totalorder %s320, 62
        %s326 = scalar_select %p325, %s320, 62
        %s327 = smul.addr %s326, 8
        %s328 = scalar_lea.vmem %s0, %s327
        %p329 = pneg %p45
        %p330 = pneg %p42
        %p331 = pneg %p66
        %p332 = pneg %p63
        %p333 = pneg %p87
        %p334 = pneg %p84
        %p335 = pneg %p108
        %p336 = pneg %p105
        %p337 = pneg %p129
        %p338 = pneg %p126
        %p339 = pneg %p150
        %p340 = pneg %p147
        %p341 = pneg %p171
        %p342 = pneg %p168
        %p343 = pneg %p192
        %p344 = pneg %p189
        %p345 = pneg %p213
        %p346 = pneg %p210
        %p347 = pneg %p239
        %p348 = pneg %p236
        %s349 = sand.u32 %s226, 1
        %s350 = scalar_lea.sflag [#allocation4], %s349
        %s351 = sand.u32 %s226, 1
        %s352 = smul.addr %s351, 128
        %s353 = scalar_lea.vmem [#allocation5], %s352
        %s354 = smul.u32 32, %s24
        %s355 = ssub.s32 63, %s354
        %p356 = scmp.lt.s32.totalorder %s355, 32
        %s357 = scalar_select %p356, %s355, 32
        %s358 = smul.u32 128, %s357
        %p359 = scmp.lt.s32.totalorder %s354, 62
        %s360 = scalar_select %p359, %s354, 62
        %s361 = smul.addr %s360, 8
        %s362 = scalar_lea.vmem %s0, %s361
        %s363 = smul.u32 32, %s24
        %s364 = ssub.s32 63, %s363
        %p365 = scmp.lt.s32.totalorder %s364, 32
        %s366 = scalar_select %p365, %s364, 32
        %s367 = smul.u32 128, %s366
        %s368 = smul.u32 32, %s24
        %s369 = ssub.s32 63, %s368
        %p370 = scmp.lt.s32.totalorder %s369, 32
        %s371 = scalar_select %p370, %s369, 32
        %s372 = smul.u32 64, %s371
        %v374 = vld [vmem:[%s362] sm:$0xff]
        %v375 = vld [vmem:[%s362 + $0x8] sm:$0xff]
        %v376 = vld [vmem:[%s362 + $0x10] sm:$0xff]
        %v377 = vld [vmem:[%s362 + $0x18] sm:$0xff]
        %v378 = vld [vmem:[%s362 + $0x20] sm:$0xff]
        %v379 = vld [vmem:[%s362 + $0x28] sm:$0xff]
        %v380 = vld [vmem:[%s362 + $0x30] sm:$0xff]
        %v381 = vld [vmem:[%s362 + $0x38] sm:$0xff]
        %v382 = vld [vmem:[%s362 + $0x40] sm:$0xff]
        %v383 = vld [vmem:[%s362 + $0x48] sm:$0xff]
        %v384 = vld [vmem:[%s362 + $0x50] sm:$0xff]
        %v385 = vld [vmem:[%s362 + $0x58] sm:$0xff]
        %v386 = vld [vmem:[%s362 + $0x60] sm:$0xff]
        %v387 = vld [vmem:[%s362 + $0x68] sm:$0xff]
        %v388 = vld [vmem:[%s362 + $0x70] sm:$0xff]
        %v389 = vld [vmem:[%s362 + $0x78] sm:$0xff]
        %v390 = vld [vmem:[%s362 + $0x80] sm:$0xff]
        %v391 = vld [vmem:[%s362 + $0x88] sm:$0xff]
        %v392 = vld [vmem:[%s362 + $0x90] sm:$0xff]
        %v393 = vld [vmem:[%s362 + $0x98] sm:$0xff]
        %v394 = vld [vmem:[%s362 + $0xa0] sm:$0xff]
        %v395 = vld [vmem:[%s362 + $0xa8] sm:$0xff]
        %v396 = vld [vmem:[%s362 + $0xb0] sm:$0xff]
        %v397 = vld [vmem:[%s362 + $0xb8] sm:$0xff]
        %v398 = vld [vmem:[%s362 + $0xc0] sm:$0xff]
        %v399 = vld [vmem:[%s362 + $0xc8] sm:$0xff]
        %v400 = vld [vmem:[%s362 + $0xd0] sm:$0xff]
        %v401 = vld [vmem:[%s362 + $0xd8] sm:$0xff]
        %v402 = vld [vmem:[%s362 + $0xe0] sm:$0xff]
        %v403 = vld [vmem:[%s362 + $0xe8] sm:$0xff]
        %v404 = vld [vmem:[%s362 + $0xf0] sm:$0xff]
        %v405 = vld [vmem:[%s362 + $0xf8] sm:$0xff]
        %v406 = vld [vmem:[#allocation2] sm:$0xff]
        %v407 = vld [vmem:[#allocation2 + $0x8] sm:$0xff]
        %v408 = vld [vmem:[#allocation2 + $0x10] sm:$0xff]
        %v409 = vld [vmem:[#allocation2 + $0x18] sm:$0xff]
        %v410 = vld [vmem:[#allocation2 + $0x20] sm:$0xff]
        %v411 = vld [vmem:[#allocation2 + $0x28] sm:$0xff]
        %v412 = vld [vmem:[#allocation2 + $0x30] sm:$0xff]
        %v413 = vld [vmem:[#allocation2 + $0x38] sm:$0xff]
        %v414 = vld [vmem:[%s2] sm:$0x3]
        %v416 = vlaneseq
        %v417 = vshrl.u32 %v416, 7
        %v418 = vsub.s32 0, %v417
        %v419 = vrot.slane %v414, %v418
        %v420 = vlaneseq
        %v421 = vshrl.u32 %v420, 7
        %v422 = vsub.s32 1, %v421
        %v423 = vrot.slane %v414, %v422
        %vm426 = vcmask 261120
        %v428 = vsel %vm426, %v374, 0
        %v431 = vsel %vm426, %v375, 0
        %v434 = vsel %vm426, %v376, 0
        %v437 = vsel %vm426, %v377, 0
        %v440 = vsel %vm426, %v378, 0
        %v443 = vsel %vm426, %v379, 0
        %v446 = vsel %vm426, %v380, 0
        %v449 = vsel %vm426, %v381, 0
        %v452 = vsel %vm426, %v382, 0
        %v455 = vsel %vm426, %v383, 0
        %v458 = vsel %vm426, %v384, 0
        %v461 = vsel %vm426, %v385, 0
        %v464 = vsel %vm426, %v386, 0
        %v467 = vsel %vm426, %v387, 0
        %v470 = vsel %vm426, %v388, 0
        %v473 = vsel %vm426, %v389, 0
        %v476 = vsel %vm426, %v390, 0
        %v479 = vsel %vm426, %v391, 0
        %v482 = vsel %vm426, %v392, 0
        %v485 = vsel %vm426, %v393, 0
        %v488 = vsel %vm426, %v394, 0
        %v491 = vsel %vm426, %v395, 0
        %v494 = vsel %vm426, %v396, 0
        %v497 = vsel %vm426, %v397, 0
        %v500 = vsel %vm426, %v398, 0
        %v503 = vsel %vm426, %v399, 0
        %v506 = vsel %vm426, %v400, 0
        %v509 = vsel %vm426, %v401, 0
        %v512 = vsel %vm426, %v402, 0
        %v515 = vsel %vm426, %v403, 0
        %v518 = vsel %vm426, %v404, 0
        %v521 = vsel %vm426, %v405, 0
        %523 = vmatprep.subr.mxu0 %v407
        %524 = vmatpush1.msra.mxu0 %v406
        %525 = vmatprep.subr.mxu0 %v409
        %526 = vmatpush1.msra.mxu0 %v408
        %527 = vmatprep.subr.mxu0 %v411
        %528 = vmatpush1.msra.mxu0 %v410
        %529 = vmatprep.subr.mxu0 %v413
        %530 = vmatpush1.msra.mxu0 %v412
        %531 = vmatprep.subr.mxu0 0.0
        %532 = vmatpush1.msra.mxu0 0.0
        %533 = vmatprep.subr.mxu0 0.0
        %534 = vmatpush1.msra.mxu0 0.0
        %535 = vmatprep.subr.mxu0 0.0
        %536 = vmatpush1.msra.mxu0 0.0
        %537 = vmatprep.subr.mxu0 0.0
        %538 = vmatpush1.msra.mxu0 0.0
        %539 = vmatprep.subr.mxu0 0.0
        %540 = vmatpush1.msra.mxu0 0.0
        %541 = vmatprep.subr.mxu0 0.0
        %542 = vmatpush1.msra.mxu0 0.0
        %543 = vmatprep.subr.mxu0 0.0
        %544 = vmatpush1.msra.mxu0 0.0
        %545 = vmatprep.subr.mxu0 0.0
        %546 = vmatpush1.msra.mxu0 0.0
        %547 = vmatprep.subr.mxu0 0.0
        %548 = vmatpush1.msra.mxu0 0.0
        %549 = vmatprep.subr.mxu0 0.0
        %550 = vmatpush1.msra.mxu0 0.0
        %551 = vmatprep.subr.mxu0 0.0
        %552 = vmatpush1.msra.mxu0 0.0
        %553 = vmatprep.subr.mxu0 0.0
        %554 = vmatpush1.msra.mxu0 0.0
        %555 = vmatprep.subr.mxu0 0.0
        %556 = vmatpush1.msra.mxu0 0.0
        %557 = vmatprep.subr.mxu0 0.0
        %558 = vmatpush1.msra.mxu0 0.0
        %559 = vmatprep.subr.mxu0 0.0
        %560 = vmatpush1.msra.mxu0 0.0
        %561 = vmatprep.subr.mxu0 0.0
        %562 = vmatpush1.msra.mxu0 0.0
        %563 = vmatprep.subr.mxu0 0.0
        %564 = vmatpush1.msra.mxu0 0.0
        %565 = vmatprep.subr.mxu0 0.0
        %566 = vmatpush1.msra.mxu0 0.0
        %567 = vmatprep.subr.mxu0 0.0
        %568 = vmatpush1.msra.mxu0 0.0
        %569 = vmatprep.subr.mxu0 0.0
        %570 = vmatpush1.msra.mxu0 0.0
        %571 = vmatprep.subr.mxu0 0.0
        %572 = vmatpush1.msra.mxu0 0.0
        %573 = vmatprep.subr.mxu0 0.0
        %574 = vmatpush1.msra.mxu0 0.0
        %575 = vmatprep.subr.mxu0 0.0
        %576 = vmatpush1.msra.mxu0 0.0
        %577 = vmatprep.subr.mxu0 0.0
        %578 = vmatpush1.msra.mxu0 0.0
        %579 = vmatprep.subr.mxu0 0.0
        %580 = vmatpush1.msra.mxu0 0.0
        %581 = vmatprep.subr.mxu0 0.0
        %582 = vmatpush1.msra.mxu0 0.0
        %583 = vmatprep.subr.mxu0 0.0
        %584 = vmatpush1.msra.mxu0 0.0
        %585 = vmatprep.subr.mxu0 0.0
        %586 = vmatpush1.msra.mxu0 0.0
        %587 = vmatprep.mubr.f32.mxu0 0.0
        %588 = vmatmul.mubr.f32.gmra.mrb[0].mxu0 %v428
        %v589 = vpop.f32.mrb[0].mxu0
        %v590 = vadd.f32 %v419, %v589
        %v591 = vpop.f32.mrb[0].mxu0
        %v592 = vadd.f32 %v423, %v591
        %593 = vmatprep.mubr.f32.mxu0 0.0
        %594 = vmatmul.mubr.f32.gmra.mrb[0].mxu0 %v431
        %v595 = vpop.f32.mrb[0].mxu0
        %v596 = vadd.f32 %v419, %v595
        %v597 = vpop.f32.mrb[0].mxu0
        %v598 = vadd.f32 %v423, %v597
        %599 = vmatprep.mubr.f32.mxu0 0.0
        %600 = vmatmul.mubr.f32.gmra.mrb[0].mxu0 %v434
        %v601 = vpop.f32.mrb[0].mxu0
        %v602 = vadd.f32 %v419, %v601
        %v603 = vpop.f32.mrb[0].mxu0
        %v604 = vadd.f32 %v423, %v603
        %605 = vmatprep.mubr.f32.mxu0 0.0
        %606 = vmatmul.mubr.f32.gmra.mrb[0].mxu0 %v437
        %v607 = vpop.f32.mrb[0].mxu0
        %v608 = vadd.f32 %v419, %v607
        %v609 = vpop.f32.mrb[0].mxu0
        %v610 = vadd.f32 %v423, %v609
        %611 = vmatprep.mubr.f32.mxu0 0.0
        %612 = vmatmul.mubr.f32.gmra.mrb[0].mxu0 %v440
        %v613 = vpop.f32.mrb[0].mxu0
        %v614 = vadd.f32 %v419, %v613
        %v615 = vpop.f32.mrb[0].mxu0
        %v616 = vadd.f32 %v423, %v615
        %617 = vmatprep.mubr.f32.mxu0 0.0
        %618 = vmatmul.mubr.f32.gmra.mrb[0].mxu0 %v443
        %v619 = vpop.f32.mrb[0].mxu0
        %v620 = vadd.f32 %v419, %v619
        %v621 = vpop.f32.mrb[0].mxu0
        %v622 = vadd.f32 %v423, %v621
        %623 = vmatprep.mubr.f32.mxu0 0.0
        %624 = vmatmul.mubr.f32.gmra.mrb[0].mxu0 %v446
        %v625 = vpop.f32.mrb[0].mxu0
        %v626 = vadd.f32 %v419, %v625
        %v627 = vpop.f32.mrb[0].mxu0
        %v628 = vadd.f32 %v423, %v627
        %629 = vmatprep.mubr.f32.mxu0 0.0
        %630 = vmatmul.mubr.f32.gmra.mrb[0].mxu0 %v449
        %v631 = vpop.f32.mrb[0].mxu0
        %v632 = vadd.f32 %v419, %v631
        %v633 = vpop.f32.mrb[0].mxu0
        %v634 = vadd.f32 %v423, %v633
        %635 = vmatprep.mubr.f32.mxu0 0.0
        %636 = vmatmul.mubr.f32.gmra.mrb[0].mxu0 %v452
        %v637 = vpop.f32.mrb[0].mxu0
        %v638 = vadd.f32 %v419, %v637
        %v639 = vpop.f32.mrb[0].mxu0
        %v640 = vadd.f32 %v423, %v639
        %641 = vmatprep.mubr.f32.mxu0 0.0
        %642 = vmatmul.mubr.f32.gmra.mrb[0].mxu0 %v455
        %v643 = vpop.f32.mrb[0].mxu0
        %v644 = vadd.f32 %v419, %v643
        %v645 = vpop.f32.mrb[0].mxu0
        %v646 = vadd.f32 %v423, %v645
        %647 = vmatprep.mubr.f32.mxu0 0.0
        %648 = vmatmul.mubr.f32.gmra.mrb[0].mxu0 %v458
        %v649 = vpop.f32.mrb[0].mxu0
        %v650 = vadd.f32 %v419, %v649
        %v651 = vpop.f32.mrb[0].mxu0
        %v652 = vadd.f32 %v423, %v651
        %653 = vmatprep.mubr.f32.mxu0 0.0
        %654 = vmatmul.mubr.f32.gmra.mrb[0].mxu0 %v461
        %v655 = vpop.f32.mrb[0].mxu0
        %v656 = vadd.f32 %v419, %v655
        %v657 = vpop.f32.mrb[0].mxu0
        %v658 = vadd.f32 %v423, %v657
        %659 = vmatprep.mubr.f32.mxu0 0.0
        %660 = vmatmul.mubr.f32.gmra.mrb[0].mxu0 %v464
        %v661 = vpop.f32.mrb[0].mxu0
        %v662 = vadd.f32 %v419, %v661
        %v663 = vpop.f32.mrb[0].mxu0
        %v664 = vadd.f32 %v423, %v663
        %665 = vmatprep.mubr.f32.mxu0 0.0
        %666 = vmatmul.mubr.f32.gmra.mrb[0].mxu0 %v467
        %v667 = vpop.f32.mrb[0].mxu0
        %v668 = vadd.f32 %v419, %v667
        %v669 = vpop.f32.mrb[0].mxu0
        %v670 = vadd.f32 %v423, %v669
        %671 = vmatprep.mubr.f32.mxu0 0.0
        %672 = vmatmul.mubr.f32.gmra.mrb[0].mxu0 %v470
        %v673 = vpop.f32.mrb[0].mxu0
        %v674 = vadd.f32 %v419, %v673
        %v675 = vpop.f32.mrb[0].mxu0
        %v676 = vadd.f32 %v423, %v675
        %677 = vmatprep.mubr.f32.mxu0 0.0
        %678 = vmatmul.mubr.f32.gmra.mrb[0].mxu0 %v473
        %v679 = vpop.f32.mrb[0].mxu0
        %v680 = vadd.f32 %v419, %v679
        %v681 = vpop.f32.mrb[0].mxu0
        %v682 = vadd.f32 %v423, %v681
        %683 = vmatprep.mubr.f32.mxu0 0.0
        %684 = vmatmul.mubr.f32.gmra.mrb[0].mxu0 %v476
        %v685 = vpop.f32.mrb[0].mxu0
        %v686 = vadd.f32 %v419, %v685
        %v687 = vpop.f32.mrb[0].mxu0
        %v688 = vadd.f32 %v423, %v687
        %689 = vmatprep.mubr.f32.mxu0 0.0
        %690 = vmatmul.mubr.f32.gmra.mrb[0].mxu0 %v479
        %v691 = vpop.f32.mrb[0].mxu0
        %v692 = vadd.f32 %v419, %v691
        %v693 = vpop.f32.mrb[0].mxu0
        %v694 = vadd.f32 %v423, %v693
        %695 = vmatprep.mubr.f32.mxu0 0.0
        %696 = vmatmul.mubr.f32.gmra.mrb[0].mxu0 %v482
        %v697 = vpop.f32.mrb[0].mxu0
        %v698 = vadd.f32 %v419, %v697
        %v699 = vpop.f32.mrb[0].mxu0
        %v700 = vadd.f32 %v423, %v699
        %701 = vmatprep.mubr.f32.mxu0 0.0
        %702 = vmatmul.mubr.f32.gmra.mrb[0].mxu0 %v485
        %v703 = vpop.f32.mrb[0].mxu0
        %v704 = vadd.f32 %v419, %v703
        %v705 = vpop.f32.mrb[0].mxu0
        %v706 = vadd.f32 %v423, %v705
        %707 = vmatprep.mubr.f32.mxu0 0.0
        %708 = vmatmul.mubr.f32.gmra.mrb[0].mxu0 %v488
        %v709 = vpop.f32.mrb[0].mxu0
        %v710 = vadd.f32 %v419, %v709
        %v711 = vpop.f32.mrb[0].mxu0
        %v712 = vadd.f32 %v423, %v711
        %713 = vmatprep.mubr.f32.mxu0 0.0
        %714 = vmatmul.mubr.f32.gmra.mrb[0].mxu0 %v491
        %v715 = vpop.f32.mrb[0].mxu0
        %v716 = vadd.f32 %v419, %v715
        %v717 = vpop.f32.mrb[0].mxu0
        %v718 = vadd.f32 %v423, %v717
        %719 = vmatprep.mubr.f32.mxu0 0.0
        %720 = vmatmul.mubr.f32.gmra.mrb[0].mxu0 %v494
        %v721 = vpop.f32.mrb[0].mxu0
        %v722 = vadd.f32 %v419, %v721
        %v723 = vpop.f32.mrb[0].mxu0
        %v724 = vadd.f32 %v423, %v723
        %725 = vmatprep.mubr.f32.mxu0 0.0
        %726 = vmatmul.mubr.f32.gmra.mrb[0].mxu0 %v497
        %v727 = vpop.f32.mrb[0].mxu0
        %v728 = vadd.f32 %v419, %v727
        %v729 = vpop.f32.mrb[0].mxu0
        %v730 = vadd.f32 %v423, %v729
        %731 = vmatprep.mubr.f32.mxu0 0.0
        %732 = vmatmul.mubr.f32.gmra.mrb[0].mxu0 %v500
        %v733 = vpop.f32.mrb[0].mxu0
        %v734 = vadd.f32 %v419, %v733
        %v735 = vpop.f32.mrb[0].mxu0
        %v736 = vadd.f32 %v423, %v735
        %737 = vmatprep.mubr.f32.mxu0 0.0
        %738 = vmatmul.mubr.f32.gmra.mrb[0].mxu0 %v503
        %v739 = vpop.f32.mrb[0].mxu0
        %v740 = vadd.f32 %v419, %v739
        %v741 = vpop.f32.mrb[0].mxu0
        %v742 = vadd.f32 %v423, %v741
        %743 = vmatprep.mubr.f32.mxu0 0.0
        %744 = vmatmul.mubr.f32.gmra.mrb[0].mxu0 %v506
        %v745 = vpop.f32.mrb[0].mxu0
        %v746 = vadd.f32 %v419, %v745
        %v747 = vpop.f32.mrb[0].mxu0
        %v748 = vadd.f32 %v423, %v747
        %749 = vmatprep.mubr.f32.mxu0 0.0
        %750 = vmatmul.mubr.f32.gmra.mrb[0].mxu0 %v509
        %v751 = vpop.f32.mrb[0].mxu0
        %v752 = vadd.f32 %v419, %v751
        %v753 = vpop.f32.mrb[0].mxu0
        %v754 = vadd.f32 %v423, %v753
        %755 = vmatprep.mubr.f32.mxu0 0.0
        %756 = vmatmul.mubr.f32.gmra.mrb[0].mxu0 %v512
        %v757 = vpop.f32.mrb[0].mxu0
        %v758 = vadd.f32 %v419, %v757
        %v759 = vpop.f32.mrb[0].mxu0
        %v760 = vadd.f32 %v423, %v759
        %761 = vmatprep.mubr.f32.mxu0 0.0
        %762 = vmatmul.mubr.f32.gmra.mrb[0].mxu0 %v515
        %v763 = vpop.f32.mrb[0].mxu0
        %v764 = vadd.f32 %v419, %v763
        %v765 = vpop.f32.mrb[0].mxu0
        %v766 = vadd.f32 %v423, %v765
        %767 = vmatprep.mubr.f32.mxu0 0.0
        %768 = vmatmul.mubr.f32.gmra.mrb[0].mxu0 %v518
        %v769 = vpop.f32.mrb[0].mxu0
        %v770 = vadd.f32 %v419, %v769
        %v771 = vpop.f32.mrb[0].mxu0
        %v772 = vadd.f32 %v423, %v771
        %773 = vmatprep.mubr.f32.mxu0 0.0
        %774 = vmatmul.mubr.f32.gmra.mrb[0].mxu0 %v521
        %v775 = vpop.f32.mrb[0].mxu0
        %v776 = vadd.f32 %v419, %v775
        %v777 = vpop.f32.mrb[0].mxu0
        %v778 = vadd.f32 %v423, %v777
        %779 = vdwg.mxu0
        %v780 = vmax.f32 %v590, 0.0
        %v781 = vmax.f32 %v592, 0.0
        %v782 = vmax.f32 %v596, 0.0
        %v783 = vmax.f32 %v598, 0.0
        %v784 = vmax.f32 %v602, 0.0
        %v785 = vmax.f32 %v604, 0.0
        %v786 = vmax.f32 %v608, 0.0
        %v787 = vmax.f32 %v610, 0.0
        %v788 = vmax.f32 %v614, 0.0
        %v789 = vmax.f32 %v616, 0.0
        %v790 = vmax.f32 %v620, 0.0
        %v791 = vmax.f32 %v622, 0.0
        %v792 = vmax.f32 %v626, 0.0
        %v793 = vmax.f32 %v628, 0.0
        %v794 = vmax.f32 %v632, 0.0
        %v795 = vmax.f32 %v634, 0.0
        %v796 = vmax.f32 %v638, 0.0
        %v797 = vmax.f32 %v640, 0.0
        %v798 = vmax.f32 %v644, 0.0
        %v799 = vmax.f32 %v646, 0.0
        %v800 = vmax.f32 %v650, 0.0
        %v801 = vmax.f32 %v652, 0.0
        %v802 = vmax.f32 %v656, 0.0
        %v803 = vmax.f32 %v658, 0.0
        %v804 = vmax.f32 %v662, 0.0
        %v805 = vmax.f32 %v664, 0.0
        %v806 = vmax.f32 %v668, 0.0
        %v807 = vmax.f32 %v670, 0.0
        %v808 = vmax.f32 %v674, 0.0
        %v809 = vmax.f32 %v676, 0.0
        %v810 = vmax.f32 %v680, 0.0
        %v811 = vmax.f32 %v682, 0.0
        %v812 = vmax.f32 %v686, 0.0
        %v813 = vmax.f32 %v688, 0.0
        %v814 = vmax.f32 %v692, 0.0
        %v815 = vmax.f32 %v694, 0.0
        %v816 = vmax.f32 %v698, 0.0
        %v817 = vmax.f32 %v700, 0.0
        %v818 = vmax.f32 %v704, 0.0
        %v819 = vmax.f32 %v706, 0.0
        %v820 = vmax.f32 %v710, 0.0
        %v821 = vmax.f32 %v712, 0.0
        %v822 = vmax.f32 %v716, 0.0
        %v823 = vmax.f32 %v718, 0.0
        %v824 = vmax.f32 %v722, 0.0
        %v825 = vmax.f32 %v724, 0.0
        %v826 = vmax.f32 %v728, 0.0
        %v827 = vmax.f32 %v730, 0.0
        %v828 = vmax.f32 %v734, 0.0
        %v829 = vmax.f32 %v736, 0.0
        %v830 = vmax.f32 %v740, 0.0
        %v831 = vmax.f32 %v742, 0.0
        %v832 = vmax.f32 %v746, 0.0
        %v833 = vmax.f32 %v748, 0.0
        %v834 = vmax.f32 %v752, 0.0
        %v835 = vmax.f32 %v754, 0.0
        %v836 = vmax.f32 %v758, 0.0
        %v837 = vmax.f32 %v760, 0.0
        %v838 = vmax.f32 %v764, 0.0
        %v839 = vmax.f32 %v766, 0.0
        %v840 = vmax.f32 %v770, 0.0
        %v841 = vmax.f32 %v772, 0.0
        %v842 = vmax.f32 %v776, 0.0
        %v843 = vmax.f32 %v778, 0.0
        %v844 = vpack.c.bf16 %v782, %v780
        %v845 = vpack.c.bf16 %v783, %v781
        %v846 = vpack.c.bf16 %v786, %v784
        %v847 = vpack.c.bf16 %v787, %v785
        %v848 = vpack.c.bf16 %v790, %v788
        %v849 = vpack.c.bf16 %v791, %v789
        %v850 = vpack.c.bf16 %v794, %v792
        %v851 = vpack.c.bf16 %v795, %v793
        %v852 = vpack.c.bf16 %v798, %v796
        %v853 = vpack.c.bf16 %v799, %v797
        %v854 = vpack.c.bf16 %v802, %v800
        %v855 = vpack.c.bf16 %v803, %v801
        %v856 = vpack.c.bf16 %v806, %v804
        %v857 = vpack.c.bf16 %v807, %v805
        %v858 = vpack.c.bf16 %v810, %v808
        %v859 = vpack.c.bf16 %v811, %v809
        %v860 = vpack.c.bf16 %v814, %v812
        %v861 = vpack.c.bf16 %v815, %v813
        %v862 = vpack.c.bf16 %v818, %v816
        %v863 = vpack.c.bf16 %v819, %v817
        %v864 = vpack.c.bf16 %v822, %v820
        %v865 = vpack.c.bf16 %v823, %v821
        %v866 = vpack.c.bf16 %v826, %v824
        %v867 = vpack.c.bf16 %v827, %v825
        %v868 = vpack.c.bf16 %v830, %v828
        %v869 = vpack.c.bf16 %v831, %v829
        %v870 = vpack.c.bf16 %v834, %v832
        %v871 = vpack.c.bf16 %v835, %v833
        %v872 = vpack.c.bf16 %v838, %v836
        %v873 = vpack.c.bf16 %v839, %v837
        %v874 = vpack.c.bf16 %v842, %v840
        %v875 = vpack.c.bf16 %v843, %v841
        %v876 = vld [vmem:[%s3] sm:$0xff]
        %v877 = vld [vmem:[%s3 + $0x8] sm:$0xff]
        %v878 = vld [vmem:[%s3 + $0x10] sm:$0xff]
        %v879 = vld [vmem:[%s3 + $0x18] sm:$0xff]
        %v880 = vld [vmem:[%s3 + $0x20] sm:$0xff]
        %v881 = vld [vmem:[%s3 + $0x28] sm:$0xff]
        %v882 = vld [vmem:[%s3 + $0x30] sm:$0xff]
        %v883 = vld [vmem:[%s3 + $0x38] sm:$0xff]
        %v884 = vld [vmem:[%s3 + $0x40] sm:$0xff]
        %v885 = vld [vmem:[%s3 + $0x48] sm:$0xff]
        %v886 = vld [vmem:[%s3 + $0x50] sm:$0xff]
        %v887 = vld [vmem:[%s3 + $0x58] sm:$0xff]
        %v888 = vld [vmem:[%s3 + $0x60] sm:$0xff]
        %v889 = vld [vmem:[%s3 + $0x68] sm:$0xff]
        %v890 = vld [vmem:[%s3 + $0x70] sm:$0xff]
        %v891 = vld [vmem:[%s3 + $0x78] sm:$0xff]
        %v892 = vld [vmem:[%s3 + $0x80] sm:$0xff]
        %v893 = vld [vmem:[%s3 + $0x88] sm:$0xff]
        %v894 = vld [vmem:[%s3 + $0x90] sm:$0xff]
        %v895 = vld [vmem:[%s3 + $0x98] sm:$0xff]
        %v896 = vld [vmem:[%s3 + $0xa0] sm:$0xff]
        %v897 = vld [vmem:[%s3 + $0xa8] sm:$0xff]
        %v898 = vld [vmem:[%s3 + $0xb0] sm:$0xff]
        %v899 = vld [vmem:[%s3 + $0xb8] sm:$0xff]
        %v900 = vld [vmem:[%s3 + $0xc0] sm:$0xff]
        %v901 = vld [vmem:[%s3 + $0xc8] sm:$0xff]
        %v902 = vld [vmem:[%s3 + $0xd0] sm:$0xff]
        %v903 = vld [vmem:[%s3 + $0xd8] sm:$0xff]
        %v904 = vld [vmem:[%s3 + $0xe0] sm:$0xff]
        %v905 = vld [vmem:[%s3 + $0xe8] sm:$0xff]
        %v906 = vld [vmem:[%s3 + $0xf0] sm:$0xff]
        %v907 = vld [vmem:[%s3 + $0xf8] sm:$0xff]
        %v908 = vld [vmem:[%s4] sm:$0x3]
        %v910 = vlaneseq
        %v911 = vshrl.u32 %v910, 7
        %v912 = vsub.s32 0, %v911
        %v913 = vrot.slane %v908, %v912
        %v914 = vlaneseq
        %v915 = vshrl.u32 %v914, 7
        %v916 = vsub.s32 1, %v915
        %v917 = vrot.slane %v908, %v916
        %v952 = vunpack.c.l.b16 %v876
        %v953 = vunpack.c.h.b16 %v876
        %v954 = vunpack.c.l.b16 %v877
        %v955 = vunpack.c.h.b16 %v877
        %v956 = vunpack.c.l.b16 %v878
        %v957 = vunpack.c.h.b16 %v878
        %v958 = vunpack.c.l.b16 %v879
        %v959 = vunpack.c.h.b16 %v879
        %v960 = vunpack.c.l.b16 %v880
        %v961 = vunpack.c.h.b16 %v880
        %v962 = vunpack.c.l.b16 %v881
        %v963 = vunpack.c.h.b16 %v881
        %v964 = vunpack.c.l.b16 %v882
        %v965 = vunpack.c.h.b16 %v882
        %v966 = vunpack.c.l.b16 %v883
        %v967 = vunpack.c.h.b16 %v883
        %v968 = vunpack.c.l.b16 %v884
        %v969 = vunpack.c.h.b16 %v884
        %v970 = vunpack.c.l.b16 %v885
        %v971 = vunpack.c.h.b16 %v885
        %v972 = vunpack.c.l.b16 %v886
        %v973 = vunpack.c.h.b16 %v886
        %v974 = vunpack.c.l.b16 %v887
        %v975 = vunpack.c.h.b16 %v887
        %v976 = vunpack.c.l.b16 %v888
        %v977 = vunpack.c.h.b16 %v888
        %v978 = vunpack.c.l.b16 %v889
        %v979 = vunpack.c.h.b16 %v889
        %v980 = vunpack.c.l.b16 %v890
        %v981 = vunpack.c.h.b16 %v890
        %v982 = vunpack.c.l.b16 %v891
        %v983 = vunpack.c.h.b16 %v891
        %v984 = vunpack.c.l.b16 %v892
        %v985 = vunpack.c.h.b16 %v892
        %v986 = vunpack.c.l.b16 %v893
        %v987 = vunpack.c.h.b16 %v893
        %v988 = vunpack.c.l.b16 %v894
        %v989 = vunpack.c.h.b16 %v894
        %v990 = vunpack.c.l.b16 %v895
        %v991 = vunpack.c.h.b16 %v895
        %v992 = vunpack.c.l.b16 %v896
        %v993 = vunpack.c.h.b16 %v896
        %v994 = vunpack.c.l.b16 %v897
        %v995 = vunpack.c.h.b16 %v897
        %v996 = vunpack.c.l.b16 %v898
        %v997 = vunpack.c.h.b16 %v898
        %v998 = vunpack.c.l.b16 %v899
        %v999 = vunpack.c.h.b16 %v899
        %v1000 = vunpack.c.l.b16 %v900
        %v1001 = vunpack.c.h.b16 %v900
        %v1002 = vunpack.c.l.b16 %v901
        %v1003 = vunpack.c.h.b16 %v901
        %v1004 = vunpack.c.l.b16 %v902
        %v1005 = vunpack.c.h.b16 %v902
        %v1006 = vunpack.c.l.b16 %v903
        %v1007 = vunpack.c.h.b16 %v903
        %v1008 = vunpack.c.l.b16 %v904
        %v1009 = vunpack.c.h.b16 %v904
        %v1010 = vunpack.c.l.b16 %v905
        %v1011 = vunpack.c.h.b16 %v905
        %v1012 = vunpack.c.l.b16 %v906
        %v1013 = vunpack.c.h.b16 %v906
        %v1014 = vunpack.c.l.b16 %v907
        %v1015 = vunpack.c.h.b16 %v907
        %v1016 = vpack.c.b16 %v954, %v952
        %v1017 = vpack.c.b16 %v955, %v953
        %v1018 = vpack.c.b16 %v958, %v956
        %v1019 = vpack.c.b16 %v959, %v957
        %v1020 = vpack.c.b16 %v962, %v960
        %v1021 = vpack.c.b16 %v963, %v961
        %v1022 = vpack.c.b16 %v966, %v964
        %v1023 = vpack.c.b16 %v967, %v965
        %v1024 = vpack.c.b16 %v970, %v968
        %v1025 = vpack.c.b16 %v971, %v969
        %v1026 = vpack.c.b16 %v974, %v972
        %v1027 = vpack.c.b16 %v975, %v973
        %v1028 = vpack.c.b16 %v978, %v976
        %v1029 = vpack.c.b16 %v979, %v977
        %v1030 = vpack.c.b16 %v982, %v980
        %v1031 = vpack.c.b16 %v983, %v981
        %v1032 = vpack.c.b16 %v986, %v984
        %v1033 = vpack.c.b16 %v987, %v985
        %v1034 = vpack.c.b16 %v990, %v988
        %v1035 = vpack.c.b16 %v991, %v989
        %v1036 = vpack.c.b16 %v994, %v992
        %v1037 = vpack.c.b16 %v995, %v993
        %v1038 = vpack.c.b16 %v998, %v996
        %v1039 = vpack.c.b16 %v999, %v997
        %v1040 = vpack.c.b16 %v1002, %v1000
        %v1041 = vpack.c.b16 %v1003, %v1001
        %v1042 = vpack.c.b16 %v1006, %v1004
        %v1043 = vpack.c.b16 %v1007, %v1005
        %v1044 = vpack.c.b16 %v1010, %v1008
        %v1045 = vpack.c.b16 %v1011, %v1009
        %v1046 = vpack.c.b16 %v1014, %v1012
        %v1047 = vpack.c.b16 %v1015, %v1013
        %1080 = vmatprep.subr.bf16.mxu0 %v1017
        %1081 = vmatpush1.bf16.msra.mxu0 %v1016
        %1082 = vmatprep.subr.bf16.mxu0 %v1019
        %1083 = vmatpush1.bf16.msra.mxu0 %v1018
        %1084 = vmatprep.subr.bf16.mxu0 %v1021
        %1085 = vmatpush1.bf16.msra.mxu0 %v1020
        %1086 = vmatprep.subr.bf16.mxu0 %v1023
        %1087 = vmatpush1.bf16.msra.mxu0 %v1022
        %1088 = vmatprep.subr.bf16.mxu0 %v1025
        %1089 = vmatpush1.bf16.msra.mxu0 %v1024
        %1090 = vmatprep.subr.bf16.mxu0 %v1027
        %1091 = vmatpush1.bf16.msra.mxu0 %v1026
        %1092 = vmatprep.subr.bf16.mxu0 %v1029
        %1093 = vmatpush1.bf16.msra.mxu0 %v1028
        %1094 = vmatprep.subr.bf16.mxu0 %v1031
        %1095 = vmatpush1.bf16.msra.mxu0 %v1030
        %1096 = vmatprep.subr.bf16.mxu0 %v1033
        %1097 = vmatpush1.bf16.msra.mxu0 %v1032
        %1098 = vmatprep.subr.bf16.mxu0 %v1035
        %1099 = vmatpush1.bf16.msra.mxu0 %v1034
        %1100 = vmatprep.subr.bf16.mxu0 %v1037
        %1101 = vmatpush1.bf16.msra.mxu0 %v1036
        %1102 = vmatprep.subr.bf16.mxu0 %v1039
        %1103 = vmatpush1.bf16.msra.mxu0 %v1038
        %1104 = vmatprep.subr.bf16.mxu0 %v1041
        %1105 = vmatpush1.bf16.msra.mxu0 %v1040
        %1106 = vmatprep.subr.bf16.mxu0 %v1043
        %1107 = vmatpush1.bf16.msra.mxu0 %v1042
        %1108 = vmatprep.subr.bf16.mxu0 %v1045
        %1109 = vmatpush1.bf16.msra.mxu0 %v1044
        %1110 = vmatprep.subr.bf16.mxu0 %v1047
        %1111 = vmatpush1.bf16.msra.mxu0 %v1046
        %1112 = vmatprep.mubr.bf16.mxu0 %v845
        %1113 = vmatmul.mubr.bf16.gmra.mrb[0].mxu0 %v844
        %v1114 = vpop.f32.mrb[0].mxu0
        %v1115 = vadd.f32 %v913, %v1114
        %v1116 = vpop.f32.mrb[0].mxu0
        %v1117 = vadd.f32 %v917, %v1116
        %v1118 = vpop.f32.mrb[0].mxu0
        %v1119 = vadd.f32 %v913, %v1118
        %v1120 = vpop.f32.mrb[0].mxu0
        %v1121 = vadd.f32 %v917, %v1120
        %1122 = vmatprep.mubr.bf16.mxu0 %v847
        %1123 = vmatmul.mubr.bf16.gmra.mrb[0].mxu0 %v846
        %v1124 = vpop.f32.mrb[0].mxu0
        %v1125 = vadd.f32 %v913, %v1124
        %v1126 = vpop.f32.mrb[0].mxu0
        %v1127 = vadd.f32 %v917, %v1126
        %v1128 = vpop.f32.mrb[0].mxu0
        %v1129 = vadd.f32 %v913, %v1128
        %v1130 = vpop.f32.mrb[0].mxu0
        %v1131 = vadd.f32 %v917, %v1130
        %1132 = vmatprep.mubr.bf16.mxu0 %v849
        %1133 = vmatmul.mubr.bf16.gmra.mrb[0].mxu0 %v848
        %v1134 = vpop.f32.mrb[0].mxu0
        %v1135 = vadd.f32 %v913, %v1134
        %v1136 = vpop.f32.mrb[0].mxu0
        %v1137 = vadd.f32 %v917, %v1136
        %v1138 = vpop.f32.mrb[0].mxu0
        %v1139 = vadd.f32 %v913, %v1138
        %v1140 = vpop.f32.mrb[0].mxu0
        %v1141 = vadd.f32 %v917, %v1140
        %1142 = vmatprep.mubr.bf16.mxu0 %v851
        %1143 = vmatmul.mubr.bf16.gmra.mrb[0].mxu0 %v850
        %v1144 = vpop.f32.mrb[0].mxu0
        %v1145 = vadd.f32 %v913, %v1144
        %v1146 = vpop.f32.mrb[0].mxu0
        %v1147 = vadd.f32 %v917, %v1146
        %v1148 = vpop.f32.mrb[0].mxu0
        %v1149 = vadd.f32 %v913, %v1148
        %v1150 = vpop.f32.mrb[0].mxu0
        %v1151 = vadd.f32 %v917, %v1150
        %1152 = vmatprep.mubr.bf16.mxu0 %v853
        %1153 = vmatmul.mubr.bf16.gmra.mrb[0].mxu0 %v852
        %v1154 = vpop.f32.mrb[0].mxu0
        %v1155 = vadd.f32 %v913, %v1154
        %v1156 = vpop.f32.mrb[0].mxu0
        %v1157 = vadd.f32 %v917, %v1156
        %v1158 = vpop.f32.mrb[0].mxu0
        %v1159 = vadd.f32 %v913, %v1158
        %v1160 = vpop.f32.mrb[0].mxu0
        %v1161 = vadd.f32 %v917, %v1160
        %1162 = vmatprep.mubr.bf16.mxu0 %v855
        %1163 = vmatmul.mubr.bf16.gmra.mrb[0].mxu0 %v854
        %v1164 = vpop.f32.mrb[0].mxu0
        %v1165 = vadd.f32 %v913, %v1164
        %v1166 = vpop.f32.mrb[0].mxu0
        %v1167 = vadd.f32 %v917, %v1166
        %v1168 = vpop.f32.mrb[0].mxu0
        %v1169 = vadd.f32 %v913, %v1168
        %v1170 = vpop.f32.mrb[0].mxu0
        %v1171 = vadd.f32 %v917, %v1170
        %1172 = vmatprep.mubr.bf16.mxu0 %v857
        %1173 = vmatmul.mubr.bf16.gmra.mrb[0].mxu0 %v856
        %v1174 = vpop.f32.mrb[0].mxu0
        %v1175 = vadd.f32 %v913, %v1174
        %v1176 = vpop.f32.mrb[0].mxu0
        %v1177 = vadd.f32 %v917, %v1176
        %v1178 = vpop.f32.mrb[0].mxu0
        %v1179 = vadd.f32 %v913, %v1178
        %v1180 = vpop.f32.mrb[0].mxu0
        %v1181 = vadd.f32 %v917, %v1180
        %1182 = vmatprep.mubr.bf16.mxu0 %v859
        %1183 = vmatmul.mubr.bf16.gmra.mrb[0].mxu0 %v858
        %v1184 = vpop.f32.mrb[0].mxu0
        %v1185 = vadd.f32 %v913, %v1184
        %v1186 = vpop.f32.mrb[0].mxu0
        %v1187 = vadd.f32 %v917, %v1186
        %v1188 = vpop.f32.mrb[0].mxu0
        %v1189 = vadd.f32 %v913, %v1188
        %v1190 = vpop.f32.mrb[0].mxu0
        %v1191 = vadd.f32 %v917, %v1190
        %1192 = vmatprep.mubr.bf16.mxu0 %v861
        %1193 = vmatmul.mubr.bf16.gmra.mrb[0].mxu0 %v860
        %v1194 = vpop.f32.mrb[0].mxu0
        %v1195 = vadd.f32 %v913, %v1194
        %v1196 = vpop.f32.mrb[0].mxu0
        %v1197 = vadd.f32 %v917, %v1196
        %v1198 = vpop.f32.mrb[0].mxu0
        %v1199 = vadd.f32 %v913, %v1198
        %v1200 = vpop.f32.mrb[0].mxu0
        %v1201 = vadd.f32 %v917, %v1200
        %1202 = vmatprep.mubr.bf16.mxu0 %v863
        %1203 = vmatmul.mubr.bf16.gmra.mrb[0].mxu0 %v862
        %v1204 = vpop.f32.mrb[0].mxu0
        %v1205 = vadd.f32 %v913, %v1204
        %v1206 = vpop.f32.mrb[0].mxu0
        %v1207 = vadd.f32 %v917, %v1206
        %v1208 = vpop.f32.mrb[0].mxu0
        %v1209 = vadd.f32 %v913, %v1208
        %v1210 = vpop.f32.mrb[0].mxu0
        %v1211 = vadd.f32 %v917, %v1210
        %1212 = vmatprep.mubr.bf16.mxu0 %v865
        %1213 = vmatmul.mubr.bf16.gmra.mrb[0].mxu0 %v864
        %v1214 = vpop.f32.mrb[0].mxu0
        %v1215 = vadd.f32 %v913, %v1214
        %v1216 = vpop.f32.mrb[0].mxu0
        %v1217 = vadd.f32 %v917, %v1216
        %v1218 = vpop.f32.mrb[0].mxu0
        %v1219 = vadd.f32 %v913, %v1218
        %v1220 = vpop.f32.mrb[0].mxu0
        %v1221 = vadd.f32 %v917, %v1220
        %1222 = vmatprep.mubr.bf16.mxu0 %v867
        %1223 = vmatmul.mubr.bf16.gmra.mrb[0].mxu0 %v866
        %v1224 = vpop.f32.mrb[0].mxu0
        %v1225 = vadd.f32 %v913, %v1224
        %v1226 = vpop.f32.mrb[0].mxu0
        %v1227 = vadd.f32 %v917, %v1226
        %v1228 = vpop.f32.mrb[0].mxu0
        %v1229 = vadd.f32 %v913, %v1228
        %v1230 = vpop.f32.mrb[0].mxu0
        %v1231 = vadd.f32 %v917, %v1230
        %1232 = vmatprep.mubr.bf16.mxu0 %v869
        %1233 = vmatmul.mubr.bf16.gmra.mrb[0].mxu0 %v868
        %v1234 = vpop.f32.mrb[0].mxu0
        %v1235 = vadd.f32 %v913, %v1234
        %v1236 = vpop.f32.mrb[0].mxu0
        %v1237 = vadd.f32 %v917, %v1236
        %v1238 = vpop.f32.mrb[0].mxu0
        %v1239 = vadd.f32 %v913, %v1238
        %v1240 = vpop.f32.mrb[0].mxu0
        %v1241 = vadd.f32 %v917, %v1240
        %1242 = vmatprep.mubr.bf16.mxu0 %v871
        %1243 = vmatmul.mubr.bf16.gmra.mrb[0].mxu0 %v870
        %v1244 = vpop.f32.mrb[0].mxu0
        %v1245 = vadd.f32 %v913, %v1244
        %v1246 = vpop.f32.mrb[0].mxu0
        %v1247 = vadd.f32 %v917, %v1246
        %v1248 = vpop.f32.mrb[0].mxu0
        %v1249 = vadd.f32 %v913, %v1248
        %v1250 = vpop.f32.mrb[0].mxu0
        %v1251 = vadd.f32 %v917, %v1250
        %1252 = vmatprep.mubr.bf16.mxu0 %v873
        %1253 = vmatmul.mubr.bf16.gmra.mrb[0].mxu0 %v872
        %v1254 = vpop.f32.mrb[0].mxu0
        %v1255 = vadd.f32 %v913, %v1254
        %v1256 = vpop.f32.mrb[0].mxu0
        %v1257 = vadd.f32 %v917, %v1256
        %v1258 = vpop.f32.mrb[0].mxu0
        %v1259 = vadd.f32 %v913, %v1258
        %v1260 = vpop.f32.mrb[0].mxu0
        %v1261 = vadd.f32 %v917, %v1260
        %1262 = vmatprep.mubr.bf16.mxu0 %v875
        %1263 = vmatmul.mubr.bf16.gmra.mrb[0].mxu0 %v874
        %v1264 = vpop.f32.mrb[0].mxu0
        %v1265 = vadd.f32 %v913, %v1264
        %v1266 = vpop.f32.mrb[0].mxu0
        %v1267 = vadd.f32 %v917, %v1266
        %v1268 = vpop.f32.mrb[0].mxu0
        %v1269 = vadd.f32 %v913, %v1268
        %v1270 = vpop.f32.mrb[0].mxu0
        %v1271 = vadd.f32 %v917, %v1270
        %1272 = vdwg.mxu0
        %v1273 = vmax.f32 %v1115, 0.0
        %v1274 = vmax.f32 %v1117, 0.0
        %v1275 = vmax.f32 %v1119, 0.0
        %v1276 = vmax.f32 %v1121, 0.0
        %v1277 = vmax.f32 %v1125, 0.0
        %v1278 = vmax.f32 %v1127, 0.0
        %v1279 = vmax.f32 %v1129, 0.0
        %v1280 = vmax.f32 %v1131, 0.0
        %v1281 = vmax.f32 %v1135, 0.0
        %v1282 = vmax.f32 %v1137, 0.0
        %v1283 = vmax.f32 %v1139, 0.0
        %v1284 = vmax.f32 %v1141, 0.0
        %v1285 = vmax.f32 %v1145, 0.0
        %v1286 = vmax.f32 %v1147, 0.0
        %v1287 = vmax.f32 %v1149, 0.0
        %v1288 = vmax.f32 %v1151, 0.0
        %v1289 = vmax.f32 %v1155, 0.0
        %v1290 = vmax.f32 %v1157, 0.0
        %v1291 = vmax.f32 %v1159, 0.0
        %v1292 = vmax.f32 %v1161, 0.0
        %v1293 = vmax.f32 %v1165, 0.0
        %v1294 = vmax.f32 %v1167, 0.0
        %v1295 = vmax.f32 %v1169, 0.0
        %v1296 = vmax.f32 %v1171, 0.0
        %v1297 = vmax.f32 %v1175, 0.0
        %v1298 = vmax.f32 %v1177, 0.0
        %v1299 = vmax.f32 %v1179, 0.0
        %v1300 = vmax.f32 %v1181, 0.0
        %v1301 = vmax.f32 %v1185, 0.0
        %v1302 = vmax.f32 %v1187, 0.0
        %v1303 = vmax.f32 %v1189, 0.0
        %v1304 = vmax.f32 %v1191, 0.0
        %v1305 = vmax.f32 %v1195, 0.0
        %v1306 = vmax.f32 %v1197, 0.0
        %v1307 = vmax.f32 %v1199, 0.0
        %v1308 = vmax.f32 %v1201, 0.0
        %v1309 = vmax.f32 %v1205, 0.0
        %v1310 = vmax.f32 %v1207, 0.0
        %v1311 = vmax.f32 %v1209, 0.0
        %v1312 = vmax.f32 %v1211, 0.0
        %v1313 = vmax.f32 %v1215, 0.0
        %v1314 = vmax.f32 %v1217, 0.0
        %v1315 = vmax.f32 %v1219, 0.0
        %v1316 = vmax.f32 %v1221, 0.0
        %v1317 = vmax.f32 %v1225, 0.0
        %v1318 = vmax.f32 %v1227, 0.0
        %v1319 = vmax.f32 %v1229, 0.0
        %v1320 = vmax.f32 %v1231, 0.0
        %v1321 = vmax.f32 %v1235, 0.0
        %v1322 = vmax.f32 %v1237, 0.0
        %v1323 = vmax.f32 %v1239, 0.0
        %v1324 = vmax.f32 %v1241, 0.0
        %v1325 = vmax.f32 %v1245, 0.0
        %v1326 = vmax.f32 %v1247, 0.0
        %v1327 = vmax.f32 %v1249, 0.0
        %v1328 = vmax.f32 %v1251, 0.0
        %v1329 = vmax.f32 %v1255, 0.0
        %v1330 = vmax.f32 %v1257, 0.0
        %v1331 = vmax.f32 %v1259, 0.0
        %v1332 = vmax.f32 %v1261, 0.0
        %v1333 = vmax.f32 %v1265, 0.0
        %v1334 = vmax.f32 %v1267, 0.0
        %v1335 = vmax.f32 %v1269, 0.0
        %v1336 = vmax.f32 %v1271, 0.0
        %v1337 = vadd.f32 %v780, %v1273
        %v1338 = vadd.f32 %v781, %v1274
        %v1339 = vadd.f32 %v782, %v1275
        %v1340 = vadd.f32 %v783, %v1276
        %v1341 = vadd.f32 %v784, %v1277
        %v1342 = vadd.f32 %v785, %v1278
        %v1343 = vadd.f32 %v786, %v1279
        %v1344 = vadd.f32 %v787, %v1280
        %v1345 = vadd.f32 %v788, %v1281
        %v1346 = vadd.f32 %v789, %v1282
        %v1347 = vadd.f32 %v790, %v1283
        %v1348 = vadd.f32 %v791, %v1284
        %v1349 = vadd.f32 %v792, %v1285
        %v1350 = vadd.f32 %v793, %v1286
        %v1351 = vadd.f32 %v794, %v1287
        %v1352 = vadd.f32 %v795, %v1288
        %v1353 = vadd.f32 %v796, %v1289
        %v1354 = vadd.f32 %v797, %v1290
        %v1355 = vadd.f32 %v798, %v1291
        %v1356 = vadd.f32 %v799, %v1292
        %v1357 = vadd.f32 %v800, %v1293
        %v1358 = vadd.f32 %v801, %v1294
        %v1359 = vadd.f32 %v802, %v1295
        %v1360 = vadd.f32 %v803, %v1296
        %v1361 = vadd.f32 %v804, %v1297
        %v1362 = vadd.f32 %v805, %v1298
        %v1363 = vadd.f32 %v806, %v1299
        %v1364 = vadd.f32 %v807, %v1300
        %v1365 = vadd.f32 %v808, %v1301
        %v1366 = vadd.f32 %v809, %v1302
        %v1367 = vadd.f32 %v810, %v1303
        %v1368 = vadd.f32 %v811, %v1304
        %v1369 = vadd.f32 %v812, %v1305
        %v1370 = vadd.f32 %v813, %v1306
        %v1371 = vadd.f32 %v814, %v1307
        %v1372 = vadd.f32 %v815, %v1308
        %v1373 = vadd.f32 %v816, %v1309
        %v1374 = vadd.f32 %v817, %v1310
        %v1375 = vadd.f32 %v818, %v1311
        %v1376 = vadd.f32 %v819, %v1312
        %v1377 = vadd.f32 %v820, %v1313
        %v1378 = vadd.f32 %v821, %v1314
        %v1379 = vadd.f32 %v822, %v1315
        %v1380 = vadd.f32 %v823, %v1316
        %v1381 = vadd.f32 %v824, %v1317
        %v1382 = vadd.f32 %v825, %v1318
        %v1383 = vadd.f32 %v826, %v1319
        %v1384 = vadd.f32 %v827, %v1320
        %v1385 = vadd.f32 %v828, %v1321
        %v1386 = vadd.f32 %v829, %v1322
        %v1387 = vadd.f32 %v830, %v1323
        %v1388 = vadd.f32 %v831, %v1324
        %v1389 = vadd.f32 %v832, %v1325
        %v1390 = vadd.f32 %v833, %v1326
        %v1391 = vadd.f32 %v834, %v1327
        %v1392 = vadd.f32 %v835, %v1328
        %v1393 = vadd.f32 %v836, %v1329
        %v1394 = vadd.f32 %v837, %v1330
        %v1395 = vadd.f32 %v838, %v1331
        %v1396 = vadd.f32 %v839, %v1332
        %v1397 = vadd.f32 %v840, %v1333
        %v1398 = vadd.f32 %v841, %v1334
        %v1399 = vadd.f32 %v842, %v1335
        %v1400 = vadd.f32 %v843, %v1336
        %v1401 = vpack.c.bf16 %v1339, %v1337
        %v1402 = vpack.c.bf16 %v1340, %v1338
        %v1403 = vpack.c.bf16 %v1343, %v1341
        %v1404 = vpack.c.bf16 %v1344, %v1342
        %v1405 = vpack.c.bf16 %v1347, %v1345
        %v1406 = vpack.c.bf16 %v1348, %v1346
        %v1407 = vpack.c.bf16 %v1351, %v1349
        %v1408 = vpack.c.bf16 %v1352, %v1350
        %v1409 = vpack.c.bf16 %v1355, %v1353
        %v1410 = vpack.c.bf16 %v1356, %v1354
        %v1411 = vpack.c.bf16 %v1359, %v1357
        %v1412 = vpack.c.bf16 %v1360, %v1358
        %v1413 = vpack.c.bf16 %v1363, %v1361
        %v1414 = vpack.c.bf16 %v1364, %v1362
        %v1415 = vpack.c.bf16 %v1367, %v1365
        %v1416 = vpack.c.bf16 %v1368, %v1366
        %v1417 = vpack.c.bf16 %v1371, %v1369
        %v1418 = vpack.c.bf16 %v1372, %v1370
        %v1419 = vpack.c.bf16 %v1375, %v1373
        %v1420 = vpack.c.bf16 %v1376, %v1374
        %v1421 = vpack.c.bf16 %v1379, %v1377
        %v1422 = vpack.c.bf16 %v1380, %v1378
        %v1423 = vpack.c.bf16 %v1383, %v1381
        %v1424 = vpack.c.bf16 %v1384, %v1382
        %v1425 = vpack.c.bf16 %v1387, %v1385
        %v1426 = vpack.c.bf16 %v1388, %v1386
        %v1427 = vpack.c.bf16 %v1391, %v1389
        %v1428 = vpack.c.bf16 %v1392, %v1390
        %v1429 = vpack.c.bf16 %v1395, %v1393
        %v1430 = vpack.c.bf16 %v1396, %v1394
        %v1431 = vpack.c.bf16 %v1399, %v1397
        %v1432 = vpack.c.bf16 %v1400, %v1398
        %v1433 = vld [vmem:[%s5] sm:$0xff]
        %v1434 = vld [vmem:[%s5 + $0x8] sm:$0xff]
        %v1435 = vld [vmem:[%s5 + $0x10] sm:$0xff]
        %v1436 = vld [vmem:[%s5 + $0x18] sm:$0xff]
        %v1437 = vld [vmem:[%s5 + $0x20] sm:$0xff]
        %v1438 = vld [vmem:[%s5 + $0x28] sm:$0xff]
        %v1439 = vld [vmem:[%s5 + $0x30] sm:$0xff]
        %v1440 = vld [vmem:[%s5 + $0x38] sm:$0xff]
        %v1441 = vld [vmem:[%s5 + $0x40] sm:$0xff]
        %v1442 = vld [vmem:[%s5 + $0x48] sm:$0xff]
        %v1443 = vld [vmem:[%s5 + $0x50] sm:$0xff]
        %v1444 = vld [vmem:[%s5 + $0x58] sm:$0xff]
        %v1445 = vld [vmem:[%s5 + $0x60] sm:$0xff]
        %v1446 = vld [vmem:[%s5 + $0x68] sm:$0xff]
        %v1447 = vld [vmem:[%s5 + $0x70] sm:$0xff]
        %v1448 = vld [vmem:[%s5 + $0x78] sm:$0xff]
        %v1449 = vld [vmem:[%s5 + $0x80] sm:$0xff]
        %v1450 = vld [vmem:[%s5 + $0x88] sm:$0xff]
        %v1451 = vld [vmem:[%s5 + $0x90] sm:$0xff]
        %v1452 = vld [vmem:[%s5 + $0x98] sm:$0xff]
        %v1453 = vld [vmem:[%s5 + $0xa0] sm:$0xff]
        %v1454 = vld [vmem:[%s5 + $0xa8] sm:$0xff]
        %v1455 = vld [vmem:[%s5 + $0xb0] sm:$0xff]
        %v1456 = vld [vmem:[%s5 + $0xb8] sm:$0xff]
        %v1457 = vld [vmem:[%s5 + $0xc0] sm:$0xff]
        %v1458 = vld [vmem:[%s5 + $0xc8] sm:$0xff]
        %v1459 = vld [vmem:[%s5 + $0xd0] sm:$0xff]
        %v1460 = vld [vmem:[%s5 + $0xd8] sm:$0xff]
        %v1461 = vld [vmem:[%s5 + $0xe0] sm:$0xff]
        %v1462 = vld [vmem:[%s5 + $0xe8] sm:$0xff]
        %v1463 = vld [vmem:[%s5 + $0xf0] sm:$0xff]
        %v1464 = vld [vmem:[%s5 + $0xf8] sm:$0xff]
        %v1465 = vld [vmem:[%s6] sm:$0x3]
        %v1467 = vlaneseq
        %v1468 = vshrl.u32 %v1467, 7
        %v1469 = vsub.s32 0, %v1468
        %v1470 = vrot.slane %v1465, %v1469
        %v1471 = vlaneseq
        %v1472 = vshrl.u32 %v1471, 7
        %v1473 = vsub.s32 1, %v1472
        %v1474 = vrot.slane %v1465, %v1473
        %v1509 = vunpack.c.l.b16 %v1433
        %v1510 = vunpack.c.h.b16 %v1433
        %v1511 = vunpack.c.l.b16 %v1434
        %v1512 = vunpack.c.h.b16 %v1434
        %v1513 = vunpack.c.l.b16 %v1435
        %v1514 = vunpack.c.h.b16 %v1435
        %v1515 = vunpack.c.l.b16 %v1436
        %v1516 = vunpack.c.h.b16 %v1436
        %v1517 = vunpack.c.l.b16 %v1437
        %v1518 = vunpack.c.h.b16 %v1437
        %v1519 = vunpack.c.l.b16 %v1438
        %v1520 = vunpack.c.h.b16 %v1438
        %v1521 = vunpack.c.l.b16 %v1439
        %v1522 = vunpack.c.h.b16 %v1439
        %v1523 = vunpack.c.l.b16 %v1440
        %v1524 = vunpack.c.h.b16 %v1440
        %v1525 = vunpack.c.l.b16 %v1441
        %v1526 = vunpack.c.h.b16 %v1441
        %v1527 = vunpack.c.l.b16 %v1442
        %v1528 = vunpack.c.h.b16 %v1442
        %v1529 = vunpack.c.l.b16 %v1443
        %v1530 = vunpack.c.h.b16 %v1443
        %v1531 = vunpack.c.l.b16 %v1444
        %v1532 = vunpack.c.h.b16 %v1444
        %v1533 = vunpack.c.l.b16 %v1445
        %v1534 = vunpack.c.h.b16 %v1445
        %v1535 = vunpack.c.l.b16 %v1446
        %v1536 = vunpack.c.h.b16 %v1446
        %v1537 = vunpack.c.l.b16 %v1447
        %v1538 = vunpack.c.h.b16 %v1447
        %v1539 = vunpack.c.l.b16 %v1448
        %v1540 = vunpack.c.h.b16 %v1448
        %v1541 = vunpack.c.l.b16 %v1449
        %v1542 = vunpack.c.h.b16 %v1449
        %v1543 = vunpack.c.l.b16 %v1450
        %v1544 = vunpack.c.h.b16 %v1450
        %v1545 = vunpack.c.l.b16 %v1451
        %v1546 = vunpack.c.h.b16 %v1451
        %v1547 = vunpack.c.l.b16 %v1452
        %v1548 = vunpack.c.h.b16 %v1452
        %v1549 = vunpack.c.l.b16 %v1453
        %v1550 = vunpack.c.h.b16 %v1453
        %v1551 = vunpack.c.l.b16 %v1454
        %v1552 = vunpack.c.h.b16 %v1454
        %v1553 = vunpack.c.l.b16 %v1455
        %v1554 = vunpack.c.h.b16 %v1455
        %v1555 = vunpack.c.l.b16 %v1456
        %v1556 = vunpack.c.h.b16 %v1456
        %v1557 = vunpack.c.l.b16 %v1457
        %v1558 = vunpack.c.h.b16 %v1457
        %v1559 = vunpack.c.l.b16 %v1458
        %v1560 = vunpack.c.h.b16 %v1458
        %v1561 = vunpack.c.l.b16 %v1459
        %v1562 = vunpack.c.h.b16 %v1459
        %v1563 = vunpack.c.l.b16 %v1460
        %v1564 = vunpack.c.h.b16 %v1460
        %v1565 = vunpack.c.l.b16 %v1461
        %v1566 = vunpack.c.h.b16 %v1461
        %v1567 = vunpack.c.l.b16 %v1462
        %v1568 = vunpack.c.h.b16 %v1462
        %v1569 = vunpack.c.l.b16 %v1463
        %v1570 = vunpack.c.h.b16 %v1463
        %v1571 = vunpack.c.l.b16 %v1464
        %v1572 = vunpack.c.h.b16 %v1464
        %v1573 = vpack.c.b16 %v1511, %v1509
        %v1574 = vpack.c.b16 %v1512, %v1510
        %v1575 = vpack.c.b16 %v1515, %v1513
        %v1576 = vpack.c.b16 %v1516, %v1514
        %v1577 = vpack.c.b16 %v1519, %v1517
        %v1578 = vpack.c.b16 %v1520, %v1518
        %v1579 = vpack.c.b16 %v1523, %v1521
        %v1580 = vpack.c.b16 %v1524, %v1522
        %v1581 = vpack.c.b16 %v1527, %v1525
        %v1582 = vpack.c.b16 %v1528, %v1526
        %v1583 = vpack.c.b16 %v1531, %v1529
        %v1584 = vpack.c.b16 %v1532, %v1530
        %v1585 = vpack.c.b16 %v1535, %v1533
        %v1586 = vpack.c.b16 %v1536, %v1534
        %v1587 = vpack.c.b16 %v1539, %v1537
        %v1588 = vpack.c.b16 %v1540, %v1538
        %v1589 = vpack.c.b16 %v1543, %v1541
        %v1590 = vpack.c.b16 %v1544, %v1542
        %v1591 = vpack.c.b16 %v1547, %v1545
        %v1592 = vpack.c.b16 %v1548, %v1546
        %v1593 = vpack.c.b16 %v1551, %v1549
        %v1594 = vpack.c.b16 %v1552, %v1550
        %v1595 = vpack.c.b16 %v1555, %v1553
        %v1596 = vpack.c.b16 %v1556, %v1554
        %v1597 = vpack.c.b16 %v1559, %v1557
        %v1598 = vpack.c.b16 %v1560, %v1558
        %v1599 = vpack.c.b16 %v1563, %v1561
        %v1600 = vpack.c.b16 %v1564, %v1562
        %v1601 = vpack.c.b16 %v1567, %v1565
        %v1602 = vpack.c.b16 %v1568, %v1566
        %v1603 = vpack.c.b16 %v1571, %v1569
        %v1604 = vpack.c.b16 %v1572, %v1570
        %1637 = vmatprep.subr.bf16.mxu0 %v1574
        %1638 = vmatpush1.bf16.msra.mxu0 %v1573
        %1639 = vmatprep.subr.bf16.mxu0 %v1576
        %1640 = vmatpush1.bf16.msra.mxu0 %v1575
        %1641 = vmatprep.subr.bf16.mxu0 %v1578
        %1642 = vmatpush1.bf16.msra.mxu0 %v1577
        %1643 = vmatprep.subr.bf16.mxu0 %v1580
        %1644 = vmatpush1.bf16.msra.mxu0 %v1579
        %1645 = vmatprep.subr.bf16.mxu0 %v1582
        %1646 = vmatpush1.bf16.msra.mxu0 %v1581
        %1647 = vmatprep.subr.bf16.mxu0 %v1584
        %1648 = vmatpush1.bf16.msra.mxu0 %v1583
        %1649 = vmatprep.subr.bf16.mxu0 %v1586
        %1650 = vmatpush1.bf16.msra.mxu0 %v1585
        %1651 = vmatprep.subr.bf16.mxu0 %v1588
        %1652 = vmatpush1.bf16.msra.mxu0 %v1587
        %1653 = vmatprep.subr.bf16.mxu0 %v1590
        %1654 = vmatpush1.bf16.msra.mxu0 %v1589
        %1655 = vmatprep.subr.bf16.mxu0 %v1592
        %1656 = vmatpush1.bf16.msra.mxu0 %v1591
        %1657 = vmatprep.subr.bf16.mxu0 %v1594
        %1658 = vmatpush1.bf16.msra.mxu0 %v1593
        %1659 = vmatprep.subr.bf16.mxu0 %v1596
        %1660 = vmatpush1.bf16.msra.mxu0 %v1595
        %1661 = vmatprep.subr.bf16.mxu0 %v1598
        %1662 = vmatpush1.bf16.msra.mxu0 %v1597
        %1663 = vmatprep.subr.bf16.mxu0 %v1600
        %1664 = vmatpush1.bf16.msra.mxu0 %v1599
        %1665 = vmatprep.subr.bf16.mxu0 %v1602
        %1666 = vmatpush1.bf16.msra.mxu0 %v1601
        %1667 = vmatprep.subr.bf16.mxu0 %v1604
        %1668 = vmatpush1.bf16.msra.mxu0 %v1603
        %1669 = vmatprep.mubr.bf16.mxu0 %v1402
        %1670 = vmatmul.mubr.bf16.gmra.mrb[0].mxu0 %v1401
        %v1671 = vpop.f32.mrb[0].mxu0
        %v1672 = vadd.f32 %v1470, %v1671
        %v1673 = vpop.f32.mrb[0].mxu0
        %v1674 = vadd.f32 %v1474, %v1673
        %v1675 = vpop.f32.mrb[0].mxu0
        %v1676 = vadd.f32 %v1470, %v1675
        %v1677 = vpop.f32.mrb[0].mxu0
        %v1678 = vadd.f32 %v1474, %v1677
        %1679 = vmatprep.mubr.bf16.mxu0 %v1404
        %1680 = vmatmul.mubr.bf16.gmra.mrb[0].mxu0 %v1403
        %v1681 = vpop.f32.mrb[0].mxu0
        %v1682 = vadd.f32 %v1470, %v1681
        %v1683 = vpop.f32.mrb[0].mxu0
        %v1684 = vadd.f32 %v1474, %v1683
        %v1685 = vpop.f32.mrb[0].mxu0
        %v1686 = vadd.f32 %v1470, %v1685
        %v1687 = vpop.f32.mrb[0].mxu0
        %v1688 = vadd.f32 %v1474, %v1687
        %1689 = vmatprep.mubr.bf16.mxu0 %v1406
        %1690 = vmatmul.mubr.bf16.gmra.mrb[0].mxu0 %v1405
        %v1691 = vpop.f32.mrb[0].mxu0
        %v1692 = vadd.f32 %v1470, %v1691
        %v1693 = vpop.f32.mrb[0].mxu0
        %v1694 = vadd.f32 %v1474, %v1693
        %v1695 = vpop.f32.mrb[0].mxu0
        %v1696 = vadd.f32 %v1470, %v1695
        %v1697 = vpop.f32.mrb[0].mxu0
        %v1698 = vadd.f32 %v1474, %v1697
        %1699 = vmatprep.mubr.bf16.mxu0 %v1408
        %1700 = vmatmul.mubr.bf16.gmra.mrb[0].mxu0 %v1407
        %v1701 = vpop.f32.mrb[0].mxu0
        %v1702 = vadd.f32 %v1470, %v1701
        %v1703 = vpop.f32.mrb[0].mxu0
        %v1704 = vadd.f32 %v1474, %v1703
        %v1705 = vpop.f32.mrb[0].mxu0
        %v1706 = vadd.f32 %v1470, %v1705
        %v1707 = vpop.f32.mrb[0].mxu0
        %v1708 = vadd.f32 %v1474, %v1707
        %1709 = vmatprep.mubr.bf16.mxu0 %v1410
        %1710 = vmatmul.mubr.bf16.gmra.mrb[0].mxu0 %v1409
        %v1711 = vpop.f32.mrb[0].mxu0
        %v1712 = vadd.f32 %v1470, %v1711
        %v1713 = vpop.f32.mrb[0].mxu0
        %v1714 = vadd.f32 %v1474, %v1713
        %v1715 = vpop.f32.mrb[0].mxu0
        %v1716 = vadd.f32 %v1470, %v1715
        %v1717 = vpop.f32.mrb[0].mxu0
        %v1718 = vadd.f32 %v1474, %v1717
        %1719 = vmatprep.mubr.bf16.mxu0 %v1412
        %1720 = vmatmul.mubr.bf16.gmra.mrb[0].mxu0 %v1411
        %v1721 = vpop.f32.mrb[0].mxu0
        %v1722 = vadd.f32 %v1470, %v1721
        %v1723 = vpop.f32.mrb[0].mxu0
        %v1724 = vadd.f32 %v1474, %v1723
        %v1725 = vpop.f32.mrb[0].mxu0
        %v1726 = vadd.f32 %v1470, %v1725
        %v1727 = vpop.f32.mrb[0].mxu0
        %v1728 = vadd.f32 %v1474, %v1727
        %1729 = vmatprep.mubr.bf16.mxu0 %v1414
        %1730 = vmatmul.mubr.bf16.gmra.mrb[0].mxu0 %v1413
        %v1731 = vpop.f32.mrb[0].mxu0
        %v1732 = vadd.f32 %v1470, %v1731
        %v1733 = vpop.f32.mrb[0].mxu0
        %v1734 = vadd.f32 %v1474, %v1733
        %v1735 = vpop.f32.mrb[0].mxu0
        %v1736 = vadd.f32 %v1470, %v1735
        %v1737 = vpop.f32.mrb[0].mxu0
        %v1738 = vadd.f32 %v1474, %v1737
        %1739 = vmatprep.mubr.bf16.mxu0 %v1416
        %1740 = vmatmul.mubr.bf16.gmra.mrb[0].mxu0 %v1415
        %v1741 = vpop.f32.mrb[0].mxu0
        %v1742 = vadd.f32 %v1470, %v1741
        %v1743 = vpop.f32.mrb[0].mxu0
        %v1744 = vadd.f32 %v1474, %v1743
        %v1745 = vpop.f32.mrb[0].mxu0
        %v1746 = vadd.f32 %v1470, %v1745
        %v1747 = vpop.f32.mrb[0].mxu0
        %v1748 = vadd.f32 %v1474, %v1747
        %1749 = vmatprep.mubr.bf16.mxu0 %v1418
        %1750 = vmatmul.mubr.bf16.gmra.mrb[0].mxu0 %v1417
        %v1751 = vpop.f32.mrb[0].mxu0
        %v1752 = vadd.f32 %v1470, %v1751
        %v1753 = vpop.f32.mrb[0].mxu0
        %v1754 = vadd.f32 %v1474, %v1753
        %v1755 = vpop.f32.mrb[0].mxu0
        %v1756 = vadd.f32 %v1470, %v1755
        %v1757 = vpop.f32.mrb[0].mxu0
        %v1758 = vadd.f32 %v1474, %v1757
        %1759 = vmatprep.mubr.bf16.mxu0 %v1420
        %1760 = vmatmul.mubr.bf16.gmra.mrb[0].mxu0 %v1419
        %v1761 = vpop.f32.mrb[0].mxu0
        %v1762 = vadd.f32 %v1470, %v1761
        %v1763 = vpop.f32.mrb[0].mxu0
        %v1764 = vadd.f32 %v1474, %v1763
        %v1765 = vpop.f32.mrb[0].mxu0
        %v1766 = vadd.f32 %v1470, %v1765
        %v1767 = vpop.f32.mrb[0].mxu0
        %v1768 = vadd.f32 %v1474, %v1767
        %1769 = vmatprep.mubr.bf16.mxu0 %v1422
        %1770 = vmatmul.mubr.bf16.gmra.mrb[0].mxu0 %v1421
        %v1771 = vpop.f32.mrb[0].mxu0
        %v1772 = vadd.f32 %v1470, %v1771
        %v1773 = vpop.f32.mrb[0].mxu0
        %v1774 = vadd.f32 %v1474, %v1773
        %v1775 = vpop.f32.mrb[0].mxu0
        %v1776 = vadd.f32 %v1470, %v1775
        %v1777 = vpop.f32.mrb[0].mxu0
        %v1778 = vadd.f32 %v1474, %v1777
        %1779 = vmatprep.mubr.bf16.mxu0 %v1424
        %1780 = vmatmul.mubr.bf16.gmra.mrb[0].mxu0 %v1423
        %v1781 = vpop.f32.mrb[0].mxu0
        %v1782 = vadd.f32 %v1470, %v1781
        %v1783 = vpop.f32.mrb[0].mxu0
        %v1784 = vadd.f32 %v1474, %v1783
        %v1785 = vpop.f32.mrb[0].mxu0
        %v1786 = vadd.f32 %v1470, %v1785
        %v1787 = vpop.f32.mrb[0].mxu0
        %v1788 = vadd.f32 %v1474, %v1787
        %1789 = vmatprep.mubr.bf16.mxu0 %v1426
        %1790 = vmatmul.mubr.bf16.gmra.mrb[0].mxu0 %v1425
        %v1791 = vpop.f32.mrb[0].mxu0
        %v1792 = vadd.f32 %v1470, %v1791
        %v1793 = vpop.f32.mrb[0].mxu0
        %v1794 = vadd.f32 %v1474, %v1793
        %v1795 = vpop.f32.mrb[0].mxu0
        %v1796 = vadd.f32 %v1470, %v1795
        %v1797 = vpop.f32.mrb[0].mxu0
        %v1798 = vadd.f32 %v1474, %v1797
        %1799 = vmatprep.mubr.bf16.mxu0 %v1428
        %1800 = vmatmul.mubr.bf16.gmra.mrb[0].mxu0 %v1427
        %v1801 = vpop.f32.mrb[0].mxu0
        %v1802 = vadd.f32 %v1470, %v1801
        %v1803 = vpop.f32.mrb[0].mxu0
        %v1804 = vadd.f32 %v1474, %v1803
        %v1805 = vpop.f32.mrb[0].mxu0
        %v1806 = vadd.f32 %v1470, %v1805
        %v1807 = vpop.f32.mrb[0].mxu0
        %v1808 = vadd.f32 %v1474, %v1807
        %1809 = vmatprep.mubr.bf16.mxu0 %v1430
        %1810 = vmatmul.mubr.bf16.gmra.mrb[0].mxu0 %v1429
        %v1811 = vpop.f32.mrb[0].mxu0
        %v1812 = vadd.f32 %v1470, %v1811
        %v1813 = vpop.f32.mrb[0].mxu0
        %v1814 = vadd.f32 %v1474, %v1813
        %v1815 = vpop.f32.mrb[0].mxu0
        %v1816 = vadd.f32 %v1470, %v1815
        %v1817 = vpop.f32.mrb[0].mxu0
        %v1818 = vadd.f32 %v1474, %v1817
        %1819 = vmatprep.mubr.bf16.mxu0 %v1432
        %1820 = vmatmul.mubr.bf16.gmra.mrb[0].mxu0 %v1431
        %v1821 = vpop.f32.mrb[0].mxu0
        %v1822 = vadd.f32 %v1470, %v1821
        %v1823 = vpop.f32.mrb[0].mxu0
        %v1824 = vadd.f32 %v1474, %v1823
        %v1825 = vpop.f32.mrb[0].mxu0
        %v1826 = vadd.f32 %v1470, %v1825
        %v1827 = vpop.f32.mrb[0].mxu0
        %v1828 = vadd.f32 %v1474, %v1827
        %1829 = vdwg.mxu0
        %v1830 = vmax.f32 %v1672, 0.0
        %v1831 = vmax.f32 %v1674, 0.0
        %v1832 = vmax.f32 %v1676, 0.0
        %v1833 = vmax.f32 %v1678, 0.0
        %v1834 = vmax.f32 %v1682, 0.0
        %v1835 = vmax.f32 %v1684, 0.0
        %v1836 = vmax.f32 %v1686, 0.0
        %v1837 = vmax.f32 %v1688, 0.0
        %v1838 = vmax.f32 %v1692, 0.0
        %v1839 = vmax.f32 %v1694, 0.0
        %v1840 = vmax.f32 %v1696, 0.0
        %v1841 = vmax.f32 %v1698, 0.0
        %v1842 = vmax.f32 %v1702, 0.0
        %v1843 = vmax.f32 %v1704, 0.0
        %v1844 = vmax.f32 %v1706, 0.0
        %v1845 = vmax.f32 %v1708, 0.0
        %v1846 = vmax.f32 %v1712, 0.0
        %v1847 = vmax.f32 %v1714, 0.0
        %v1848 = vmax.f32 %v1716, 0.0
        %v1849 = vmax.f32 %v1718, 0.0
        %v1850 = vmax.f32 %v1722, 0.0
        %v1851 = vmax.f32 %v1724, 0.0
        %v1852 = vmax.f32 %v1726, 0.0
        %v1853 = vmax.f32 %v1728, 0.0
        %v1854 = vmax.f32 %v1732, 0.0
        %v1855 = vmax.f32 %v1734, 0.0
        %v1856 = vmax.f32 %v1736, 0.0
        %v1857 = vmax.f32 %v1738, 0.0
        %v1858 = vmax.f32 %v1742, 0.0
        %v1859 = vmax.f32 %v1744, 0.0
        %v1860 = vmax.f32 %v1746, 0.0
        %v1861 = vmax.f32 %v1748, 0.0
        %v1862 = vmax.f32 %v1752, 0.0
        %v1863 = vmax.f32 %v1754, 0.0
        %v1864 = vmax.f32 %v1756, 0.0
        %v1865 = vmax.f32 %v1758, 0.0
        %v1866 = vmax.f32 %v1762, 0.0
        %v1867 = vmax.f32 %v1764, 0.0
        %v1868 = vmax.f32 %v1766, 0.0
        %v1869 = vmax.f32 %v1768, 0.0
        %v1870 = vmax.f32 %v1772, 0.0
        %v1871 = vmax.f32 %v1774, 0.0
        %v1872 = vmax.f32 %v1776, 0.0
        %v1873 = vmax.f32 %v1778, 0.0
        %v1874 = vmax.f32 %v1782, 0.0
        %v1875 = vmax.f32 %v1784, 0.0
        %v1876 = vmax.f32 %v1786, 0.0
        %v1877 = vmax.f32 %v1788, 0.0
        %v1878 = vmax.f32 %v1792, 0.0
        %v1879 = vmax.f32 %v1794, 0.0
        %v1880 = vmax.f32 %v1796, 0.0
        %v1881 = vmax.f32 %v1798, 0.0
        %v1882 = vmax.f32 %v1802, 0.0
        %v1883 = vmax.f32 %v1804, 0.0
        %v1884 = vmax.f32 %v1806, 0.0
        %v1885 = vmax.f32 %v1808, 0.0
        %v1886 = vmax.f32 %v1812, 0.0
        %v1887 = vmax.f32 %v1814, 0.0
        %v1888 = vmax.f32 %v1816, 0.0
        %v1889 = vmax.f32 %v1818, 0.0
        %v1890 = vmax.f32 %v1822, 0.0
        %v1891 = vmax.f32 %v1824, 0.0
        %v1892 = vmax.f32 %v1826, 0.0
        %v1893 = vmax.f32 %v1828, 0.0
        %v1894 = vadd.f32 %v1337, %v1830
        %v1895 = vadd.f32 %v1338, %v1831
        %v1896 = vadd.f32 %v1339, %v1832
        %v1897 = vadd.f32 %v1340, %v1833
        %v1898 = vadd.f32 %v1341, %v1834
        %v1899 = vadd.f32 %v1342, %v1835
        %v1900 = vadd.f32 %v1343, %v1836
        %v1901 = vadd.f32 %v1344, %v1837
        %v1902 = vadd.f32 %v1345, %v1838
        %v1903 = vadd.f32 %v1346, %v1839
        %v1904 = vadd.f32 %v1347, %v1840
        %v1905 = vadd.f32 %v1348, %v1841
        %v1906 = vadd.f32 %v1349, %v1842
        %v1907 = vadd.f32 %v1350, %v1843
        %v1908 = vadd.f32 %v1351, %v1844
        %v1909 = vadd.f32 %v1352, %v1845
        %v1910 = vadd.f32 %v1353, %v1846
        %v1911 = vadd.f32 %v1354, %v1847
        %v1912 = vadd.f32 %v1355, %v1848
        %v1913 = vadd.f32 %v1356, %v1849
        %v1914 = vadd.f32 %v1357, %v1850
        %v1915 = vadd.f32 %v1358, %v1851
        %v1916 = vadd.f32 %v1359, %v1852
        %v1917 = vadd.f32 %v1360, %v1853
        %v1918 = vadd.f32 %v1361, %v1854
        %v1919 = vadd.f32 %v1362, %v1855
        %v1920 = vadd.f32 %v1363, %v1856
        %v1921 = vadd.f32 %v1364, %v1857
        %v1922 = vadd.f32 %v1365, %v1858
        %v1923 = vadd.f32 %v1366, %v1859
        %v1924 = vadd.f32 %v1367, %v1860
        %v1925 = vadd.f32 %v1368, %v1861
        %v1926 = vadd.f32 %v1369, %v1862
        %v1927 = vadd.f32 %v1370, %v1863
        %v1928 = vadd.f32 %v1371, %v1864
        %v1929 = vadd.f32 %v1372, %v1865
        %v1930 = vadd.f32 %v1373, %v1866
        %v1931 = vadd.f32 %v1374, %v1867
        %v1932 = vadd.f32 %v1375, %v1868
        %v1933 = vadd.f32 %v1376, %v1869
        %v1934 = vadd.f32 %v1377, %v1870
        %v1935 = vadd.f32 %v1378, %v1871
        %v1936 = vadd.f32 %v1379, %v1872
        %v1937 = vadd.f32 %v1380, %v1873
        %v1938 = vadd.f32 %v1381, %v1874
        %v1939 = vadd.f32 %v1382, %v1875
        %v1940 = vadd.f32 %v1383, %v1876
        %v1941 = vadd.f32 %v1384, %v1877
        %v1942 = vadd.f32 %v1385, %v1878
        %v1943 = vadd.f32 %v1386, %v1879
        %v1944 = vadd.f32 %v1387, %v1880
        %v1945 = vadd.f32 %v1388, %v1881
        %v1946 = vadd.f32 %v1389, %v1882
        %v1947 = vadd.f32 %v1390, %v1883
        %v1948 = vadd.f32 %v1391, %v1884
        %v1949 = vadd.f32 %v1392, %v1885
        %v1950 = vadd.f32 %v1393, %v1886
        %v1951 = vadd.f32 %v1394, %v1887
        %v1952 = vadd.f32 %v1395, %v1888
        %v1953 = vadd.f32 %v1396, %v1889
        %v1954 = vadd.f32 %v1397, %v1890
        %v1955 = vadd.f32 %v1398, %v1891
        %v1956 = vadd.f32 %v1399, %v1892
        %v1957 = vadd.f32 %v1400, %v1893
        %v1958 = vmax.f32 %v1894, 0.0
        %v1959 = vmax.f32 %v1895, 0.0
        %v1960 = vmax.f32 %v1896, 0.0
        %v1961 = vmax.f32 %v1897, 0.0
        %v1962 = vmax.f32 %v1898, 0.0
        %v1963 = vmax.f32 %v1899, 0.0
        %v1964 = vmax.f32 %v1900, 0.0
        %v1965 = vmax.f32 %v1901, 0.0
        %v1966 = vmax.f32 %v1902, 0.0
        %v1967 = vmax.f32 %v1903, 0.0
        %v1968 = vmax.f32 %v1904, 0.0
        %v1969 = vmax.f32 %v1905, 0.0
        %v1970 = vmax.f32 %v1906, 0.0
        %v1971 = vmax.f32 %v1907, 0.0
        %v1972 = vmax.f32 %v1908, 0.0
        %v1973 = vmax.f32 %v1909, 0.0
        %v1974 = vmax.f32 %v1910, 0.0
        %v1975 = vmax.f32 %v1911, 0.0
        %v1976 = vmax.f32 %v1912, 0.0
        %v1977 = vmax.f32 %v1913, 0.0
        %v1978 = vmax.f32 %v1914, 0.0
        %v1979 = vmax.f32 %v1915, 0.0
        %v1980 = vmax.f32 %v1916, 0.0
        %v1981 = vmax.f32 %v1917, 0.0
        %v1982 = vmax.f32 %v1918, 0.0
        %v1983 = vmax.f32 %v1919, 0.0
        %v1984 = vmax.f32 %v1920, 0.0
        %v1985 = vmax.f32 %v1921, 0.0
        %v1986 = vmax.f32 %v1922, 0.0
        %v1987 = vmax.f32 %v1923, 0.0
        %v1988 = vmax.f32 %v1924, 0.0
        %v1989 = vmax.f32 %v1925, 0.0
        %v1990 = vmax.f32 %v1926, 0.0
        %v1991 = vmax.f32 %v1927, 0.0
        %v1992 = vmax.f32 %v1928, 0.0
        %v1993 = vmax.f32 %v1929, 0.0
        %v1994 = vmax.f32 %v1930, 0.0
        %v1995 = vmax.f32 %v1931, 0.0
        %v1996 = vmax.f32 %v1932, 0.0
        %v1997 = vmax.f32 %v1933, 0.0
        %v1998 = vmax.f32 %v1934, 0.0
        %v1999 = vmax.f32 %v1935, 0.0
        %v2000 = vmax.f32 %v1936, 0.0
        %v2001 = vmax.f32 %v1937, 0.0
        %v2002 = vmax.f32 %v1938, 0.0
        %v2003 = vmax.f32 %v1939, 0.0
        %v2004 = vmax.f32 %v1940, 0.0
        %v2005 = vmax.f32 %v1941, 0.0
        %v2006 = vmax.f32 %v1942, 0.0
        %v2007 = vmax.f32 %v1943, 0.0
        %v2008 = vmax.f32 %v1944, 0.0
        %v2009 = vmax.f32 %v1945, 0.0
        %v2010 = vmax.f32 %v1946, 0.0
        %v2011 = vmax.f32 %v1947, 0.0
        %v2012 = vmax.f32 %v1948, 0.0
        %v2013 = vmax.f32 %v1949, 0.0
        %v2014 = vmax.f32 %v1950, 0.0
        %v2015 = vmax.f32 %v1951, 0.0
        %v2016 = vmax.f32 %v1952, 0.0
        %v2017 = vmax.f32 %v1953, 0.0
        %v2018 = vmax.f32 %v1954, 0.0
        %v2019 = vmax.f32 %v1955, 0.0
        %v2020 = vmax.f32 %v1956, 0.0
        %v2021 = vmax.f32 %v1957, 0.0
        %v2022 = vpack.c.bf16 %v1960, %v1958
        %v2023 = vpack.c.bf16 %v1961, %v1959
        %v2024 = vpack.c.bf16 %v1964, %v1962
        %v2025 = vpack.c.bf16 %v1965, %v1963
        %v2026 = vpack.c.bf16 %v1968, %v1966
        %v2027 = vpack.c.bf16 %v1969, %v1967
        %v2028 = vpack.c.bf16 %v1972, %v1970
        %v2029 = vpack.c.bf16 %v1973, %v1971
        %v2030 = vpack.c.bf16 %v1976, %v1974
        %v2031 = vpack.c.bf16 %v1977, %v1975
        %v2032 = vpack.c.bf16 %v1980, %v1978
        %v2033 = vpack.c.bf16 %v1981, %v1979
        %v2034 = vpack.c.bf16 %v1984, %v1982
        %v2035 = vpack.c.bf16 %v1985, %v1983
        %v2036 = vpack.c.bf16 %v1988, %v1986
        %v2037 = vpack.c.bf16 %v1989, %v1987
        %v2038 = vpack.c.bf16 %v1992, %v1990
        %v2039 = vpack.c.bf16 %v1993, %v1991
        %v2040 = vpack.c.bf16 %v1996, %v1994
        %v2041 = vpack.c.bf16 %v1997, %v1995
        %v2042 = vpack.c.bf16 %v2000, %v1998
        %v2043 = vpack.c.bf16 %v2001, %v1999
        %v2044 = vpack.c.bf16 %v2004, %v2002
        %v2045 = vpack.c.bf16 %v2005, %v2003
        %v2046 = vpack.c.bf16 %v2008, %v2006
        %v2047 = vpack.c.bf16 %v2009, %v2007
        %v2048 = vpack.c.bf16 %v2012, %v2010
        %v2049 = vpack.c.bf16 %v2013, %v2011
        %v2050 = vpack.c.bf16 %v2016, %v2014
        %v2051 = vpack.c.bf16 %v2017, %v2015
        %v2052 = vpack.c.bf16 %v2020, %v2018
        %v2053 = vpack.c.bf16 %v2021, %v2019
        %v2054 = vld [vmem:[%s7] sm:$0xf]
        %v2055 = vld [vmem:[%s7 + $0x4] sm:$0xf]
        %v2056 = vld [vmem:[%s7 + $0x8] sm:$0xf]
        %v2057 = vld [vmem:[%s7 + $0xc] sm:$0xf]
        %v2058 = vld [vmem:[%s7 + $0x10] sm:$0xf]
        %v2059 = vld [vmem:[%s7 + $0x14] sm:$0xf]
        %v2060 = vld [vmem:[%s7 + $0x18] sm:$0xf]
        %v2061 = vld [vmem:[%s7 + $0x1c] sm:$0xf]
        %v2062 = vld [vmem:[%s7 + $0x20] sm:$0xf]
        %v2063 = vld [vmem:[%s7 + $0x24] sm:$0xf]
        %v2064 = vld [vmem:[%s7 + $0x28] sm:$0xf]
        %v2065 = vld [vmem:[%s7 + $0x2c] sm:$0xf]
        %v2066 = vld [vmem:[%s7 + $0x30] sm:$0xf]
        %v2067 = vld [vmem:[%s7 + $0x34] sm:$0xf]
        %v2068 = vld [vmem:[%s7 + $0x38] sm:$0xf]
        %v2069 = vld [vmem:[%s7 + $0x3c] sm:$0xf]
        %v2070 = vld [vmem:[%s7 + $0x40] sm:$0xf]
        %v2071 = vld [vmem:[%s7 + $0x44] sm:$0xf]
        %v2072 = vld [vmem:[%s7 + $0x48] sm:$0xf]
        %v2073 = vld [vmem:[%s7 + $0x4c] sm:$0xf]
        %v2074 = vld [vmem:[%s7 + $0x50] sm:$0xf]
        %v2075 = vld [vmem:[%s7 + $0x54] sm:$0xf]
        %v2076 = vld [vmem:[%s7 + $0x58] sm:$0xf]
        %v2077 = vld [vmem:[%s7 + $0x5c] sm:$0xf]
        %v2078 = vld [vmem:[%s7 + $0x60] sm:$0xf]
        %v2079 = vld [vmem:[%s7 + $0x64] sm:$0xf]
        %v2080 = vld [vmem:[%s7 + $0x68] sm:$0xf]
        %v2081 = vld [vmem:[%s7 + $0x6c] sm:$0xf]
        %v2082 = vld [vmem:[%s7 + $0x70] sm:$0xf]
        %v2083 = vld [vmem:[%s7 + $0x74] sm:$0xf]
        %v2084 = vld [vmem:[%s7 + $0x78] sm:$0xf]
        %v2085 = vld [vmem:[%s7 + $0x7c] sm:$0xf]
        %v2086 = vld [vmem:[%s8] sm:$0x1]
        %v2088 = vlaneseq
        %v2089 = vshrl.u32 %v2088, 7
        %v2090 = vsub.s32 0, %v2089
        %v2091 = vrot.slane %v2086, %v2090
        %v2125 = vunpack.c.l.b16 %v2054
        %v2126 = vunpack.c.l.b16 %v2055
        %v2127 = vunpack.c.l.b16 %v2056
        %v2128 = vunpack.c.l.b16 %v2057
        %v2129 = vunpack.c.l.b16 %v2058
        %v2130 = vunpack.c.l.b16 %v2059
        %v2131 = vunpack.c.l.b16 %v2060
        %v2132 = vunpack.c.l.b16 %v2061
        %v2133 = vunpack.c.l.b16 %v2062
        %v2134 = vunpack.c.l.b16 %v2063
        %v2135 = vunpack.c.l.b16 %v2064
        %v2136 = vunpack.c.l.b16 %v2065
        %v2137 = vunpack.c.l.b16 %v2066
        %v2138 = vunpack.c.l.b16 %v2067
        %v2139 = vunpack.c.l.b16 %v2068
        %v2140 = vunpack.c.l.b16 %v2069
        %v2141 = vunpack.c.l.b16 %v2070
        %v2142 = vunpack.c.l.b16 %v2071
        %v2143 = vunpack.c.l.b16 %v2072
        %v2144 = vunpack.c.l.b16 %v2073
        %v2145 = vunpack.c.l.b16 %v2074
        %v2146 = vunpack.c.l.b16 %v2075
        %v2147 = vunpack.c.l.b16 %v2076
        %v2148 = vunpack.c.l.b16 %v2077
        %v2149 = vunpack.c.l.b16 %v2078
        %v2150 = vunpack.c.l.b16 %v2079
        %v2151 = vunpack.c.l.b16 %v2080
        %v2152 = vunpack.c.l.b16 %v2081
        %v2153 = vunpack.c.l.b16 %v2082
        %v2154 = vunpack.c.l.b16 %v2083
        %v2155 = vunpack.c.l.b16 %v2084
        %v2156 = vunpack.c.l.b16 %v2085
        %v2157 = vpack.c.b16 %v2126, %v2125
        %v2158 = vpack.c.b16 %v2128, %v2127
        %v2159 = vpack.c.b16 %v2130, %v2129
        %v2160 = vpack.c.b16 %v2132, %v2131
        %v2161 = vpack.c.b16 %v2134, %v2133
        %v2162 = vpack.c.b16 %v2136, %v2135
        %v2163 = vpack.c.b16 %v2138, %v2137
        %v2164 = vpack.c.b16 %v2140, %v2139
        %v2165 = vpack.c.b16 %v2142, %v2141
        %v2166 = vpack.c.b16 %v2144, %v2143
        %v2167 = vpack.c.b16 %v2146, %v2145
        %v2168 = vpack.c.b16 %v2148, %v2147
        %v2169 = vpack.c.b16 %v2150, %v2149
        %v2170 = vpack.c.b16 %v2152, %v2151
        %v2171 = vpack.c.b16 %v2154, %v2153
        %v2172 = vpack.c.b16 %v2156, %v2155
        %2189 = vmatprep.subr.bf16.mxu0 0
        %2190 = vmatpush1.bf16.msra.mxu0 %v2157
        %2191 = vmatprep.subr.bf16.mxu0 0
        %2192 = vmatpush1.bf16.msra.mxu0 %v2158
        %2193 = vmatprep.subr.bf16.mxu0 0
        %2194 = vmatpush1.bf16.msra.mxu0 %v2159
        %2195 = vmatprep.subr.bf16.mxu0 0
        %2196 = vmatpush1.bf16.msra.mxu0 %v2160
        %2197 = vmatprep.subr.bf16.mxu0 0
        %2198 = vmatpush1.bf16.msra.mxu0 %v2161
        %2199 = vmatprep.subr.bf16.mxu0 0
        %2200 = vmatpush1.bf16.msra.mxu0 %v2162
        %2201 = vmatprep.subr.bf16.mxu0 0
        %2202 = vmatpush1.bf16.msra.mxu0 %v2163
        %2203 = vmatprep.subr.bf16.mxu0 0
        %2204 = vmatpush1.bf16.msra.mxu0 %v2164
        %2205 = vmatprep.subr.bf16.mxu0 0
        %2206 = vmatpush1.bf16.msra.mxu0 %v2165
        %2207 = vmatprep.subr.bf16.mxu0 0
        %2208 = vmatpush1.bf16.msra.mxu0 %v2166
        %2209 = vmatprep.subr.bf16.mxu0 0
        %2210 = vmatpush1.bf16.msra.mxu0 %v2167
        %2211 = vmatprep.subr.bf16.mxu0 0
        %2212 = vmatpush1.bf16.msra.mxu0 %v2168
        %2213 = vmatprep.subr.bf16.mxu0 0
        %2214 = vmatpush1.bf16.msra.mxu0 %v2169
        %2215 = vmatprep.subr.bf16.mxu0 0
        %2216 = vmatpush1.bf16.msra.mxu0 %v2170
        %2217 = vmatprep.subr.bf16.mxu0 0
        %2218 = vmatpush1.bf16.msra.mxu0 %v2171
        %2219 = vmatprep.subr.bf16.mxu0 0
        %2220 = vmatpush1.bf16.msra.mxu0 %v2172
        %2221 = vmatprep.mubr.bf16.mxu0 %v2023
        %2222 = vmatmul.mubr.bf16.gmra.mrb[0].mxu0 %v2022
        %v2223 = vpop.f32.mrb[0].mxu0
        %v2224 = vadd.f32 %v2091, %v2223
        %v2225 = vpop.f32.mrb[0].mxu0
        %v2226 = vpop.f32.mrb[0].mxu0
        %v2227 = vadd.f32 %v2091, %v2226
        %v2228 = vpop.f32.mrb[0].mxu0
        %2229 = vmatprep.mubr.bf16.mxu0 %v2025
        %2230 = vmatmul.mubr.bf16.gmra.mrb[0].mxu0 %v2024
        %v2231 = vpop.f32.mrb[0].mxu0
        %v2232 = vadd.f32 %v2091, %v2231
        %v2233 = vpop.f32.mrb[0].mxu0
        %v2234 = vpop.f32.mrb[0].mxu0
        %v2235 = vadd.f32 %v2091, %v2234
        %v2236 = vpop.f32.mrb[0].mxu0
        %2237 = vmatprep.mubr.bf16.mxu0 %v2027
        %2238 = vmatmul.mubr.bf16.gmra.mrb[0].mxu0 %v2026
        %v2239 = vpop.f32.mrb[0].mxu0
        %v2240 = vadd.f32 %v2091, %v2239
        %v2241 = vpop.f32.mrb[0].mxu0
        %v2242 = vpop.f32.mrb[0].mxu0
        %v2243 = vadd.f32 %v2091, %v2242
        %v2244 = vpop.f32.mrb[0].mxu0
        %2245 = vmatprep.mubr.bf16.mxu0 %v2029
        %2246 = vmatmul.mubr.bf16.gmra.mrb[0].mxu0 %v2028
        %v2247 = vpop.f32.mrb[0].mxu0
        %v2248 = vadd.f32 %v2091, %v2247
        %v2249 = vpop.f32.mrb[0].mxu0
        %v2250 = vpop.f32.mrb[0].mxu0
        %v2251 = vadd.f32 %v2091, %v2250
        %v2252 = vpop.f32.mrb[0].mxu0
        %2253 = vmatprep.mubr.bf16.mxu0 %v2031
        %2254 = vmatmul.mubr.bf16.gmra.mrb[0].mxu0 %v2030
        %v2255 = vpop.f32.mrb[0].mxu0
        %v2256 = vadd.f32 %v2091, %v2255
        %v2257 = vpop.f32.mrb[0].mxu0
        %v2258 = vpop.f32.mrb[0].mxu0
        %v2259 = vadd.f32 %v2091, %v2258
        %v2260 = vpop.f32.mrb[0].mxu0
        %2261 = vmatprep.mubr.bf16.mxu0 %v2033
        %2262 = vmatmul.mubr.bf16.gmra.mrb[0].mxu0 %v2032
        %v2263 = vpop.f32.mrb[0].mxu0
        %v2264 = vadd.f32 %v2091, %v2263
        %v2265 = vpop.f32.mrb[0].mxu0
        %v2266 = vpop.f32.mrb[0].mxu0
        %v2267 = vadd.f32 %v2091, %v2266
        %v2268 = vpop.f32.mrb[0].mxu0
        %2269 = vmatprep.mubr.bf16.mxu0 %v2035
        %2270 = vmatmul.mubr.bf16.gmra.mrb[0].mxu0 %v2034
        %v2271 = vpop.f32.mrb[0].mxu0
        %v2272 = vadd.f32 %v2091, %v2271
        %v2273 = vpop.f32.mrb[0].mxu0
        %v2274 = vpop.f32.mrb[0].mxu0
        %v2275 = vadd.f32 %v2091, %v2274
        %v2276 = vpop.f32.mrb[0].mxu0
        %2277 = vmatprep.mubr.bf16.mxu0 %v2037
        %2278 = vmatmul.mubr.bf16.gmra.mrb[0].mxu0 %v2036
        %v2279 = vpop.f32.mrb[0].mxu0
        %v2280 = vadd.f32 %v2091, %v2279
        %v2281 = vpop.f32.mrb[0].mxu0
        %v2282 = vpop.f32.mrb[0].mxu0
        %v2283 = vadd.f32 %v2091, %v2282
        %v2284 = vpop.f32.mrb[0].mxu0
        %2285 = vmatprep.mubr.bf16.mxu0 %v2039
        %2286 = vmatmul.mubr.bf16.gmra.mrb[0].mxu0 %v2038
        %v2287 = vpop.f32.mrb[0].mxu0
        %v2288 = vadd.f32 %v2091, %v2287
        %v2289 = vpop.f32.mrb[0].mxu0
        %v2290 = vpop.f32.mrb[0].mxu0
        %v2291 = vadd.f32 %v2091, %v2290
        %v2292 = vpop.f32.mrb[0].mxu0
        %2293 = vmatprep.mubr.bf16.mxu0 %v2041
        %2294 = vmatmul.mubr.bf16.gmra.mrb[0].mxu0 %v2040
        %v2295 = vpop.f32.mrb[0].mxu0
        %v2296 = vadd.f32 %v2091, %v2295
        %v2297 = vpop.f32.mrb[0].mxu0
        %v2298 = vpop.f32.mrb[0].mxu0
        %v2299 = vadd.f32 %v2091, %v2298
        %v2300 = vpop.f32.mrb[0].mxu0
        %2301 = vmatprep.mubr.bf16.mxu0 %v2043
        %2302 = vmatmul.mubr.bf16.gmra.mrb[0].mxu0 %v2042
        %v2303 = vpop.f32.mrb[0].mxu0
        %v2304 = vadd.f32 %v2091, %v2303
        %v2305 = vpop.f32.mrb[0].mxu0
        %v2306 = vpop.f32.mrb[0].mxu0
        %v2307 = vadd.f32 %v2091, %v2306
        %v2308 = vpop.f32.mrb[0].mxu0
        %2309 = vmatprep.mubr.bf16.mxu0 %v2045
        %2310 = vmatmul.mubr.bf16.gmra.mrb[0].mxu0 %v2044
        %v2311 = vpop.f32.mrb[0].mxu0
        %v2312 = vadd.f32 %v2091, %v2311
        %v2313 = vpop.f32.mrb[0].mxu0
        %v2314 = vpop.f32.mrb[0].mxu0
        %v2315 = vadd.f32 %v2091, %v2314
        %v2316 = vpop.f32.mrb[0].mxu0
        %2317 = vmatprep.mubr.bf16.mxu0 %v2047
        %2318 = vmatmul.mubr.bf16.gmra.mrb[0].mxu0 %v2046
        %v2319 = vpop.f32.mrb[0].mxu0
        %v2320 = vadd.f32 %v2091, %v2319
        %v2321 = vpop.f32.mrb[0].mxu0
        %v2322 = vpop.f32.mrb[0].mxu0
        %v2323 = vadd.f32 %v2091, %v2322
        %v2324 = vpop.f32.mrb[0].mxu0
        %2325 = vmatprep.mubr.bf16.mxu0 %v2049
        %2326 = vmatmul.mubr.bf16.gmra.mrb[0].mxu0 %v2048
        %v2327 = vpop.f32.mrb[0].mxu0
        %v2328 = vadd.f32 %v2091, %v2327
        %v2329 = vpop.f32.mrb[0].mxu0
        %v2330 = vpop.f32.mrb[0].mxu0
        %v2331 = vadd.f32 %v2091, %v2330
        %v2332 = vpop.f32.mrb[0].mxu0
        %2333 = vmatprep.mubr.bf16.mxu0 %v2051
        %2334 = vmatmul.mubr.bf16.gmra.mrb[0].mxu0 %v2050
        %v2335 = vpop.f32.mrb[0].mxu0
        %v2336 = vadd.f32 %v2091, %v2335
        %v2337 = vpop.f32.mrb[0].mxu0
        %v2338 = vpop.f32.mrb[0].mxu0
        %v2339 = vadd.f32 %v2091, %v2338
        %v2340 = vpop.f32.mrb[0].mxu0
        %2341 = vmatprep.mubr.bf16.mxu0 %v2053
        %2342 = vmatmul.mubr.bf16.gmra.mrb[0].mxu0 %v2052
        %v2343 = vpop.f32.mrb[0].mxu0
        %v2344 = vadd.f32 %v2091, %v2343
        %v2345 = vpop.f32.mrb[0].mxu0
        %v2346 = vpop.f32.mrb[0].mxu0
        %v2347 = vadd.f32 %v2091, %v2346
        %v2348 = vpop.f32.mrb[0].mxu0
        %2349 = vdwg.mxu0
        %v2350 = vpack.c.bf16 %v2227, %v2224
        %v2351 = vpack.c.bf16 %v2235, %v2232
        %v2352 = vpack.c.bf16 %v2243, %v2240
        %v2353 = vpack.c.bf16 %v2251, %v2248
        %v2354 = vpack.c.bf16 %v2259, %v2256
        %v2355 = vpack.c.bf16 %v2267, %v2264
        %v2356 = vpack.c.bf16 %v2275, %v2272
        %v2357 = vpack.c.bf16 %v2283, %v2280
        %v2358 = vpack.c.bf16 %v2291, %v2288
        %v2359 = vpack.c.bf16 %v2299, %v2296
        %v2360 = vpack.c.bf16 %v2307, %v2304
        %v2361 = vpack.c.bf16 %v2315, %v2312
        %v2362 = vpack.c.bf16 %v2323, %v2320
        %v2363 = vpack.c.bf16 %v2331, %v2328
        %v2364 = vpack.c.bf16 %v2339, %v2336
        %v2365 = vpack.c.bf16 %v2347, %v2344
        %v2382 = vunpack.c.l.b16 %v2350
        %v2383 = vunpack.c.h.b16 %v2350
        %v2384 = vunpack.c.l.b16 %v2351
        %v2385 = vunpack.c.h.b16 %v2351
        %v2386 = vunpack.c.l.b16 %v2352
        %v2387 = vunpack.c.h.b16 %v2352
        %v2388 = vunpack.c.l.b16 %v2353
        %v2389 = vunpack.c.h.b16 %v2353
        %v2390 = vunpack.c.l.b16 %v2354
        %v2391 = vunpack.c.h.b16 %v2354
        %v2392 = vunpack.c.l.b16 %v2355
        %v2393 = vunpack.c.h.b16 %v2355
        %v2394 = vunpack.c.l.b16 %v2356
        %v2395 = vunpack.c.h.b16 %v2356
        %v2396 = vunpack.c.l.b16 %v2357
        %v2397 = vunpack.c.h.b16 %v2357
        %v2398 = vunpack.c.l.b16 %v2358
        %v2399 = vunpack.c.h.b16 %v2358
        %v2400 = vunpack.c.l.b16 %v2359
        %v2401 = vunpack.c.h.b16 %v2359
        %v2402 = vunpack.c.l.b16 %v2360
        %v2403 = vunpack.c.h.b16 %v2360
        %v2404 = vunpack.c.l.b16 %v2361
        %v2405 = vunpack.c.h.b16 %v2361
        %v2406 = vunpack.c.l.b16 %v2362
        %v2407 = vunpack.c.h.b16 %v2362
        %v2408 = vunpack.c.l.b16 %v2363
        %v2409 = vunpack.c.h.b16 %v2363
        %v2410 = vunpack.c.l.b16 %v2364
        %v2411 = vunpack.c.h.b16 %v2364
        %v2412 = vunpack.c.l.b16 %v2365
        %v2413 = vunpack.c.h.b16 %v2365
        %v2414 = vpack.c.b16 %v2382, %v2382
        %v2415 = vpack.c.b16 %v2383, %v2383
        %v2416 = vpack.c.b16 %v2384, %v2384
        %v2417 = vpack.c.b16 %v2385, %v2385
        %v2418 = vpack.c.b16 %v2386, %v2386
        %v2419 = vpack.c.b16 %v2387, %v2387
        %v2420 = vpack.c.b16 %v2388, %v2388
        %v2421 = vpack.c.b16 %v2389, %v2389
        %v2422 = vpack.c.b16 %v2390, %v2390
        %v2423 = vpack.c.b16 %v2391, %v2391
        %v2424 = vpack.c.b16 %v2392, %v2392
        %v2425 = vpack.c.b16 %v2393, %v2393
        %v2426 = vpack.c.b16 %v2394, %v2394
        %v2427 = vpack.c.b16 %v2395, %v2395
        %v2428 = vpack.c.b16 %v2396, %v2396
        %v2429 = vpack.c.b16 %v2397, %v2397
        %v2430 = vpack.c.b16 %v2398, %v2398
        %v2431 = vpack.c.b16 %v2399, %v2399
        %v2432 = vpack.c.b16 %v2400, %v2400
        %v2433 = vpack.c.b16 %v2401, %v2401
        %v2434 = vpack.c.b16 %v2402, %v2402
        %v2435 = vpack.c.b16 %v2403, %v2403
        %v2436 = vpack.c.b16 %v2404, %v2404
        %v2437 = vpack.c.b16 %v2405, %v2405
        %v2438 = vpack.c.b16 %v2406, %v2406
        %v2439 = vpack.c.b16 %v2407, %v2407
        %v2440 = vpack.c.b16 %v2408, %v2408
        %v2441 = vpack.c.b16 %v2409, %v2409
        %v2442 = vpack.c.b16 %v2410, %v2410
        %v2443 = vpack.c.b16 %v2411, %v2411
        %v2444 = vpack.c.b16 %v2412, %v2412
        %v2445 = vpack.c.b16 %v2413, %v2413
        %2478 = vst [vmem:[%s353] sm:$0xf] %v2414
        %2479 = vst [vmem:[%s353 + $0x4] sm:$0xf] %v2415
        %2480 = vst [vmem:[%s353 + $0x8] sm:$0xf] %v2416
        %2481 = vst [vmem:[%s353 + $0xc] sm:$0xf] %v2417
        %2482 = vst [vmem:[%s353 + $0x10] sm:$0xf] %v2418
        %2483 = vst [vmem:[%s353 + $0x14] sm:$0xf] %v2419
        %2484 = vst [vmem:[%s353 + $0x18] sm:$0xf] %v2420
        %2485 = vst [vmem:[%s353 + $0x1c] sm:$0xf] %v2421
        %2486 = vst [vmem:[%s353 + $0x20] sm:$0xf] %v2422
        %2487 = vst [vmem:[%s353 + $0x24] sm:$0xf] %v2423
        %2488 = vst [vmem:[%s353 + $0x28] sm:$0xf] %v2424
        %2489 = vst [vmem:[%s353 + $0x2c] sm:$0xf] %v2425
        %2490 = vst [vmem:[%s353 + $0x30] sm:$0xf] %v2426
        %2491 = vst [vmem:[%s353 + $0x34] sm:$0xf] %v2427
        %2492 = vst [vmem:[%s353 + $0x38] sm:$0xf] %v2428
        %2493 = vst [vmem:[%s353 + $0x3c] sm:$0xf] %v2429
        %2494 = vst [vmem:[%s353 + $0x40] sm:$0xf] %v2430
        %2495 = vst [vmem:[%s353 + $0x44] sm:$0xf] %v2431
        %2496 = vst [vmem:[%s353 + $0x48] sm:$0xf] %v2432
        %2497 = vst [vmem:[%s353 + $0x4c] sm:$0xf] %v2433
        %2498 = vst [vmem:[%s353 + $0x50] sm:$0xf] %v2434
        %2499 = vst [vmem:[%s353 + $0x54] sm:$0xf] %v2435
        %2500 = vst [vmem:[%s353 + $0x58] sm:$0xf] %v2436
        %2501 = vst [vmem:[%s353 + $0x5c] sm:$0xf] %v2437
        %2502 = vst [vmem:[%s353 + $0x60] sm:$0xf] %v2438
        %2503 = vst [vmem:[%s353 + $0x64] sm:$0xf] %v2439
        %2504 = vst [vmem:[%s353 + $0x68] sm:$0xf] %v2440
        %2505 = vst [vmem:[%s353 + $0x6c] sm:$0xf] %v2441
        %2506 = vst [vmem:[%s353 + $0x70] sm:$0xf] %v2442
        %2507 = vst [vmem:[%s353 + $0x74] sm:$0xf] %v2443
        %2508 = vst [vmem:[%s353 + $0x78] sm:$0xf] %v2444
        %2509 = vst [vmem:[%s353 + $0x7c] sm:$0xf] %v2445
        %s2510 = sand.u32 %s226, 1
        %s2511 = scalar_lea.sflag [#allocation4], %s2510
        %s2512 = sand.u32 %s226, 1
        %s2513 = smul.addr %s2512, 128
        %s2514 = scalar_lea.vmem [#allocation5], %s2513
        // Predicated region
        $region61: #{tpu_custom_call.1} parent=55 // pred_check
          %p2515 = pneg %p236
        $region62: #{tpu_custom_call.1} parent=55 // pred_check_branch
          %2517 = sbr.rel (%p2515) target = $region64
        $region63: #{tpu_custom_call.1} parent=55 // pred_region
          %s2518 = smul.u32 32, %s24
          %s2519 = ssub.s32 63, %s2518
          %p2520 = scmp.lt.s32.totalorder %s2519, 32
          %s2521 = scalar_select %p2520, %s2519, 32
          %s2522 = smul.u32 64, %s2521
          %s2524 = ssub.s32 2048, %s2522
          %2525 = vsyncadd %s2511, %s2524
          %p2526 = scmp.ne.s32.totalorder 0, %s2522
          %s2527 = smul.addr %s2518, 64
          %s2528 = scalar_lea.hbm %s9, %s2527
          %s2529 = smul.u32 4, %s2521
          %s2530 = sshll.u32 %s2514, 4
          %s2531 = int_to_ptr.vmem [resolvable:$true] %s2530
          %s2532 = sshll.u32 %s2529, 4
          %2536 = dma.vmem_to_hbm [thread:$0]  (%p2526), %s2531, %s2532, %s2528, %s2511, 64, 64, 4
        $region64: #{tpu_custom_call.1} parent=55 // pred_fallthru
          _
      $region56: #{tpu_custom_call.1} parent=5 // pred_fallthru
        _
      %p2537 = scmp.le.s32.totalorder 2, %s19
      // Predicated region
      $region65: #{tpu_custom_call.1} parent=5 // pred_check
        %p2538 = pneg %p2537
      $region66: #{tpu_custom_call.1} parent=5 // pred_check_branch
        %2540 = sbr.rel (%p2538) target = $region68
      $region67: #{tpu_custom_call.1} parent=5 // pred_region
        %s2541 = ssub.s32 %s19, 2
        // Predicated region
        $region69: #{tpu_custom_call.1} parent=67 // pred_check
          %p2542 = pneg %p242
        $region70: #{tpu_custom_call.1} parent=67 // pred_check_branch
          %2544 = sbr.rel (%p2542) target = $region72
        $region71: #{tpu_custom_call.1} parent=67 // pred_region
          %s2545 = sand.u32 %s227, 1
          %s2546 = scalar_lea.sflag [#allocation4], %s2545
          %s2547 = sand.u32 %s227, 1
          %s2548 = smul.addr %s2547, 128
          %s2549 = scalar_lea.vmem [#allocation5], %s2548
          %2550 = dma.done %s2546, 2048
        $region72: #{tpu_custom_call.1} parent=67 // pred_fallthru
          _
      $region68: #{tpu_custom_call.1} parent=5 // pred_fallthru
        _
    $region6: #{tpu_custom_call.1} parent=1 // loop_footer
      %s23 = sadd.s32 1, %s19
    $region7: #{tpu_custom_call.1} parent=1 // loop_footer_branch
      %18 = sbr.rel target = $region3
    $region8: #{tpu_custom_call.1} parent=1 // loop_exit
      _
    %2551 = vsyncpa [#allocation3], 1
    %s2552 = scalar_lea.sflag [#allocation3], 1
    %2553 = vsyncpa %s2552, 1
    %2554 = vsyncpa [#allocation4], 1
    %s2555 = scalar_lea.sflag [#allocation4], 1
    %2556 = vsyncpa %s2555, 1

</llo_original>
